<compile_context>
chip_gen: v7x
topology: tpu7x:2x2x1
jax: 0.10.0
libtpu: 0.0.40
codegen_flags: <defaults>
</compile_context>

<pallas_src>
import functools
import math

import jax
import jax.numpy as jnp
from jax.experimental import pallas as pl
from jax.experimental.pallas import tpu as pltpu


# ----------------------------- tiling helpers -------------------------------

_BLOCK_M, _BLOCK_N, _BLOCK_K = 512, 512, 512      # linear projections
_BLOCK_Q, _BLOCK_KV = 256, 256                    # attention sequence tiles


def _pick_tile(dim, desired, quantum):
    """Largest multiple of `quantum` that divides `dim` and is <= `desired`.

    Falls back to the full extent (always a legal block shape) for small or
    awkward dims so grids always divide exactly and no padding garbage can
    leak into reductions / softmax.
    """
    if dim <= desired:
        return dim
    t = (desired // quantum) * quantum
    while t >= quantum:
        if dim % t == 0:
            return t
        t -= quantum
    # TODO(synk): pad + mask instead of the full-extent fallback for
    #             pathological (huge prime) dims; transformer shapes divide.
    return dim


def _vmem_limit_bytes():
    """Generation-aware scoped-VMEM budget: 5/8 of physical capacity
    (v5e/v6e: 80 MiB of 128; v7x: 40 MiB of 64), leaving headroom for
    compiler-internal scratch and semaphores."""
    cap = 128 * 1024 * 1024
    try:
        info = pltpu.get_tpu_info()
        cap = int(getattr(info, "vmem_capacity_bytes", cap))
    except Exception:
        pass
    return (cap * 5) // 8


# --------------------------- out-projection matmul ---------------------------

def _linear_kernel(x_ref, w_ref, b_ref, o_ref, acc_ref):
    """y = x @ w + b with f32 accumulation over the K grid axis."""
    @pl.when(pl.program_id(2) == 0)
    def _():
        acc_ref[...] = jnp.zeros_like(acc_ref)

    acc_ref[...] += jnp.dot(x_ref[...], w_ref[...],
                            preferred_element_type=jnp.float32)

    @pl.when(pl.program_id(2) == pl.num_programs(2) - 1)
    def _():
        o_ref[...] = (acc_ref[...] + b_ref[...].astype(jnp.float32)
                      ).astype(o_ref.dtype)


def pallas_linear(x, w, b):
    """x: (M, K), w: (K, N) (already transposed), b: (N,) -> (M, N)."""
    M, K = x.shape
    Kw, N = w.shape
    assert K == Kw
    tm = _pick_tile(M, _BLOCK_M, 16)      # bf16 packs 16 rows / vreg
    tn = _pick_tile(N, _BLOCK_N, 128)
    tk = _pick_tile(K, _BLOCK_K, 128)
    grid = (M // tm, N // tn, K // tk)
    return pl.pallas_call(
        _linear_kernel,
        out_shape=jax.ShapeDtypeStruct((M, N), x.dtype),
        grid_spec=pltpu.PrefetchScalarGridSpec(
            num_scalar_prefetch=0,
            grid=grid,
            in_specs=[
                pl.BlockSpec((tm, tk), lambda i, j, k: (i, k)),
                pl.BlockSpec((tk, tn), lambda i, j, k: (k, j)),
                pl.BlockSpec((1, tn), lambda i, j, k: (0, j)),
            ],
            out_specs=pl.BlockSpec((tm, tn), lambda i, j, k: (i, j)),
            scratch_shapes=[pltpu.VMEM((tm, tn), jnp.float32)],
        ),
        compiler_params=pltpu.CompilerParams(
            dimension_semantics=("parallel", "parallel", "arbitrary"),
            vmem_limit_bytes=_vmem_limit_bytes()),
    )(x, w, b.reshape(1, N))


# ------------------ fused QKV projection (3 outputs, x read once) -----------

def _qkv_proj_kernel(x_ref, wq_ref, wk_ref, wv_ref, bq_ref, bk_ref, bv_ref,
                     q_ref, k_ref, v_ref, acc_q, acc_k, acc_v):
    @pl.when(pl.program_id(2) == 0)
    def _():
        acc_q[...] = jnp.zeros_like(acc_q)
        acc_k[...] = jnp.zeros_like(acc_k)
        acc_v[...] = jnp.zeros_like(acc_v)

    xb = x_ref[...]                                   # (tm, tk) bf16, once
    acc_q[...] += jnp.dot(xb, wq_ref[...], preferred_element_type=jnp.float32)
    acc_k[...] += jnp.dot(xb, wk_ref[...], preferred_element_type=jnp.float32)
    acc_v[...] += jnp.dot(xb, wv_ref[...], preferred_element_type=jnp.float32)

    @pl.when(pl.program_id(2) == pl.num_programs(2) - 1)
    def _():
        q_ref[...] = (acc_q[...] + bq_ref[...].astype(jnp.float32)).astype(q_ref.dtype)
        k_ref[...] = (acc_k[...] + bk_ref[...].astype(jnp.float32)).astype(k_ref.dtype)
        v_ref[...] = (acc_v[...] + bv_ref[...].astype(jnp.float32)).astype(v_ref.dtype)


def pallas_qkv_proj(x, wqkv, bqkv, embed_dim):
    """x: (M, K), wqkv: (K, 3E), bqkv: (3E,) -> (q, k, v), each (M, E).

    The packed weight/bias are passed three times with column-offset index
    maps (no HBM slicing of Wqkv); x is read from HBM exactly once.
    """
    M, K = x.shape
    K2, threeE = wqkv.shape
    E = embed_dim
    assert K == K2 and threeE == 3 * E
    tm = _pick_tile(M, _BLOCK_M, 16)
    tn = _pick_tile(E, _BLOCK_N, 128)
    tk = _pick_tile(K, _BLOCK_K, 128)
    nb = E // tn                       # N-blocks per output tensor
    grid = (M // tm, nb, K // tk)

    def w_spec(off):
        return pl.BlockSpec((tk, tn), lambda i, j, k, o=off: (k, j + o))

    def b_spec(off):
        return pl.BlockSpec((1, tn), lambda i, j, k, o=off: (0, j + o))

    out_spec = pl.BlockSpec((tm, tn), lambda i, j, k: (i, j))
    out_sds = jax.ShapeDtypeStruct((M, E), x.dtype)
    bqkv2 = bqkv.reshape(1, threeE)

    return pl.pallas_call(
        _qkv_proj_kernel,
        out_shape=(out_sds, out_sds, out_sds),
        grid_spec=pltpu.PrefetchScalarGridSpec(
            num_scalar_prefetch=0,
            grid=grid,
            in_specs=[
                pl.BlockSpec((tm, tk), lambda i, j, k: (i, k)),
                w_spec(0), w_spec(nb), w_spec(2 * nb),
                b_spec(0), b_spec(nb), b_spec(2 * nb),
            ],
            out_specs=[out_spec, out_spec, out_spec],
            scratch_shapes=[pltpu.VMEM((tm, tn), jnp.float32)
                            for _ in range(3)],
        ),
        compiler_params=pltpu.CompilerParams(
            dimension_semantics=("parallel", "parallel", "arbitrary"),
            vmem_limit_bytes=_vmem_limit_bytes()),
    )(x, wqkv, wqkv, wqkv, bqkv2, bqkv2, bqkv2)


# ------------------------- flash attention kernel ---------------------------

def _flash_attn_kernel(q_ref, k_ref, v_ref, o_ref,
                       qh_ref, m_ref, l_ref, acc_ref, *, scale):
    """Online-softmax flash attention, all heads with one batched contraction.

    Grid: (B, num_q_tiles, num_kv_tiles); KV innermost / "arbitrary".
    q_ref:  (1, tq,  H, D) bf16        k_ref/v_ref: (1, tkv, H, D) bf16
    o_ref:  (1, tq,  H, D) bf16
    qh_ref: (H, tq, D) bf16 (head-major, pre-scaled q)
    m/l:    (H, tq, 1) f32             acc: (H, tq, D) f32
    """
    kv_idx = pl.program_id(2)

    @pl.when(kv_idx == 0)
    def _():
        # Head-major, pre-scaled q: built once per q tile.  The softmax scale
        # is folded here, so there is no (tq, tkv) multiply per KV step.
        qh_ref[...] = (pltpu.einshape("shd->hsd", q_ref[0]) * scale
                       ).astype(qh_ref.dtype)
        m_ref[...] = jnp.full_like(m_ref, -jnp.inf)
        l_ref[...] = jnp.zeros_like(l_ref)
        acc_ref[...] = jnp.zeros_like(acc_ref)

    # Head-major k / v tiles (XLU relayout, overlaps with MXU work).
    kh = pltpu.einshape("shd->hsd", k_ref[0])           # (H, tkv, D) bf16
    vh = pltpu.einshape("shd->hsd", v_ref[0])           # (H, tkv, D) bf16

    # Batched-over-heads NT matmul: contract D against D, batch over H.
    s = jnp.einsum("hqd,hkd->hqk", qh_ref[...], kh,
                   preferred_element_type=jnp.float32)  # (H, tq, tkv) f32

    m_prev = m_ref[...]
    m_new = jnp.maximum(m_prev, jnp.max(s, axis=-1, keepdims=True))
    alpha = jnp.exp(m_prev - m_new)                     # (H, tq, 1)
    p = jnp.exp(s - m_new)                              # (H, tq, tkv) f32
    l_ref[...] = alpha * l_ref[...] + jnp.sum(p, axis=-1, keepdims=True)
    acc_ref[...] = alpha * acc_ref[...] + jnp.einsum(
        "hqk,hkd->hqd", p.astype(vh.dtype), vh,
        preferred_element_type=jnp.float32)             # (H, tq, D) f32
    m_ref[...] = m_new

    @pl.when(kv_idx == pl.num_programs(2) - 1)
    def _():
        # EUP approx reciprocal (~bf16-level accuracy; fine for inference).
        inv_l = pl.reciprocal(l_ref[...], approx=True)  # (H, tq, 1)
        ctx = acc_ref[...] * inv_l                      # (H, tq, D) f32
        # Single context store per q tile; the out-DMA writes contiguous
        # E-wide rows of the (B, S, H, D) output.
        o_ref[0] = pltpu.einshape("hsd->shd", ctx).astype(o_ref.dtype)


def pallas_flash_attention(q, k, v, num_heads, softmax_scale):
    """q/k/v: (B, S, E) -> context (B, S, E).  Non-causal, no dropout."""
    B, S, E = q.shape
    H = num_heads
    D = E // H
    assert H * D == E
    tq = _pick_tile(S, _BLOCK_Q, 16)
    tkv = _pick_tile(S, _BLOCK_KV, 16)
    grid = (B, S // tq, S // tkv)

    # Free contiguous reshapes; blocks below are fully contiguous in HBM.
    q4 = q.reshape(B, S, H, D)
    k4 = k.reshape(B, S, H, D)
    v4 = v.reshape(B, S, H, D)

    kern = functools.partial(_flash_attn_kernel, scale=float(softmax_scale))

    q_spec = pl.BlockSpec((1, tq, H, D), lambda b, qi, ki: (b, qi, 0, 0))
    kv_spec = pl.BlockSpec((1, tkv, H, D), lambda b, qi, ki: (b, ki, 0, 0))
    o_spec = pl.BlockSpec((1, tq, H, D), lambda b, qi, ki: (b, qi, 0, 0))

    itemsize = q.dtype.itemsize
    cost = pl.CostEstimate(
        flops=int(4 * B * H * S * S * D),
        transcendentals=int(B * H * S * S),
        bytes_accessed=int(4 * B * S * E * itemsize))

    ctx4 = pl.pallas_call(
        kern,
        out_shape=jax.ShapeDtypeStruct((B, S, H, D), q.dtype),
        grid_spec=pltpu.PrefetchScalarGridSpec(
            num_scalar_prefetch=0,
            grid=grid,
            in_specs=[q_spec, kv_spec, kv_spec],
            out_specs=o_spec,
            scratch_shapes=[
                pltpu.VMEM((H, tq, D), q.dtype),       # head-major scaled q
                pltpu.VMEM((H, tq, 1), jnp.float32),   # running max  m
                pltpu.VMEM((H, tq, 1), jnp.float32),   # running sum  l
                pltpu.VMEM((H, tq, D), jnp.float32),   # accumulator
            ],
        ),
        compiler_params=pltpu.CompilerParams(
            dimension_semantics=("parallel", "parallel", "arbitrary"),
            vmem_limit_bytes=_vmem_limit_bytes()),
        cost_estimate=cost,
    )(q4, k4, v4)
    return ctx4.reshape(B, S, E)


# ------------------------------ FlashMHA glue -------------------------------

def init_flash_mha_params(key, embed_dim, dtype=jnp.bfloat16):
    """Deterministic init mimicking nn.Linear (uniform +-1/sqrt(fan_in))."""
    k1, k2, k3, k4 = jax.random.split(key, 4)
    bound = 1.0 / math.sqrt(embed_dim)
    # Weights stored already transposed: (in_features, out_features).
    wqkv_w = jax.random.uniform(k1, (embed_dim, 3 * embed_dim), jnp.float32,
                                -bound, bound).astype(dtype)
    wqkv_b = jax.random.uniform(k2, (3 * embed_dim,), jnp.float32,
                                -bound, bound).astype(dtype)
    out_w = jax.random.uniform(k3, (embed_dim, embed_dim), jnp.float32,
                               -bound, bound).astype(dtype)
    out_b = jax.random.uniform(k4, (embed_dim,), jnp.float32,
                               -bound, bound).astype(dtype)
    return dict(wqkv_w=wqkv_w, wqkv_b=wqkv_b, out_w=out_w, out_b=out_b)


def flash_mha_forward(x, params, num_heads, causal=False):
    """x: (B, S, E) -> (out (B, S, E), None).  Eval mode (dropout = 0)."""
    # TODO(synk): key_padding_mask (unpad/pad path), causal masking and
    #             attention dropout are not wired; the module defaults
    #             (mask=None, causal=False, eval) are what is implemented.
    assert not causal
    B, S, E = x.shape
    H = num_heads
    D = E // H

    q, k, v = pallas_qkv_proj(x.reshape(B * S, E),
                              params["wqkv_w"], params["wqkv_b"], E)
    q = q.reshape(B, S, E)
    k = k.reshape(B, S, E)
    v = v.reshape(B, S, E)

    ctx = pallas_flash_attention(q, k, v, H, D ** (-0.5))      # (B, S, E)

    out = pallas_linear(ctx.reshape(B * S, E), params["out_w"],
                        params["out_b"]).reshape(B, S, E)
    return out, None


# ------------------------------ reference (jnp) -----------------------------

def _reference_forward(x, params, num_heads):
    B, S, E = x.shape
    H = num_heads
    D = E // H
    xf = x.astype(jnp.float32)
    qkv = xf @ params["wqkv_w"].astype(jnp.float32) + params["wqkv_b"].astype(jnp.float32)
    qkv = qkv.reshape(B, S, 3, H, D)
    q, k, v = qkv[:, :, 0], qkv[:, :, 1], qkv[:, :, 2]      # (B, S, H, D)
    s = jnp.einsum("bqhd,bkhd->bhqk", q, k) * (D ** -0.5)
    p = jax.nn.softmax(s, axis=-1)
    ctx = jnp.einsum("bhqk,bkhd->bqhd", p, v).reshape(B, S, E)
    out = ctx @ params["out_w"].astype(jnp.float32) + params["out_b"].astype(jnp.float32)
    return out


# ----------------------------------- main -----------------------------------

if __name__ == "__main__":
    # Small but TPU-friendly shapes: head_dim=64 (%8==0, <=128), E=H*D=256.
    B, S, E, H = 2, 128, 256, 4
    key = jax.random.PRNGKey(0)
    kx, kp = jax.random.split(key)

    x = jax.random.normal(kx, (B, S, E), jnp.float32).astype(jnp.bfloat16)
    params = init_flash_mha_params(kp, E, dtype=jnp.bfloat16)

    out, attn_w = flash_mha_forward(x, params, num_heads=H, causal=False)
    out = jax.block_until_ready(out)
    assert out.shape == (B, S, E) and out.dtype == jnp.bfloat16
    assert attn_w is None

    ref = _reference_forward(x, params, num_heads=H)
    assert jnp.all(jnp.isfinite(out.astype(jnp.float32)))
    # bf16 end-to-end (incl. approx reciprocal) vs f32 reference: generous tol.
    max_err = jnp.max(jnp.abs(out.astype(jnp.float32) - ref))
    assert float(max_err) < 5e-2, f"max abs err {float(max_err)}"

    print("KERNEL_OK")
</pallas_src>

<mosaic_0001>
module attributes {stable_mosaic.version = 11 : i64} {
  func.func @_qkv_proj_kernel(%arg0: i32, %arg1: i32, %arg2: i32, %arg3: memref<256x256xbf16, #tpu.memory_space<vmem>>, %arg4: memref<256x256xbf16, #tpu.memory_space<vmem>>, %arg5: memref<256x256xbf16, #tpu.memory_space<vmem>>, %arg6: memref<256x256xbf16, #tpu.memory_space<vmem>>, %arg7: memref<1x256xbf16, #tpu.memory_space<vmem>>, %arg8: memref<1x256xbf16, #tpu.memory_space<vmem>>, %arg9: memref<1x256xbf16, #tpu.memory_space<vmem>>, %arg10: memref<256x256xbf16, #tpu.memory_space<vmem>>, %arg11: memref<256x256xbf16, #tpu.memory_space<vmem>>, %arg12: memref<256x256xbf16, #tpu.memory_space<vmem>>, %arg13: memref<256x256xf32, #tpu.memory_space<vmem>>, %arg14: memref<256x256xf32, #tpu.memory_space<vmem>>, %arg15: memref<256x256xf32, #tpu.memory_space<vmem>>) attributes {dimension_semantics = [#tpu.dimension_semantics<parallel>, #tpu.dimension_semantics<parallel>, #tpu.dimension_semantics<arbitrary>], iteration_bounds = array<i64: 1, 1, 1>, scalar_prefetch = 0 : i64, scratch_operands = 3 : i64, tpu.core_type = #tpu.core_type<tc>, window_params = [{transform_indices = @transform_0, window_bounds = array<i64: 256, 256>}, {transform_indices = @transform_1, window_bounds = array<i64: 256, 256>}, {transform_indices = @transform_2, window_bounds = array<i64: 256, 256>}, {transform_indices = @transform_3, window_bounds = array<i64: 256, 256>}, {transform_indices = @transform_4, window_bounds = array<i64: 1, 256>}, {transform_indices = @transform_5, window_bounds = array<i64: 1, 256>}, {transform_indices = @transform_6, window_bounds = array<i64: 1, 256>}, {transform_indices = @transform_7, window_bounds = array<i64: 256, 256>}, {transform_indices = @transform_8, window_bounds = array<i64: 256, 256>}, {transform_indices = @transform_9, window_bounds = array<i64: 256, 256>}]} {
    %c0_i32 = arith.constant 0 : i32
    %0 = arith.cmpi eq, %arg2, %c0_i32 : i32
    %1 = arith.extui %0 : i1 to i32
    %c0_i32_0 = arith.constant 0 : i32
    %2 = arith.cmpi ne, %1, %c0_i32_0 : i32
    scf.if %2 {
      %cst_24 = arith.constant 0.000000e+00 : f32
      %22 = vector.broadcast %cst_24 : f32 to vector<256x256xf32>
      %c0_25 = arith.constant 0 : index
      %c0_26 = arith.constant 0 : index
      %23 = vector.load %arg13[%c0_25, %c0_26] : memref<256x256xf32, #tpu.memory_space<vmem>>, vector<256x256xf32>
      tpu.vector_store %arg13[%c0_25, %c0_26], %22 {strides = array<i32>} : memref<256x256xf32, #tpu.memory_space<vmem>>, vector<256x256xf32>,
      %cst_27 = arith.constant 0.000000e+00 : f32
      %24 = vector.broadcast %cst_27 : f32 to vector<256x256xf32>
      %c0_28 = arith.constant 0 : index
      %c0_29 = arith.constant 0 : index
      %25 = vector.load %arg14[%c0_28, %c0_29] : memref<256x256xf32, #tpu.memory_space<vmem>>, vector<256x256xf32>
      tpu.vector_store %arg14[%c0_28, %c0_29], %24 {strides = array<i32>} : memref<256x256xf32, #tpu.memory_space<vmem>>, vector<256x256xf32>,
      %cst_30 = arith.constant 0.000000e+00 : f32
      %26 = vector.broadcast %cst_30 : f32 to vector<256x256xf32>
      %c0_31 = arith.constant 0 : index
      %c0_32 = arith.constant 0 : index
      %27 = vector.load %arg15[%c0_31, %c0_32] : memref<256x256xf32, #tpu.memory_space<vmem>>, vector<256x256xf32>
      tpu.vector_store %arg15[%c0_31, %c0_32], %26 {strides = array<i32>} : memref<256x256xf32, #tpu.memory_space<vmem>>, vector<256x256xf32>,
    } else {
    }
    %c0 = arith.constant 0 : index
    %c0_1 = arith.constant 0 : index
    %3 = vector.load %arg3[%c0, %c0_1] : memref<256x256xbf16, #tpu.memory_space<vmem>>, vector<256x256xbf16>
    %c0_2 = arith.constant 0 : index
    %c0_3 = arith.constant 0 : index
    %4 = vector.load %arg13[%c0_2, %c0_3] : memref<256x256xf32, #tpu.memory_space<vmem>>, vector<256x256xf32>
    %c0_4 = arith.constant 0 : index
    %c0_5 = arith.constant 0 : index
    %5 = vector.load %arg4[%c0_4, %c0_5] : memref<256x256xbf16, #tpu.memory_space<vmem>>, vector<256x256xbf16>
    %cst = arith.constant dense<0.000000e+00> : vector<256x256xf32>
    %6 = tpu.matmul %3, %5, %cst {dimension_numbers = #tpu.dot_dimension_numbers<[1], [0], [0], [1], [0, 0, 1, 1], [], []>} : vector<256x256xbf16>, vector<256x256xbf16>, vector<256x256xf32> -> vector<256x256xf32>
    %7 = arith.addf %4, %6 : vector<256x256xf32>
    %c0_6 = arith.constant 0 : index
    %c0_7 = arith.constant 0 : index
    %8 = vector.load %arg13[%c0_6, %c0_7] : memref<256x256xf32, #tpu.memory_space<vmem>>, vector<256x256xf32>
    tpu.vector_store %arg13[%c0_6, %c0_7], %7 {strides = array<i32>} : memref<256x256xf32, #tpu.memory_space<vmem>>, vector<256x256xf32>,
    %c0_8 = arith.constant 0 : index
    %c0_9 = arith.constant 0 : index
    %9 = vector.load %arg14[%c0_8, %c0_9] : memref<256x256xf32, #tpu.memory_space<vmem>>, vector<256x256xf32>
    %c0_10 = arith.constant 0 : index
    %c0_11 = arith.constant 0 : index
    %10 = vector.load %arg5[%c0_10, %c0_11] : memref<256x256xbf16, #tpu.memory_space<vmem>>, vector<256x256xbf16>
    %cst_12 = arith.constant dense<0.000000e+00> : vector<256x256xf32>
    %11 = tpu.matmul %3, %10, %cst_12 {dimension_numbers = #tpu.dot_dimension_numbers<[1], [0], [0], [1], [0, 0, 1, 1], [], []>} : vector<256x256xbf16>, vector<256x256xbf16>, vector<256x256xf32> -> vector<256x256xf32>
    %12 = arith.addf %9, %11 : vector<256x256xf32>
    %c0_13 = arith.constant 0 : index
    %c0_14 = arith.constant 0 : index
    %13 = vector.load %arg14[%c0_13, %c0_14] : memref<256x256xf32, #tpu.memory_space<vmem>>, vector<256x256xf32>
    tpu.vector_store %arg14[%c0_13, %c0_14], %12 {strides = array<i32>} : memref<256x256xf32, #tpu.memory_space<vmem>>, vector<256x256xf32>,
    %c0_15 = arith.constant 0 : index
    %c0_16 = arith.constant 0 : index
    %14 = vector.load %arg15[%c0_15, %c0_16] : memref<256x256xf32, #tpu.memory_space<vmem>>, vector<256x256xf32>
    %c0_17 = arith.constant 0 : index
    %c0_18 = arith.constant 0 : index
    %15 = vector.load %arg6[%c0_17, %c0_18] : memref<256x256xbf16, #tpu.memory_space<vmem>>, vector<256x256xbf16>
    %cst_19 = arith.constant dense<0.000000e+00> : vector<256x256xf32>
    %16 = tpu.matmul %3, %15, %cst_19 {dimension_numbers = #tpu.dot_dimension_numbers<[1], [0], [0], [1], [0, 0, 1, 1], [], []>} : vector<256x256xbf16>, vector<256x256xbf16>, vector<256x256xf32> -> vector<256x256xf32>
    %17 = arith.addf %14, %16 : vector<256x256xf32>
    %c0_20 = arith.constant 0 : index
    %c0_21 = arith.constant 0 : index
    %18 = vector.load %arg15[%c0_20, %c0_21] : memref<256x256xf32, #tpu.memory_space<vmem>>, vector<256x256xf32>
    tpu.vector_store %arg15[%c0_20, %c0_21], %17 {strides = array<i32>} : memref<256x256xf32, #tpu.memory_space<vmem>>, vector<256x256xf32>,
    %c0_i32_22 = arith.constant 0 : i32
    %19 = arith.cmpi eq, %arg2, %c0_i32_22 : i32
    %20 = arith.extui %19 : i1 to i32
    %c0_i32_23 = arith.constant 0 : i32
    %21 = arith.cmpi ne, %20, %c0_i32_23 : i32
    scf.if %21 {
      %c0_24 = arith.constant 0 : index
      %c0_25 = arith.constant 0 : index
      %22 = vector.load %arg13[%c0_24, %c0_25] : memref<256x256xf32, #tpu.memory_space<vmem>>, vector<256x256xf32>
      %c0_26 = arith.constant 0 : index
      %c0_27 = arith.constant 0 : index
      %23 = vector.load %arg7[%c0_26, %c0_27] : memref<1x256xbf16, #tpu.memory_space<vmem>>, vector<1x256xbf16>
      %24 = arith.extf %23 : vector<1x256xbf16> to vector<1x256xf32>
      %25 = vector.broadcast %24 : vector<1x256xf32> to vector<256x256xf32>
      %26 = arith.addf %22, %25 : vector<256x256xf32>
      %27 = arith.truncf %26 : vector<256x256xf32> to vector<256x256xbf16>
      %c0_28 = arith.constant 0 : index
      %c0_29 = arith.constant 0 : index
      %28 = vector.load %arg10[%c0_28, %c0_29] : memref<256x256xbf16, #tpu.memory_space<vmem>>, vector<256x256xbf16>
      tpu.vector_store %arg10[%c0_28, %c0_29], %27 {strides = array<i32>} : memref<256x256xbf16, #tpu.memory_space<vmem>>, vector<256x256xbf16>,
      %c0_30 = arith.constant 0 : index
      %c0_31 = arith.constant 0 : index
      %29 = vector.load %arg14[%c0_30, %c0_31] : memref<256x256xf32, #tpu.memory_space<vmem>>, vector<256x256xf32>
      %c0_32 = arith.constant 0 : index
      %c0_33 = arith.constant 0 : index
      %30 = vector.load %arg8[%c0_32, %c0_33] : memref<1x256xbf16, #tpu.memory_space<vmem>>, vector<1x256xbf16>
      %31 = arith.extf %30 : vector<1x256xbf16> to vector<1x256xf32>
      %32 = vector.broadcast %31 : vector<1x256xf32> to vector<256x256xf32>
      %33 = arith.addf %29, %32 : vector<256x256xf32>
      %34 = arith.truncf %33 : vector<256x256xf32> to vector<256x256xbf16>
      %c0_34 = arith.constant 0 : index
      %c0_35 = arith.constant 0 : index
      %35 = vector.load %arg11[%c0_34, %c0_35] : memref<256x256xbf16, #tpu.memory_space<vmem>>, vector<256x256xbf16>
      tpu.vector_store %arg11[%c0_34, %c0_35], %34 {strides = array<i32>} : memref<256x256xbf16, #tpu.memory_space<vmem>>, vector<256x256xbf16>,
      %c0_36 = arith.constant 0 : index
      %c0_37 = arith.constant 0 : index
      %36 = vector.load %arg15[%c0_36, %c0_37] : memref<256x256xf32, #tpu.memory_space<vmem>>, vector<256x256xf32>
      %c0_38 = arith.constant 0 : index
      %c0_39 = arith.constant 0 : index
      %37 = vector.load %arg9[%c0_38, %c0_39] : memref<1x256xbf16, #tpu.memory_space<vmem>>, vector<1x256xbf16>
      %38 = arith.extf %37 : vector<1x256xbf16> to vector<1x256xf32>
      %39 = vector.broadcast %38 : vector<1x256xf32> to vector<256x256xf32>
      %40 = arith.addf %36, %39 : vector<256x256xf32>
      %41 = arith.truncf %40 : vector<256x256xf32> to vector<256x256xbf16>
      %c0_40 = arith.constant 0 : index
      %c0_41 = arith.constant 0 : index
      %42 = vector.load %arg12[%c0_40, %c0_41] : memref<256x256xbf16, #tpu.memory_space<vmem>>, vector<256x256xbf16>
      tpu.vector_store %arg12[%c0_40, %c0_41], %41 {strides = array<i32>} : memref<256x256xbf16, #tpu.memory_space<vmem>>, vector<256x256xbf16>,
    } else {
    }
    return
  }
  func.func @transform_0(%arg0: i32, %arg1: i32, %arg2: i32) -> (i32, i32) {
    %c0_i32 = arith.constant 0 : i32
    return %arg0, %arg2 : i32, i32
  }
  func.func @transform_1(%arg0: i32, %arg1: i32, %arg2: i32) -> (i32, i32) {
    %c0_i32 = arith.constant 0 : i32
    %0 = arith.addi %arg1, %c0_i32 : i32
    %c0_i32_0 = arith.constant 0 : i32
    return %arg2, %0 : i32, i32
  }
  func.func @transform_2(%arg0: i32, %arg1: i32, %arg2: i32) -> (i32, i32) {
    %c1_i32 = arith.constant 1 : i32
    %0 = arith.addi %arg1, %c1_i32 : i32
    %c0_i32 = arith.constant 0 : i32
    return %arg2, %0 : i32, i32
  }
  func.func @transform_3(%arg0: i32, %arg1: i32, %arg2: i32) -> (i32, i32) {
    %c2_i32 = arith.constant 2 : i32
    %0 = arith.addi %arg1, %c2_i32 : i32
    %c0_i32 = arith.constant 0 : i32
    return %arg2, %0 : i32, i32
  }
  func.func @transform_4(%arg0: i32, %arg1: i32, %arg2: i32) -> (i32, i32) {
    %c0_i32 = arith.constant 0 : i32
    %0 = arith.addi %arg1, %c0_i32 : i32
    %c0_i32_0 = arith.constant 0 : i32
    %c0_i32_1 = arith.constant 0 : i32
    return %c0_i32_0, %0 : i32, i32
  }
  func.func @transform_5(%arg0: i32, %arg1: i32, %arg2: i32) -> (i32, i32) {
    %c1_i32 = arith.constant 1 : i32
    %0 = arith.addi %arg1, %c1_i32 : i32
    %c0_i32 = arith.constant 0 : i32
    %c0_i32_0 = arith.constant 0 : i32
    return %c0_i32, %0 : i32, i32
  }
  func.func @transform_6(%arg0: i32, %arg1: i32, %arg2: i32) -> (i32, i32) {
    %c2_i32 = arith.constant 2 : i32
    %0 = arith.addi %arg1, %c2_i32 : i32
    %c0_i32 = arith.constant 0 : i32
    %c0_i32_0 = arith.constant 0 : i32
    return %c0_i32, %0 : i32, i32
  }
  func.func @transform_7(%arg0: i32, %arg1: i32, %arg2: i32) -> (i32, i32) {
    %c0_i32 = arith.constant 0 : i32
    return %arg0, %arg1 : i32, i32
  }
  func.func @transform_8(%arg0: i32, %arg1: i32, %arg2: i32) -> (i32, i32) {
    %c0_i32 = arith.constant 0 : i32
    return %arg0, %arg1 : i32, i32
  }
  func.func @transform_9(%arg0: i32, %arg1: i32, %arg2: i32) -> (i32, i32) {
    %c0_i32 = arith.constant 0 : i32
    return %arg0, %arg1 : i32, i32
  }
}

</mosaic_0001>

<llo_original>
// kernel: tpu_custom_call.1
$region0: #{tpu_custom_call.1}
  #allocation0 [shape = 'u32[]', space=smem, size = 0x4, offset = 0x4, fixed_abs, tag = 'smem constant byte address 0x4 - core index']
  #allocation1 [shape = 'u32[144,128]{1,0:T(1,128)}', space=vmem, size = 0x12000, scoped, tag = 'internal scratch']
  #allocation2 [shape = 'f32[256,256]{1,0:T(8,128)}', space=vmem, size = 0x40000, scoped, tag = 'scratch operand']
  #allocation3 [shape = 'f32[256,256]{1,0:T(8,128)}', space=vmem, size = 0x40000, scoped, tag = 'scratch operand']
  #allocation4 [shape = 'f32[256,256]{1,0:T(8,128)}', space=vmem, size = 0x40000, scoped, tag = 'scratch operand']
  %s0 = inlined_call_operand.hbm [shape: bf16[256,256], index: 0, kind: input, shape index: {}]
  %s1 = inlined_call_operand.hbm [shape: bf16[256,768], index: 1, kind: input, shape index: {}]
  %s2 = inlined_call_operand.hbm [shape: bf16[256,768], index: 2, kind: input, shape index: {}]
  %s3 = inlined_call_operand.hbm [shape: bf16[256,768], index: 3, kind: input, shape index: {}]
  %s4 = inlined_call_operand.hbm [shape: bf16[1,768], index: 4, kind: input, shape index: {}]
  %s5 = inlined_call_operand.hbm [shape: bf16[1,768], index: 5, kind: input, shape index: {}]
  %s6 = inlined_call_operand.hbm [shape: bf16[1,768], index: 6, kind: input, shape index: {}]
  %s7 = inlined_call_operand.hbm [shape: bf16[256,256], index: 7, kind: output, shape index: {0}]
  %s8 = inlined_call_operand.hbm [shape: bf16[256,256], index: 8, kind: output, shape index: {1}]
  %s9 = inlined_call_operand.hbm [shape: bf16[256,256], index: 9, kind: output, shape index: {2}]
  %10 = xla_tuple %s7, %s8, %s9
  %s11 = sld [smem:[#allocation0]]
  $region90: #{tpu_custom_call.1} parent=0
    _
  %s13 = ssub.s32 1, %s11
  %s14 = scalar_select 0, %s13, %s11
  $region1: #{tpu_custom_call.1} parent=0
    #allocation5 [shape = 'u8[131072]{0}', space=vmem, size = 0x20000, scoped, tag = 'input window, operand 0, single buffered']
    #allocation6 [shape = 's32[1]{0}', space=sflag, size = 0x4, scoped, tag = 'scoped memory for tpu_custom_call.1']
    #allocation7 [shape = 's32[1]{0}', space=sflag, size = 0x4, scoped, tag = 'scoped memory for tpu_custom_call.1']
    #allocation8 [shape = 'u8[131072]{0}', space=vmem, size = 0x20000, scoped, tag = 'input window, operand 1, single buffered']
    #allocation9 [shape = 's32[1]{0}', space=sflag, size = 0x4, scoped, tag = 'scoped memory for tpu_custom_call.1']
    #allocation10 [shape = 'u8[131072]{0}', space=vmem, size = 0x20000, scoped, tag = 'input window, operand 2, single buffered']
    #allocation11 [shape = 'u8[131072]{0}', space=vmem, size = 0x20000, scoped, tag = 'input window, operand 3, single buffered']
    #allocation12 [shape = 's32[1]{0}', space=sflag, size = 0x4, scoped, tag = 'scoped memory for tpu_custom_call.1']
    #allocation13 [shape = 'u8[1024]{0}', space=vmem, size = 0x400, scoped, tag = 'input window, operand 4, single buffered']
    #allocation14 [shape = 'u8[1024]{0}', space=vmem, size = 0x400, scoped, tag = 'input window, operand 5, single buffered']
    #allocation15 [shape = 's32[1]{0}', space=sflag, size = 0x4, scoped, tag = 'scoped memory for tpu_custom_call.1']
    #allocation16 [shape = 'u8[1024]{0}', space=vmem, size = 0x400, scoped, tag = 'input window, operand 6, single buffered']
    #allocation17 [shape = 'u8[131072]{0}', space=vmem, size = 0x20000, scoped, tag = 'output window, operand 0, single buffered']
    #allocation18 [shape = 'u8[131072]{0}', space=vmem, size = 0x20000, scoped, tag = 'output window, operand 1, single buffered']
    #allocation19 [shape = 's32[1]{0}', space=sflag, size = 0x4, scoped, tag = 'scoped memory for tpu_custom_call.1']
    #allocation20 [shape = 'u8[131072]{0}', space=vmem, size = 0x20000, scoped, tag = 'output window, operand 2, single buffered']
    %15 = vsyncpa [#allocation6], 0
    %16 = vsyncpa [#allocation9], 0
    %17 = vsyncpa [#allocation12], 0
    %18 = vsyncpa [#allocation15], 0
    %19 = vsyncpa [#allocation7], 0
    %20 = vsyncpa [#allocation19], 0
    // Predicated region
    $region2: #{tpu_custom_call.1} parent=1 // pred_check
      _
    $region3: #{tpu_custom_call.1} parent=1 // pred_check_branch
      %22 = sbr.rel (0) target = $region5
    $region4: #{tpu_custom_call.1} parent=1 // pred_region
      %s24 = ssub.s32 4096, 4096
      %25 = vsyncadd [#allocation6], %s24
      %s26 = sshll.u32 [#allocation5], 4
      %s27 = int_to_ptr.vmem [resolvable:$true] %s26
      %32 = dma.hbm_to_vmem [thread:$0]  %s0, 4096, %s27, [#allocation6], 128, 128, 8
    $region5: #{tpu_custom_call.1} parent=1 // pred_fallthru
      _
    // Predicated region
    $region6: #{tpu_custom_call.1} parent=1 // pred_check
      _
    $region7: #{tpu_custom_call.1} parent=1 // pred_check_branch
      %34 = sbr.rel (0) target = $region9
    $region8: #{tpu_custom_call.1} parent=1 // pred_region
      %s36 = ssub.s32 4096, 4096
      %37 = vsyncadd [#allocation9], %s36
      %s38 = sshll.u32 [#allocation8], 4
      %s39 = int_to_ptr.vmem [resolvable:$true] %s38
      %44 = dma.hbm_to_vmem [thread:$0]  %s1, 4096, %s39, [#allocation9], 384, 128, 8
    $region9: #{tpu_custom_call.1} parent=1 // pred_fallthru
      _
    // Predicated region
    $region10: #{tpu_custom_call.1} parent=1 // pred_check
      _
    $region11: #{tpu_custom_call.1} parent=1 // pred_check_branch
      %46 = sbr.rel (0) target = $region13
    $region12: #{tpu_custom_call.1} parent=1 // pred_region
      %s47 = sadd.s32 0, 1
      %s48 = smul.u32 2, %s47
      %s50 = ssub.s32 4096, 4096
      %51 = vsyncadd [#allocation9], %s50
      %s52 = smul.addr %s48, 64
      %s53 = scalar_lea.hbm %s2, %s52
      %s54 = sshll.u32 [#allocation10], 4
      %s55 = int_to_ptr.vmem [resolvable:$true] %s54
      %60 = dma.hbm_to_vmem [thread:$0]  %s53, 4096, %s55, [#allocation9], 384, 128, 8
    $region13: #{tpu_custom_call.1} parent=1 // pred_fallthru
      _
    // Predicated region
    $region14: #{tpu_custom_call.1} parent=1 // pred_check
      _
    $region15: #{tpu_custom_call.1} parent=1 // pred_check_branch
      %62 = sbr.rel (0) target = $region17
    $region16: #{tpu_custom_call.1} parent=1 // pred_region
      %s63 = sadd.s32 0, 2
      %s64 = smul.u32 2, %s63
      %s66 = ssub.s32 4096, 4096
      %67 = vsyncadd [#allocation12], %s66
      %s68 = smul.addr %s64, 64
      %s69 = scalar_lea.hbm %s3, %s68
      %s70 = sshll.u32 [#allocation11], 4
      %s71 = int_to_ptr.vmem [resolvable:$true] %s70
      %76 = dma.hbm_to_vmem [thread:$0]  %s69, 4096, %s71, [#allocation12], 384, 128, 8
    $region17: #{tpu_custom_call.1} parent=1 // pred_fallthru
      _
    // Predicated region
    $region18: #{tpu_custom_call.1} parent=1 // pred_check
      _
    $region19: #{tpu_custom_call.1} parent=1 // pred_check_branch
      %78 = sbr.rel (0) target = $region21
    $region20: #{tpu_custom_call.1} parent=1 // pred_region
      %s80 = ssub.s32 32, 32
      %81 = vsyncadd [#allocation12], %s80
      %s83 = sshll.u32 [#allocation13], 4
      %s84 = int_to_ptr.vmem [resolvable:$true] %s83
      %86 = dma.hbm_to_vmem [thread:$0]  %s4, 32, %s84, [#allocation12]
    $region21: #{tpu_custom_call.1} parent=1 // pred_fallthru
      _
    // Predicated region
    $region22: #{tpu_custom_call.1} parent=1 // pred_check
      _
    $region23: #{tpu_custom_call.1} parent=1 // pred_check_branch
      %88 = sbr.rel (0) target = $region25
    $region24: #{tpu_custom_call.1} parent=1 // pred_region
      %s89 = sadd.s32 0, 1
      %s90 = smul.u32 2, %s89
      %s92 = ssub.s32 32, 32
      %93 = vsyncadd [#allocation15], %s92
      %s94 = smul.addr %s90, 16
      %s95 = scalar_lea.hbm %s5, %s94
      %s97 = sshll.u32 [#allocation14], 4
      %s98 = int_to_ptr.vmem [resolvable:$true] %s97
      %100 = dma.hbm_to_vmem [thread:$0]  %s95, 32, %s98, [#allocation15]
    $region25: #{tpu_custom_call.1} parent=1 // pred_fallthru
      _
    // Predicated region
    $region26: #{tpu_custom_call.1} parent=1 // pred_check
      _
    $region27: #{tpu_custom_call.1} parent=1 // pred_check_branch
      %102 = sbr.rel (0) target = $region29
    $region28: #{tpu_custom_call.1} parent=1 // pred_region
      %s103 = sadd.s32 0, 2
      %s104 = smul.u32 2, %s103
      %s106 = ssub.s32 32, 32
      %107 = vsyncadd [#allocation15], %s106
      %s108 = smul.addr %s104, 16
      %s109 = scalar_lea.hbm %s6, %s108
      %s111 = sshll.u32 [#allocation16], 4
      %s112 = int_to_ptr.vmem [resolvable:$true] %s111
      %114 = dma.hbm_to_vmem [thread:$0]  %s109, 32, %s112, [#allocation15]
    $region29: #{tpu_custom_call.1} parent=1 // pred_fallthru
      _
    // Predicated region
    $region30: #{tpu_custom_call.1} parent=1 // pred_check
      _
    $region31: #{tpu_custom_call.1} parent=1 // pred_check_branch
      %116 = sbr.rel (0) target = $region33
    $region32: #{tpu_custom_call.1} parent=1 // pred_region
      %117 = dma.done [#allocation6], 4096
    $region33: #{tpu_custom_call.1} parent=1 // pred_fallthru
      _
    // Predicated region
    $region34: #{tpu_custom_call.1} parent=1 // pred_check
      _
    $region35: #{tpu_custom_call.1} parent=1 // pred_check_branch
      %119 = sbr.rel (0) target = $region37
    $region36: #{tpu_custom_call.1} parent=1 // pred_region
      %120 = dma.done [#allocation9], 4096
    $region37: #{tpu_custom_call.1} parent=1 // pred_fallthru
      _
    // Predicated region
    $region38: #{tpu_custom_call.1} parent=1 // pred_check
      _
    $region39: #{tpu_custom_call.1} parent=1 // pred_check_branch
      %122 = sbr.rel (0) target = $region41
    $region40: #{tpu_custom_call.1} parent=1 // pred_region
      %123 = dma.done [#allocation9], 4096
    $region41: #{tpu_custom_call.1} parent=1 // pred_fallthru
      _
    // Predicated region
    $region42: #{tpu_custom_call.1} parent=1 // pred_check
      _
    $region43: #{tpu_custom_call.1} parent=1 // pred_check_branch
      %125 = sbr.rel (0) target = $region45
    $region44: #{tpu_custom_call.1} parent=1 // pred_region
      %126 = dma.done [#allocation12], 4096
    $region45: #{tpu_custom_call.1} parent=1 // pred_fallthru
      _
    // Predicated region
    $region46: #{tpu_custom_call.1} parent=1 // pred_check
      _
    $region47: #{tpu_custom_call.1} parent=1 // pred_check_branch
      %128 = sbr.rel (0) target = $region49
    $region48: #{tpu_custom_call.1} parent=1 // pred_region
      %129 = dma.done [#allocation12], 32
    $region49: #{tpu_custom_call.1} parent=1 // pred_fallthru
      _
    // Predicated region
    $region50: #{tpu_custom_call.1} parent=1 // pred_check
      _
    $region51: #{tpu_custom_call.1} parent=1 // pred_check_branch
      %131 = sbr.rel (0) target = $region53
    $region52: #{tpu_custom_call.1} parent=1 // pred_region
      %132 = dma.done [#allocation15], 32
    $region53: #{tpu_custom_call.1} parent=1 // pred_fallthru
      _
    // Predicated region
    $region54: #{tpu_custom_call.1} parent=1 // pred_check
      _
    $region55: #{tpu_custom_call.1} parent=1 // pred_check_branch
      %134 = sbr.rel (0) target = $region57
    $region56: #{tpu_custom_call.1} parent=1 // pred_region
      %135 = dma.done [#allocation15], 32
    $region57: #{tpu_custom_call.1} parent=1 // pred_fallthru
      _
    %s136 = sadd.s32 0, 1
    %s137 = smul.u32 2, %s136
    %s138 = sadd.s32 0, 2
    %s139 = smul.u32 2, %s138
    %s140 = sadd.s32 0, 1
    %s141 = smul.u32 2, %s140
    %s142 = sadd.s32 0, 2
    %s143 = smul.u32 2, %s142
    %p144 = scmp.eq.s32.totalorder 0, 0
    // Predicated region
    $region58: #{tpu_custom_call.1} parent=1 // pred_check
      %p145 = pneg %p144
    $region59: #{tpu_custom_call.1} parent=1 // pred_check_branch
      %147 = sbr.rel (%p145) target = $region61
    $region60: #{tpu_custom_call.1} parent=1 // pred_region
      %148 = vst [vmem:[#allocation2] sm:$0xff] 0.0
      %149 = vst [vmem:[#allocation2 + $0x8] sm:$0xff] 0.0
      %150 = vst [vmem:[#allocation2 + $0x10] sm:$0xff] 0.0
      %151 = vst [vmem:[#allocation2 + $0x18] sm:$0xff] 0.0
      %152 = vst [vmem:[#allocation2 + $0x20] sm:$0xff] 0.0
      %153 = vst [vmem:[#allocation2 + $0x28] sm:$0xff] 0.0
      %154 = vst [vmem:[#allocation2 + $0x30] sm:$0xff] 0.0
      %155 = vst [vmem:[#allocation2 + $0x38] sm:$0xff] 0.0
      %156 = vst [vmem:[#allocation2 + $0x40] sm:$0xff] 0.0
      %157 = vst [vmem:[#allocation2 + $0x48] sm:$0xff] 0.0
      %158 = vst [vmem:[#allocation2 + $0x50] sm:$0xff] 0.0
      %159 = vst [vmem:[#allocation2 + $0x58] sm:$0xff] 0.0
      %160 = vst [vmem:[#allocation2 + $0x60] sm:$0xff] 0.0
      %161 = vst [vmem:[#allocation2 + $0x68] sm:$0xff] 0.0
      %162 = vst [vmem:[#allocation2 + $0x70] sm:$0xff] 0.0
      %163 = vst [vmem:[#allocation2 + $0x78] sm:$0xff] 0.0
      %164 = vst [vmem:[#allocation2 + $0x80] sm:$0xff] 0.0
      %165 = vst [vmem:[#allocation2 + $0x88] sm:$0xff] 0.0
      %166 = vst [vmem:[#allocation2 + $0x90] sm:$0xff] 0.0
      %167 = vst [vmem:[#allocation2 + $0x98] sm:$0xff] 0.0
      %168 = vst [vmem:[#allocation2 + $0xa0] sm:$0xff] 0.0
      %169 = vst [vmem:[#allocation2 + $0xa8] sm:$0xff] 0.0
      %170 = vst [vmem:[#allocation2 + $0xb0] sm:$0xff] 0.0
      %171 = vst [vmem:[#allocation2 + $0xb8] sm:$0xff] 0.0
      %172 = vst [vmem:[#allocation2 + $0xc0] sm:$0xff] 0.0
      %173 = vst [vmem:[#allocation2 + $0xc8] sm:$0xff] 0.0
      %174 = vst [vmem:[#allocation2 + $0xd0] sm:$0xff] 0.0
      %175 = vst [vmem:[#allocation2 + $0xd8] sm:$0xff] 0.0
      %176 = vst [vmem:[#allocation2 + $0xe0] sm:$0xff] 0.0
      %177 = vst [vmem:[#allocation2 + $0xe8] sm:$0xff] 0.0
      %178 = vst [vmem:[#allocation2 + $0xf0] sm:$0xff] 0.0
      %179 = vst [vmem:[#allocation2 + $0xf8] sm:$0xff] 0.0
      %180 = vst [vmem:[#allocation2 + $0x100] sm:$0xff] 0.0
      %181 = vst [vmem:[#allocation2 + $0x108] sm:$0xff] 0.0
      %182 = vst [vmem:[#allocation2 + $0x110] sm:$0xff] 0.0
      %183 = vst [vmem:[#allocation2 + $0x118] sm:$0xff] 0.0
      %184 = vst [vmem:[#allocation2 + $0x120] sm:$0xff] 0.0
      %185 = vst [vmem:[#allocation2 + $0x128] sm:$0xff] 0.0
      %186 = vst [vmem:[#allocation2 + $0x130] sm:$0xff] 0.0
      %187 = vst [vmem:[#allocation2 + $0x138] sm:$0xff] 0.0
      %188 = vst [vmem:[#allocation2 + $0x140] sm:$0xff] 0.0
      %189 = vst [vmem:[#allocation2 + $0x148] sm:$0xff] 0.0
      %190 = vst [vmem:[#allocation2 + $0x150] sm:$0xff] 0.0
      %191 = vst [vmem:[#allocation2 + $0x158] sm:$0xff] 0.0
      %192 = vst [vmem:[#allocation2 + $0x160] sm:$0xff] 0.0
      %193 = vst [vmem:[#allocation2 + $0x168] sm:$0xff] 0.0
      %194 = vst [vmem:[#allocation2 + $0x170] sm:$0xff] 0.0
      %195 = vst [vmem:[#allocation2 + $0x178] sm:$0xff] 0.0
      %196 = vst [vmem:[#allocation2 + $0x180] sm:$0xff] 0.0
      %197 = vst [vmem:[#allocation2 + $0x188] sm:$0xff] 0.0
      %198 = vst [vmem:[#allocation2 + $0x190] sm:$0xff] 0.0
      %199 = vst [vmem:[#allocation2 + $0x198] sm:$0xff] 0.0
      %200 = vst [vmem:[#allocation2 + $0x1a0] sm:$0xff] 0.0
      %201 = vst [vmem:[#allocation2 + $0x1a8] sm:$0xff] 0.0
      %202 = vst [vmem:[#allocation2 + $0x1b0] sm:$0xff] 0.0
      %203 = vst [vmem:[#allocation2 + $0x1b8] sm:$0xff] 0.0
      %204 = vst [vmem:[#allocation2 + $0x1c0] sm:$0xff] 0.0
      %205 = vst [vmem:[#allocation2 + $0x1c8] sm:$0xff] 0.0
      %206 = vst [vmem:[#allocation2 + $0x1d0] sm:$0xff] 0.0
      %207 = vst [vmem:[#allocation2 + $0x1d8] sm:$0xff] 0.0
      %208 = vst [vmem:[#allocation2 + $0x1e0] sm:$0xff] 0.0
      %209 = vst [vmem:[#allocation2 + $0x1e8] sm:$0xff] 0.0
      %210 = vst [vmem:[#allocation2 + $0x1f0] sm:$0xff] 0.0
      %211 = vst [vmem:[#allocation2 + $0x1f8] sm:$0xff] 0.0
      %212 = vst [vmem:[#allocation3] sm:$0xff] 0.0
      %213 = vst [vmem:[#allocation3 + $0x8] sm:$0xff] 0.0
      %214 = vst [vmem:[#allocation3 + $0x10] sm:$0xff] 0.0
      %215 = vst [vmem:[#allocation3 + $0x18] sm:$0xff] 0.0
      %216 = vst [vmem:[#allocation3 + $0x20] sm:$0xff] 0.0
      %217 = vst [vmem:[#allocation3 + $0x28] sm:$0xff] 0.0
      %218 = vst [vmem:[#allocation3 + $0x30] sm:$0xff] 0.0
      %219 = vst [vmem:[#allocation3 + $0x38] sm:$0xff] 0.0
      %220 = vst [vmem:[#allocation3 + $0x40] sm:$0xff] 0.0
      %221 = vst [vmem:[#allocation3 + $0x48] sm:$0xff] 0.0
      %222 = vst [vmem:[#allocation3 + $0x50] sm:$0xff] 0.0
      %223 = vst [vmem:[#allocation3 + $0x58] sm:$0xff] 0.0
      %224 = vst [vmem:[#allocation3 + $0x60] sm:$0xff] 0.0
      %225 = vst [vmem:[#allocation3 + $0x68] sm:$0xff] 0.0
      %226 = vst [vmem:[#allocation3 + $0x70] sm:$0xff] 0.0
      %227 = vst [vmem:[#allocation3 + $0x78] sm:$0xff] 0.0
      %228 = vst [vmem:[#allocation3 + $0x80] sm:$0xff] 0.0
      %229 = vst [vmem:[#allocation3 + $0x88] sm:$0xff] 0.0
      %230 = vst [vmem:[#allocation3 + $0x90] sm:$0xff] 0.0
      %231 = vst [vmem:[#allocation3 + $0x98] sm:$0xff] 0.0
      %232 = vst [vmem:[#allocation3 + $0xa0] sm:$0xff] 0.0
      %233 = vst [vmem:[#allocation3 + $0xa8] sm:$0xff] 0.0
      %234 = vst [vmem:[#allocation3 + $0xb0] sm:$0xff] 0.0
      %235 = vst [vmem:[#allocation3 + $0xb8] sm:$0xff] 0.0
      %236 = vst [vmem:[#allocation3 + $0xc0] sm:$0xff] 0.0
      %237 = vst [vmem:[#allocation3 + $0xc8] sm:$0xff] 0.0
      %238 = vst [vmem:[#allocation3 + $0xd0] sm:$0xff] 0.0
      %239 = vst [vmem:[#allocation3 + $0xd8] sm:$0xff] 0.0
      %240 = vst [vmem:[#allocation3 + $0xe0] sm:$0xff] 0.0
      %241 = vst [vmem:[#allocation3 + $0xe8] sm:$0xff] 0.0
      %242 = vst [vmem:[#allocation3 + $0xf0] sm:$0xff] 0.0
      %243 = vst [vmem:[#allocation3 + $0xf8] sm:$0xff] 0.0
      %244 = vst [vmem:[#allocation3 + $0x100] sm:$0xff] 0.0
      %245 = vst [vmem:[#allocation3 + $0x108] sm:$0xff] 0.0
      %246 = vst [vmem:[#allocation3 + $0x110] sm:$0xff] 0.0
      %247 = vst [vmem:[#allocation3 + $0x118] sm:$0xff] 0.0
      %248 = vst [vmem:[#allocation3 + $0x120] sm:$0xff] 0.0
      %249 = vst [vmem:[#allocation3 + $0x128] sm:$0xff] 0.0
      %250 = vst [vmem:[#allocation3 + $0x130] sm:$0xff] 0.0
      %251 = vst [vmem:[#allocation3 + $0x138] sm:$0xff] 0.0
      %252 = vst [vmem:[#allocation3 + $0x140] sm:$0xff] 0.0
      %253 = vst [vmem:[#allocation3 + $0x148] sm:$0xff] 0.0
      %254 = vst [vmem:[#allocation3 + $0x150] sm:$0xff] 0.0
      %255 = vst [vmem:[#allocation3 + $0x158] sm:$0xff] 0.0
      %256 = vst [vmem:[#allocation3 + $0x160] sm:$0xff] 0.0
      %257 = vst [vmem:[#allocation3 + $0x168] sm:$0xff] 0.0
      %258 = vst [vmem:[#allocation3 + $0x170] sm:$0xff] 0.0
      %259 = vst [vmem:[#allocation3 + $0x178] sm:$0xff] 0.0
      %260 = vst [vmem:[#allocation3 + $0x180] sm:$0xff] 0.0
      %261 = vst [vmem:[#allocation3 + $0x188] sm:$0xff] 0.0
      %262 = vst [vmem:[#allocation3 + $0x190] sm:$0xff] 0.0
      %263 = vst [vmem:[#allocation3 + $0x198] sm:$0xff] 0.0
      %264 = vst [vmem:[#allocation3 + $0x1a0] sm:$0xff] 0.0
      %265 = vst [vmem:[#allocation3 + $0x1a8] sm:$0xff] 0.0
      %266 = vst [vmem:[#allocation3 + $0x1b0] sm:$0xff] 0.0
      %267 = vst [vmem:[#allocation3 + $0x1b8] sm:$0xff] 0.0
      %268 = vst [vmem:[#allocation3 + $0x1c0] sm:$0xff] 0.0
      %269 = vst [vmem:[#allocation3 + $0x1c8] sm:$0xff] 0.0
      %270 = vst [vmem:[#allocation3 + $0x1d0] sm:$0xff] 0.0
      %271 = vst [vmem:[#allocation3 + $0x1d8] sm:$0xff] 0.0
      %272 = vst [vmem:[#allocation3 + $0x1e0] sm:$0xff] 0.0
      %273 = vst [vmem:[#allocation3 + $0x1e8] sm:$0xff] 0.0
      %274 = vst [vmem:[#allocation3 + $0x1f0] sm:$0xff] 0.0
      %275 = vst [vmem:[#allocation3 + $0x1f8] sm:$0xff] 0.0
      %276 = vst [vmem:[#allocation4] sm:$0xff] 0.0
      %277 = vst [vmem:[#allocation4 + $0x8] sm:$0xff] 0.0
      %278 = vst [vmem:[#allocation4 + $0x10] sm:$0xff] 0.0
      %279 = vst [vmem:[#allocation4 + $0x18] sm:$0xff] 0.0
      %280 = vst [vmem:[#allocation4 + $0x20] sm:$0xff] 0.0
      %281 = vst [vmem:[#allocation4 + $0x28] sm:$0xff] 0.0
      %282 = vst [vmem:[#allocation4 + $0x30] sm:$0xff] 0.0
      %283 = vst [vmem:[#allocation4 + $0x38] sm:$0xff] 0.0
      %284 = vst [vmem:[#allocation4 + $0x40] sm:$0xff] 0.0
      %285 = vst [vmem:[#allocation4 + $0x48] sm:$0xff] 0.0
      %286 = vst [vmem:[#allocation4 + $0x50] sm:$0xff] 0.0
      %287 = vst [vmem:[#allocation4 + $0x58] sm:$0xff] 0.0
      %288 = vst [vmem:[#allocation4 + $0x60] sm:$0xff] 0.0
      %289 = vst [vmem:[#allocation4 + $0x68] sm:$0xff] 0.0
      %290 = vst [vmem:[#allocation4 + $0x70] sm:$0xff] 0.0
      %291 = vst [vmem:[#allocation4 + $0x78] sm:$0xff] 0.0
      %292 = vst [vmem:[#allocation4 + $0x80] sm:$0xff] 0.0
      %293 = vst [vmem:[#allocation4 + $0x88] sm:$0xff] 0.0
      %294 = vst [vmem:[#allocation4 + $0x90] sm:$0xff] 0.0
      %295 = vst [vmem:[#allocation4 + $0x98] sm:$0xff] 0.0
      %296 = vst [vmem:[#allocation4 + $0xa0] sm:$0xff] 0.0
      %297 = vst [vmem:[#allocation4 + $0xa8] sm:$0xff] 0.0
      %298 = vst [vmem:[#allocation4 + $0xb0] sm:$0xff] 0.0
      %299 = vst [vmem:[#allocation4 + $0xb8] sm:$0xff] 0.0
      %300 = vst [vmem:[#allocation4 + $0xc0] sm:$0xff] 0.0
      %301 = vst [vmem:[#allocation4 + $0xc8] sm:$0xff] 0.0
      %302 = vst [vmem:[#allocation4 + $0xd0] sm:$0xff] 0.0
      %303 = vst [vmem:[#allocation4 + $0xd8] sm:$0xff] 0.0
      %304 = vst [vmem:[#allocation4 + $0xe0] sm:$0xff] 0.0
      %305 = vst [vmem:[#allocation4 + $0xe8] sm:$0xff] 0.0
      %306 = vst [vmem:[#allocation4 + $0xf0] sm:$0xff] 0.0
      %307 = vst [vmem:[#allocation4 + $0xf8] sm:$0xff] 0.0
      %308 = vst [vmem:[#allocation4 + $0x100] sm:$0xff] 0.0
      %309 = vst [vmem:[#allocation4 + $0x108] sm:$0xff] 0.0
      %310 = vst [vmem:[#allocation4 + $0x110] sm:$0xff] 0.0
      %311 = vst [vmem:[#allocation4 + $0x118] sm:$0xff] 0.0
      %312 = vst [vmem:[#allocation4 + $0x120] sm:$0xff] 0.0
      %313 = vst [vmem:[#allocation4 + $0x128] sm:$0xff] 0.0
      %314 = vst [vmem:[#allocation4 + $0x130] sm:$0xff] 0.0
      %315 = vst [vmem:[#allocation4 + $0x138] sm:$0xff] 0.0
      %316 = vst [vmem:[#allocation4 + $0x140] sm:$0xff] 0.0
      %317 = vst [vmem:[#allocation4 + $0x148] sm:$0xff] 0.0
      %318 = vst [vmem:[#allocation4 + $0x150] sm:$0xff] 0.0
      %319 = vst [vmem:[#allocation4 + $0x158] sm:$0xff] 0.0
      %320 = vst [vmem:[#allocation4 + $0x160] sm:$0xff] 0.0
      %321 = vst [vmem:[#allocation4 + $0x168] sm:$0xff] 0.0
      %322 = vst [vmem:[#allocation4 + $0x170] sm:$0xff] 0.0
      %323 = vst [vmem:[#allocation4 + $0x178] sm:$0xff] 0.0
      %324 = vst [vmem:[#allocation4 + $0x180] sm:$0xff] 0.0
      %325 = vst [vmem:[#allocation4 + $0x188] sm:$0xff] 0.0
      %326 = vst [vmem:[#allocation4 + $0x190] sm:$0xff] 0.0
      %327 = vst [vmem:[#allocation4 + $0x198] sm:$0xff] 0.0
      %328 = vst [vmem:[#allocation4 + $0x1a0] sm:$0xff] 0.0
      %329 = vst [vmem:[#allocation4 + $0x1a8] sm:$0xff] 0.0
      %330 = vst [vmem:[#allocation4 + $0x1b0] sm:$0xff] 0.0
      %331 = vst [vmem:[#allocation4 + $0x1b8] sm:$0xff] 0.0
      %332 = vst [vmem:[#allocation4 + $0x1c0] sm:$0xff] 0.0
      %333 = vst [vmem:[#allocation4 + $0x1c8] sm:$0xff] 0.0
      %334 = vst [vmem:[#allocation4 + $0x1d0] sm:$0xff] 0.0
      %335 = vst [vmem:[#allocation4 + $0x1d8] sm:$0xff] 0.0
      %336 = vst [vmem:[#allocation4 + $0x1e0] sm:$0xff] 0.0
      %337 = vst [vmem:[#allocation4 + $0x1e8] sm:$0xff] 0.0
      %338 = vst [vmem:[#allocation4 + $0x1f0] sm:$0xff] 0.0
      %339 = vst [vmem:[#allocation4 + $0x1f8] sm:$0xff] 0.0
    $region61: #{tpu_custom_call.1} parent=1 // pred_fallthru
      _
    %v340 = vld [vmem:[#allocation5] sm:$0xff]
    %v341 = vld [vmem:[#allocation5 + $0x8] sm:$0xff]
    %v342 = vld [vmem:[#allocation5 + $0x10] sm:$0xff]
    %v343 = vld [vmem:[#allocation5 + $0x18] sm:$0xff]
    %v344 = vld [vmem:[#allocation5 + $0x20] sm:$0xff]
    %v345 = vld [vmem:[#allocation5 + $0x28] sm:$0xff]
    %v346 = vld [vmem:[#allocation5 + $0x30] sm:$0xff]
    %v347 = vld [vmem:[#allocation5 + $0x38] sm:$0xff]
    %v348 = vld [vmem:[#allocation5 + $0x40] sm:$0xff]
    %v349 = vld [vmem:[#allocation5 + $0x48] sm:$0xff]
    %v350 = vld [vmem:[#allocation5 + $0x50] sm:$0xff]
    %v351 = vld [vmem:[#allocation5 + $0x58] sm:$0xff]
    %v352 = vld [vmem:[#allocation5 + $0x60] sm:$0xff]
    %v353 = vld [vmem:[#allocation5 + $0x68] sm:$0xff]
    %v354 = vld [vmem:[#allocation5 + $0x70] sm:$0xff]
    %v355 = vld [vmem:[#allocation5 + $0x78] sm:$0xff]
    %v356 = vld [vmem:[#allocation5 + $0x80] sm:$0xff]
    %v357 = vld [vmem:[#allocation5 + $0x88] sm:$0xff]
    %v358 = vld [vmem:[#allocation5 + $0x90] sm:$0xff]
    %v359 = vld [vmem:[#allocation5 + $0x98] sm:$0xff]
    %v360 = vld [vmem:[#allocation5 + $0xa0] sm:$0xff]
    %v361 = vld [vmem:[#allocation5 + $0xa8] sm:$0xff]
    %v362 = vld [vmem:[#allocation5 + $0xb0] sm:$0xff]
    %v363 = vld [vmem:[#allocation5 + $0xb8] sm:$0xff]
    %v364 = vld [vmem:[#allocation5 + $0xc0] sm:$0xff]
    %v365 = vld [vmem:[#allocation5 + $0xc8] sm:$0xff]
    %v366 = vld [vmem:[#allocation5 + $0xd0] sm:$0xff]
    %v367 = vld [vmem:[#allocation5 + $0xd8] sm:$0xff]
    %v368 = vld [vmem:[#allocation5 + $0xe0] sm:$0xff]
    %v369 = vld [vmem:[#allocation5 + $0xe8] sm:$0xff]
    %v370 = vld [vmem:[#allocation5 + $0xf0] sm:$0xff]
    %v371 = vld [vmem:[#allocation5 + $0xf8] sm:$0xff]
    %v372 = vld [vmem:[#allocation2] sm:$0xff]
    %v373 = vld [vmem:[#allocation2 + $0x8] sm:$0xff]
    %v374 = vld [vmem:[#allocation2 + $0x10] sm:$0xff]
    %v375 = vld [vmem:[#allocation2 + $0x18] sm:$0xff]
    %v376 = vld [vmem:[#allocation2 + $0x20] sm:$0xff]
    %v377 = vld [vmem:[#allocation2 + $0x28] sm:$0xff]
    %v378 = vld [vmem:[#allocation2 + $0x30] sm:$0xff]
    %v379 = vld [vmem:[#allocation2 + $0x38] sm:$0xff]
    %v380 = vld [vmem:[#allocation2 + $0x40] sm:$0xff]
    %v381 = vld [vmem:[#allocation2 + $0x48] sm:$0xff]
    %v382 = vld [vmem:[#allocation2 + $0x50] sm:$0xff]
    %v383 = vld [vmem:[#allocation2 + $0x58] sm:$0xff]
    %v384 = vld [vmem:[#allocation2 + $0x60] sm:$0xff]
    %v385 = vld [vmem:[#allocation2 + $0x68] sm:$0xff]
    %v386 = vld [vmem:[#allocation2 + $0x70] sm:$0xff]
    %v387 = vld [vmem:[#allocation2 + $0x78] sm:$0xff]
    %v388 = vld [vmem:[#allocation2 + $0x80] sm:$0xff]
    %v389 = vld [vmem:[#allocation2 + $0x88] sm:$0xff]
    %v390 = vld [vmem:[#allocation2 + $0x90] sm:$0xff]
    %v391 = vld [vmem:[#allocation2 + $0x98] sm:$0xff]
    %v392 = vld [vmem:[#allocation2 + $0xa0] sm:$0xff]
    %v393 = vld [vmem:[#allocation2 + $0xa8] sm:$0xff]
    %v394 = vld [vmem:[#allocation2 + $0xb0] sm:$0xff]
    %v395 = vld [vmem:[#allocation2 + $0xb8] sm:$0xff]
    %v396 = vld [vmem:[#allocation2 + $0xc0] sm:$0xff]
    %v397 = vld [vmem:[#allocation2 + $0xc8] sm:$0xff]
    %v398 = vld [vmem:[#allocation2 + $0xd0] sm:$0xff]
    %v399 = vld [vmem:[#allocation2 + $0xd8] sm:$0xff]
    %v400 = vld [vmem:[#allocation2 + $0xe0] sm:$0xff]
    %v401 = vld [vmem:[#allocation2 + $0xe8] sm:$0xff]
    %v402 = vld [vmem:[#allocation2 + $0xf0] sm:$0xff]
    %v403 = vld [vmem:[#allocation2 + $0xf8] sm:$0xff]
    %v404 = vld [vmem:[#allocation2 + $0x100] sm:$0xff]
    %v405 = vld [vmem:[#allocation2 + $0x108] sm:$0xff]
    %v406 = vld [vmem:[#allocation2 + $0x110] sm:$0xff]
    %v407 = vld [vmem:[#allocation2 + $0x118] sm:$0xff]
    %v408 = vld [vmem:[#allocation2 + $0x120] sm:$0xff]
    %v409 = vld [vmem:[#allocation2 + $0x128] sm:$0xff]
    %v410 = vld [vmem:[#allocation2 + $0x130] sm:$0xff]
    %v411 = vld [vmem:[#allocation2 + $0x138] sm:$0xff]
    %v412 = vld [vmem:[#allocation2 + $0x140] sm:$0xff]
    %v413 = vld [vmem:[#allocation2 + $0x148] sm:$0xff]
    %v414 = vld [vmem:[#allocation2 + $0x150] sm:$0xff]
    %v415 = vld [vmem:[#allocation2 + $0x158] sm:$0xff]
    %v416 = vld [vmem:[#allocation2 + $0x160] sm:$0xff]
    %v417 = vld [vmem:[#allocation2 + $0x168] sm:$0xff]
    %v418 = vld [vmem:[#allocation2 + $0x170] sm:$0xff]
    %v419 = vld [vmem:[#allocation2 + $0x178] sm:$0xff]
    %v420 = vld [vmem:[#allocation2 + $0x180] sm:$0xff]
    %v421 = vld [vmem:[#allocation2 + $0x188] sm:$0xff]
    %v422 = vld [vmem:[#allocation2 + $0x190] sm:$0xff]
    %v423 = vld [vmem:[#allocation2 + $0x198] sm:$0xff]
    %v424 = vld [vmem:[#allocation2 + $0x1a0] sm:$0xff]
    %v425 = vld [vmem:[#allocation2 + $0x1a8] sm:$0xff]
    %v426 = vld [vmem:[#allocation2 + $0x1b0] sm:$0xff]
    %v427 = vld [vmem:[#allocation2 + $0x1b8] sm:$0xff]
    %v428 = vld [vmem:[#allocation2 + $0x1c0] sm:$0xff]
    %v429 = vld [vmem:[#allocation2 + $0x1c8] sm:$0xff]
    %v430 = vld [vmem:[#allocation2 + $0x1d0] sm:$0xff]
    %v431 = vld [vmem:[#allocation2 + $0x1d8] sm:$0xff]
    %v432 = vld [vmem:[#allocation2 + $0x1e0] sm:$0xff]
    %v433 = vld [vmem:[#allocation2 + $0x1e8] sm:$0xff]
    %v434 = vld [vmem:[#allocation2 + $0x1f0] sm:$0xff]
    %v435 = vld [vmem:[#allocation2 + $0x1f8] sm:$0xff]
    %v436 = vld [vmem:[#allocation8] sm:$0xff]
    %v437 = vld [vmem:[#allocation8 + $0x8] sm:$0xff]
    %v438 = vld [vmem:[#allocation8 + $0x10] sm:$0xff]
    %v439 = vld [vmem:[#allocation8 + $0x18] sm:$0xff]
    %v440 = vld [vmem:[#allocation8 + $0x20] sm:$0xff]
    %v441 = vld [vmem:[#allocation8 + $0x28] sm:$0xff]
    %v442 = vld [vmem:[#allocation8 + $0x30] sm:$0xff]
    %v443 = vld [vmem:[#allocation8 + $0x38] sm:$0xff]
    %v444 = vld [vmem:[#allocation8 + $0x40] sm:$0xff]
    %v445 = vld [vmem:[#allocation8 + $0x48] sm:$0xff]
    %v446 = vld [vmem:[#allocation8 + $0x50] sm:$0xff]
    %v447 = vld [vmem:[#allocation8 + $0x58] sm:$0xff]
    %v448 = vld [vmem:[#allocation8 + $0x60] sm:$0xff]
    %v449 = vld [vmem:[#allocation8 + $0x68] sm:$0xff]
    %v450 = vld [vmem:[#allocation8 + $0x70] sm:$0xff]
    %v451 = vld [vmem:[#allocation8 + $0x78] sm:$0xff]
    %v452 = vld [vmem:[#allocation8 + $0x80] sm:$0xff]
    %v453 = vld [vmem:[#allocation8 + $0x88] sm:$0xff]
    %v454 = vld [vmem:[#allocation8 + $0x90] sm:$0xff]
    %v455 = vld [vmem:[#allocation8 + $0x98] sm:$0xff]
    %v456 = vld [vmem:[#allocation8 + $0xa0] sm:$0xff]
    %v457 = vld [vmem:[#allocation8 + $0xa8] sm:$0xff]
    %v458 = vld [vmem:[#allocation8 + $0xb0] sm:$0xff]
    %v459 = vld [vmem:[#allocation8 + $0xb8] sm:$0xff]
    %v460 = vld [vmem:[#allocation8 + $0xc0] sm:$0xff]
    %v461 = vld [vmem:[#allocation8 + $0xc8] sm:$0xff]
    %v462 = vld [vmem:[#allocation8 + $0xd0] sm:$0xff]
    %v463 = vld [vmem:[#allocation8 + $0xd8] sm:$0xff]
    %v464 = vld [vmem:[#allocation8 + $0xe0] sm:$0xff]
    %v465 = vld [vmem:[#allocation8 + $0xe8] sm:$0xff]
    %v466 = vld [vmem:[#allocation8 + $0xf0] sm:$0xff]
    %v467 = vld [vmem:[#allocation8 + $0xf8] sm:$0xff]
    %v500 = vunpack.c.l.b16 %v340
    %v501 = vunpack.c.h.b16 %v340
    %v502 = vunpack.c.l.b16 %v341
    %v503 = vunpack.c.h.b16 %v341
    %v504 = vunpack.c.l.b16 %v342
    %v505 = vunpack.c.h.b16 %v342
    %v506 = vunpack.c.l.b16 %v343
    %v507 = vunpack.c.h.b16 %v343
    %v508 = vunpack.c.l.b16 %v344
    %v509 = vunpack.c.h.b16 %v344
    %v510 = vunpack.c.l.b16 %v345
    %v511 = vunpack.c.h.b16 %v345
    %v512 = vunpack.c.l.b16 %v346
    %v513 = vunpack.c.h.b16 %v346
    %v514 = vunpack.c.l.b16 %v347
    %v515 = vunpack.c.h.b16 %v347
    %v516 = vunpack.c.l.b16 %v348
    %v517 = vunpack.c.h.b16 %v348
    %v518 = vunpack.c.l.b16 %v349
    %v519 = vunpack.c.h.b16 %v349
    %v520 = vunpack.c.l.b16 %v350
    %v521 = vunpack.c.h.b16 %v350
    %v522 = vunpack.c.l.b16 %v351
    %v523 = vunpack.c.h.b16 %v351
    %v524 = vunpack.c.l.b16 %v352
    %v525 = vunpack.c.h.b16 %v352
    %v526 = vunpack.c.l.b16 %v353
    %v527 = vunpack.c.h.b16 %v353
    %v528 = vunpack.c.l.b16 %v354
    %v529 = vunpack.c.h.b16 %v354
    %v530 = vunpack.c.l.b16 %v355
    %v531 = vunpack.c.h.b16 %v355
    %v532 = vunpack.c.l.b16 %v356
    %v533 = vunpack.c.h.b16 %v356
    %v534 = vunpack.c.l.b16 %v357
    %v535 = vunpack.c.h.b16 %v357
    %v536 = vunpack.c.l.b16 %v358
    %v537 = vunpack.c.h.b16 %v358
    %v538 = vunpack.c.l.b16 %v359
    %v539 = vunpack.c.h.b16 %v359
    %v540 = vunpack.c.l.b16 %v360
    %v541 = vunpack.c.h.b16 %v360
    %v542 = vunpack.c.l.b16 %v361
    %v543 = vunpack.c.h.b16 %v361
    %v544 = vunpack.c.l.b16 %v362
    %v545 = vunpack.c.h.b16 %v362
    %v546 = vunpack.c.l.b16 %v363
    %v547 = vunpack.c.h.b16 %v363
    %v548 = vunpack.c.l.b16 %v364
    %v549 = vunpack.c.h.b16 %v364
    %v550 = vunpack.c.l.b16 %v365
    %v551 = vunpack.c.h.b16 %v365
    %v552 = vunpack.c.l.b16 %v366
    %v553 = vunpack.c.h.b16 %v366
    %v554 = vunpack.c.l.b16 %v367
    %v555 = vunpack.c.h.b16 %v367
    %v556 = vunpack.c.l.b16 %v368
    %v557 = vunpack.c.h.b16 %v368
    %v558 = vunpack.c.l.b16 %v369
    %v559 = vunpack.c.h.b16 %v369
    %v560 = vunpack.c.l.b16 %v370
    %v561 = vunpack.c.h.b16 %v370
    %v562 = vunpack.c.l.b16 %v371
    %v563 = vunpack.c.h.b16 %v371
    %v564 = vpack.c.b16 %v502, %v500
    %v565 = vpack.c.b16 %v503, %v501
    %v566 = vpack.c.b16 %v506, %v504
    %v567 = vpack.c.b16 %v507, %v505
    %v568 = vpack.c.b16 %v510, %v508
    %v569 = vpack.c.b16 %v511, %v509
    %v570 = vpack.c.b16 %v514, %v512
    %v571 = vpack.c.b16 %v515, %v513
    %v572 = vpack.c.b16 %v518, %v516
    %v573 = vpack.c.b16 %v519, %v517
    %v574 = vpack.c.b16 %v522, %v520
    %v575 = vpack.c.b16 %v523, %v521
    %v576 = vpack.c.b16 %v526, %v524
    %v577 = vpack.c.b16 %v527, %v525
    %v578 = vpack.c.b16 %v530, %v528
    %v579 = vpack.c.b16 %v531, %v529
    %v580 = vpack.c.b16 %v534, %v532
    %v581 = vpack.c.b16 %v535, %v533
    %v582 = vpack.c.b16 %v538, %v536
    %v583 = vpack.c.b16 %v539, %v537
    %v584 = vpack.c.b16 %v542, %v540
    %v585 = vpack.c.b16 %v543, %v541
    %v586 = vpack.c.b16 %v546, %v544
    %v587 = vpack.c.b16 %v547, %v545
    %v588 = vpack.c.b16 %v550, %v548
    %v589 = vpack.c.b16 %v551, %v549
    %v590 = vpack.c.b16 %v554, %v552
    %v591 = vpack.c.b16 %v555, %v553
    %v592 = vpack.c.b16 %v558, %v556
    %v593 = vpack.c.b16 %v559, %v557
    %v594 = vpack.c.b16 %v562, %v560
    %v595 = vpack.c.b16 %v563, %v561
    %v660 = vunpack.c.l.b16 %v436
    %v661 = vunpack.c.h.b16 %v436
    %v662 = vunpack.c.l.b16 %v437
    %v663 = vunpack.c.h.b16 %v437
    %v664 = vunpack.c.l.b16 %v438
    %v665 = vunpack.c.h.b16 %v438
    %v666 = vunpack.c.l.b16 %v439
    %v667 = vunpack.c.h.b16 %v439
    %v668 = vunpack.c.l.b16 %v440
    %v669 = vunpack.c.h.b16 %v440
    %v670 = vunpack.c.l.b16 %v441
    %v671 = vunpack.c.h.b16 %v441
    %v672 = vunpack.c.l.b16 %v442
    %v673 = vunpack.c.h.b16 %v442
    %v674 = vunpack.c.l.b16 %v443
    %v675 = vunpack.c.h.b16 %v443
    %v676 = vunpack.c.l.b16 %v444
    %v677 = vunpack.c.h.b16 %v444
    %v678 = vunpack.c.l.b16 %v445
    %v679 = vunpack.c.h.b16 %v445
    %v680 = vunpack.c.l.b16 %v446
    %v681 = vunpack.c.h.b16 %v446
    %v682 = vunpack.c.l.b16 %v447
    %v683 = vunpack.c.h.b16 %v447
    %v684 = vunpack.c.l.b16 %v448
    %v685 = vunpack.c.h.b16 %v448
    %v686 = vunpack.c.l.b16 %v449
    %v687 = vunpack.c.h.b16 %v449
    %v688 = vunpack.c.l.b16 %v450
    %v689 = vunpack.c.h.b16 %v450
    %v690 = vunpack.c.l.b16 %v451
    %v691 = vunpack.c.h.b16 %v451
    %v692 = vunpack.c.l.b16 %v452
    %v693 = vunpack.c.h.b16 %v452
    %v694 = vunpack.c.l.b16 %v453
    %v695 = vunpack.c.h.b16 %v453
    %v696 = vunpack.c.l.b16 %v454
    %v697 = vunpack.c.h.b16 %v454
    %v698 = vunpack.c.l.b16 %v455
    %v699 = vunpack.c.h.b16 %v455
    %v700 = vunpack.c.l.b16 %v456
    %v701 = vunpack.c.h.b16 %v456
    %v702 = vunpack.c.l.b16 %v457
    %v703 = vunpack.c.h.b16 %v457
    %v704 = vunpack.c.l.b16 %v458
    %v705 = vunpack.c.h.b16 %v458
    %v706 = vunpack.c.l.b16 %v459
    %v707 = vunpack.c.h.b16 %v459
    %v708 = vunpack.c.l.b16 %v460
    %v709 = vunpack.c.h.b16 %v460
    %v710 = vunpack.c.l.b16 %v461
    %v711 = vunpack.c.h.b16 %v461
    %v712 = vunpack.c.l.b16 %v462
    %v713 = vunpack.c.h.b16 %v462
    %v714 = vunpack.c.l.b16 %v463
    %v715 = vunpack.c.h.b16 %v463
    %v716 = vunpack.c.l.b16 %v464
    %v717 = vunpack.c.h.b16 %v464
    %v718 = vunpack.c.l.b16 %v465
    %v719 = vunpack.c.h.b16 %v465
    %v720 = vunpack.c.l.b16 %v466
    %v721 = vunpack.c.h.b16 %v466
    %v722 = vunpack.c.l.b16 %v467
    %v723 = vunpack.c.h.b16 %v467
    %v724 = vpack.c.b16 %v662, %v660
    %v725 = vpack.c.b16 %v663, %v661
    %v726 = vpack.c.b16 %v666, %v664
    %v727 = vpack.c.b16 %v667, %v665
    %v728 = vpack.c.b16 %v670, %v668
    %v729 = vpack.c.b16 %v671, %v669
    %v730 = vpack.c.b16 %v674, %v672
    %v731 = vpack.c.b16 %v675, %v673
    %v732 = vpack.c.b16 %v678, %v676
    %v733 = vpack.c.b16 %v679, %v677
    %v734 = vpack.c.b16 %v682, %v680
    %v735 = vpack.c.b16 %v683, %v681
    %v736 = vpack.c.b16 %v686, %v684
    %v737 = vpack.c.b16 %v687, %v685
    %v738 = vpack.c.b16 %v690, %v688
    %v739 = vpack.c.b16 %v691, %v689
    %v740 = vpack.c.b16 %v694, %v692
    %v741 = vpack.c.b16 %v695, %v693
    %v742 = vpack.c.b16 %v698, %v696
    %v743 = vpack.c.b16 %v699, %v697
    %v744 = vpack.c.b16 %v702, %v700
    %v745 = vpack.c.b16 %v703, %v701
    %v746 = vpack.c.b16 %v706, %v704
    %v747 = vpack.c.b16 %v707, %v705
    %v748 = vpack.c.b16 %v710, %v708
    %v749 = vpack.c.b16 %v711, %v709
    %v750 = vpack.c.b16 %v714, %v712
    %v751 = vpack.c.b16 %v715, %v713
    %v752 = vpack.c.b16 %v718, %v716
    %v753 = vpack.c.b16 %v719, %v717
    %v754 = vpack.c.b16 %v722, %v720
    %v755 = vpack.c.b16 %v723, %v721
    %788 = vmatprep.subr.bf16.mxu0 %v725
    %789 = vmatpush1.bf16.msra.mxu0 %v724
    %790 = vmatprep.subr.bf16.mxu0 %v727
    %791 = vmatpush1.bf16.msra.mxu0 %v726
    %792 = vmatprep.subr.bf16.mxu0 %v729
    %793 = vmatpush1.bf16.msra.mxu0 %v728
    %794 = vmatprep.subr.bf16.mxu0 %v731
    %795 = vmatpush1.bf16.msra.mxu0 %v730
    %796 = vmatprep.subr.bf16.mxu0 %v733
    %797 = vmatpush1.bf16.msra.mxu0 %v732
    %798 = vmatprep.subr.bf16.mxu0 %v735
    %799 = vmatpush1.bf16.msra.mxu0 %v734
    %800 = vmatprep.subr.bf16.mxu0 %v737
    %801 = vmatpush1.bf16.msra.mxu0 %v736
    %802 = vmatprep.subr.bf16.mxu0 %v739
    %803 = vmatpush1.bf16.msra.mxu0 %v738
    %804 = vmatprep.subr.bf16.mxu0 %v741
    %805 = vmatpush1.bf16.msra.mxu0 %v740
    %806 = vmatprep.subr.bf16.mxu0 %v743
    %807 = vmatpush1.bf16.msra.mxu0 %v742
    %808 = vmatprep.subr.bf16.mxu0 %v745
    %809 = vmatpush1.bf16.msra.mxu0 %v744
    %810 = vmatprep.subr.bf16.mxu0 %v747
    %811 = vmatpush1.bf16.msra.mxu0 %v746
    %812 = vmatprep.subr.bf16.mxu0 %v749
    %813 = vmatpush1.bf16.msra.mxu0 %v748
    %814 = vmatprep.subr.bf16.mxu0 %v751
    %815 = vmatpush1.bf16.msra.mxu0 %v750
    %816 = vmatprep.subr.bf16.mxu0 %v753
    %817 = vmatpush1.bf16.msra.mxu0 %v752
    %818 = vmatprep.subr.bf16.mxu0 %v755
    %819 = vmatpush1.bf16.msra.mxu0 %v754
    %820 = vmatprep.mubr.bf16.mxu0 %v565
    %821 = vmatmul.mubr.bf16.gmra.mrb[0].mxu0 %v564
    %v822 = vpop.f32.mrb[0].mxu0
    %v823 = vadd.f32 0.0, %v822
    %v824 = vpop.f32.mrb[0].mxu0
    %v825 = vadd.f32 0.0, %v824
    %v826 = vpop.f32.mrb[0].mxu0
    %v827 = vadd.f32 0.0, %v826
    %v828 = vpop.f32.mrb[0].mxu0
    %v829 = vadd.f32 0.0, %v828
    %830 = vmatprep.mubr.bf16.mxu0 %v567
    %831 = vmatmul.mubr.bf16.gmra.mrb[0].mxu0 %v566
    %v832 = vpop.f32.mrb[0].mxu0
    %v833 = vadd.f32 0.0, %v832
    %v834 = vpop.f32.mrb[0].mxu0
    %v835 = vadd.f32 0.0, %v834
    %v836 = vpop.f32.mrb[0].mxu0
    %v837 = vadd.f32 0.0, %v836
    %v838 = vpop.f32.mrb[0].mxu0
    %v839 = vadd.f32 0.0, %v838
    %840 = vmatprep.mubr.bf16.mxu0 %v569
    %841 = vmatmul.mubr.bf16.gmra.mrb[0].mxu0 %v568
    %v842 = vpop.f32.mrb[0].mxu0
    %v843 = vadd.f32 0.0, %v842
    %v844 = vpop.f32.mrb[0].mxu0
    %v845 = vadd.f32 0.0, %v844
    %v846 = vpop.f32.mrb[0].mxu0
    %v847 = vadd.f32 0.0, %v846
    %v848 = vpop.f32.mrb[0].mxu0
    %v849 = vadd.f32 0.0, %v848
    %850 = vmatprep.mubr.bf16.mxu0 %v571
    %851 = vmatmul.mubr.bf16.gmra.mrb[0].mxu0 %v570
    %v852 = vpop.f32.mrb[0].mxu0
    %v853 = vadd.f32 0.0, %v852
    %v854 = vpop.f32.mrb[0].mxu0
    %v855 = vadd.f32 0.0, %v854
    %v856 = vpop.f32.mrb[0].mxu0
    %v857 = vadd.f32 0.0, %v856
    %v858 = vpop.f32.mrb[0].mxu0
    %v859 = vadd.f32 0.0, %v858
    %860 = vmatprep.mubr.bf16.mxu0 %v573
    %861 = vmatmul.mubr.bf16.gmra.mrb[0].mxu0 %v572
    %v862 = vpop.f32.mrb[0].mxu0
    %v863 = vadd.f32 0.0, %v862
    %v864 = vpop.f32.mrb[0].mxu0
    %v865 = vadd.f32 0.0, %v864
    %v866 = vpop.f32.mrb[0].mxu0
    %v867 = vadd.f32 0.0, %v866
    %v868 = vpop.f32.mrb[0].mxu0
    %v869 = vadd.f32 0.0, %v868
    %870 = vmatprep.mubr.bf16.mxu0 %v575
    %871 = vmatmul.mubr.bf16.gmra.mrb[0].mxu0 %v574
    %v872 = vpop.f32.mrb[0].mxu0
    %v873 = vadd.f32 0.0, %v872
    %v874 = vpop.f32.mrb[0].mxu0
    %v875 = vadd.f32 0.0, %v874
    %v876 = vpop.f32.mrb[0].mxu0
    %v877 = vadd.f32 0.0, %v876
    %v878 = vpop.f32.mrb[0].mxu0
    %v879 = vadd.f32 0.0, %v878
    %880 = vmatprep.mubr.bf16.mxu0 %v577
    %881 = vmatmul.mubr.bf16.gmra.mrb[0].mxu0 %v576
    %v882 = vpop.f32.mrb[0].mxu0
    %v883 = vadd.f32 0.0, %v882
    %v884 = vpop.f32.mrb[0].mxu0
    %v885 = vadd.f32 0.0, %v884
    %v886 = vpop.f32.mrb[0].mxu0
    %v887 = vadd.f32 0.0, %v886
    %v888 = vpop.f32.mrb[0].mxu0
    %v889 = vadd.f32 0.0, %v888
    %890 = vmatprep.mubr.bf16.mxu0 %v579
    %891 = vmatmul.mubr.bf16.gmra.mrb[0].mxu0 %v578
    %v892 = vpop.f32.mrb[0].mxu0
    %v893 = vadd.f32 0.0, %v892
    %v894 = vpop.f32.mrb[0].mxu0
    %v895 = vadd.f32 0.0, %v894
    %v896 = vpop.f32.mrb[0].mxu0
    %v897 = vadd.f32 0.0, %v896
    %v898 = vpop.f32.mrb[0].mxu0
    %v899 = vadd.f32 0.0, %v898
    %900 = vmatprep.mubr.bf16.mxu0 %v581
    %901 = vmatmul.mubr.bf16.gmra.mrb[0].mxu0 %v580
    %v902 = vpop.f32.mrb[0].mxu0
    %v903 = vadd.f32 0.0, %v902
    %v904 = vpop.f32.mrb[0].mxu0
    %v905 = vadd.f32 0.0, %v904
    %v906 = vpop.f32.mrb[0].mxu0
    %v907 = vadd.f32 0.0, %v906
    %v908 = vpop.f32.mrb[0].mxu0
    %v909 = vadd.f32 0.0, %v908
    %910 = vmatprep.mubr.bf16.mxu0 %v583
    %911 = vmatmul.mubr.bf16.gmra.mrb[0].mxu0 %v582
    %v912 = vpop.f32.mrb[0].mxu0
    %v913 = vadd.f32 0.0, %v912
    %v914 = vpop.f32.mrb[0].mxu0
    %v915 = vadd.f32 0.0, %v914
    %v916 = vpop.f32.mrb[0].mxu0
    %v917 = vadd.f32 0.0, %v916
    %v918 = vpop.f32.mrb[0].mxu0
    %v919 = vadd.f32 0.0, %v918
    %920 = vmatprep.mubr.bf16.mxu0 %v585
    %921 = vmatmul.mubr.bf16.gmra.mrb[0].mxu0 %v584
    %v922 = vpop.f32.mrb[0].mxu0
    %v923 = vadd.f32 0.0, %v922
    %v924 = vpop.f32.mrb[0].mxu0
    %v925 = vadd.f32 0.0, %v924
    %v926 = vpop.f32.mrb[0].mxu0
    %v927 = vadd.f32 0.0, %v926
    %v928 = vpop.f32.mrb[0].mxu0
    %v929 = vadd.f32 0.0, %v928
    %930 = vmatprep.mubr.bf16.mxu0 %v587
    %931 = vmatmul.mubr.bf16.gmra.mrb[0].mxu0 %v586
    %v932 = vpop.f32.mrb[0].mxu0
    %v933 = vadd.f32 0.0, %v932
    %v934 = vpop.f32.mrb[0].mxu0
    %v935 = vadd.f32 0.0, %v934
    %v936 = vpop.f32.mrb[0].mxu0
    %v937 = vadd.f32 0.0, %v936
    %v938 = vpop.f32.mrb[0].mxu0
    %v939 = vadd.f32 0.0, %v938
    %940 = vmatprep.mubr.bf16.mxu0 %v589
    %941 = vmatmul.mubr.bf16.gmra.mrb[0].mxu0 %v588
    %v942 = vpop.f32.mrb[0].mxu0
    %v943 = vadd.f32 0.0, %v942
    %v944 = vpop.f32.mrb[0].mxu0
    %v945 = vadd.f32 0.0, %v944
    %v946 = vpop.f32.mrb[0].mxu0
    %v947 = vadd.f32 0.0, %v946
    %v948 = vpop.f32.mrb[0].mxu0
    %v949 = vadd.f32 0.0, %v948
    %950 = vmatprep.mubr.bf16.mxu0 %v591
    %951 = vmatmul.mubr.bf16.gmra.mrb[0].mxu0 %v590
    %v952 = vpop.f32.mrb[0].mxu0
    %v953 = vadd.f32 0.0, %v952
    %v954 = vpop.f32.mrb[0].mxu0
    %v955 = vadd.f32 0.0, %v954
    %v956 = vpop.f32.mrb[0].mxu0
    %v957 = vadd.f32 0.0, %v956
    %v958 = vpop.f32.mrb[0].mxu0
    %v959 = vadd.f32 0.0, %v958
    %960 = vmatprep.mubr.bf16.mxu0 %v593
    %961 = vmatmul.mubr.bf16.gmra.mrb[0].mxu0 %v592
    %v962 = vpop.f32.mrb[0].mxu0
    %v963 = vadd.f32 0.0, %v962
    %v964 = vpop.f32.mrb[0].mxu0
    %v965 = vadd.f32 0.0, %v964
    %v966 = vpop.f32.mrb[0].mxu0
    %v967 = vadd.f32 0.0, %v966
    %v968 = vpop.f32.mrb[0].mxu0
    %v969 = vadd.f32 0.0, %v968
    %970 = vmatprep.mubr.bf16.mxu0 %v595
    %971 = vmatmul.mubr.bf16.gmra.mrb[0].mxu0 %v594
    %v972 = vpop.f32.mrb[0].mxu0
    %v973 = vadd.f32 0.0, %v972
    %v974 = vpop.f32.mrb[0].mxu0
    %v975 = vadd.f32 0.0, %v974
    %v976 = vpop.f32.mrb[0].mxu0
    %v977 = vadd.f32 0.0, %v976
    %v978 = vpop.f32.mrb[0].mxu0
    %v979 = vadd.f32 0.0, %v978
    %980 = vdwg.mxu0
    %v981 = vadd.f32 %v372, %v823
    %v982 = vadd.f32 %v373, %v825
    %v983 = vadd.f32 %v374, %v827
    %v984 = vadd.f32 %v375, %v829
    %v985 = vadd.f32 %v376, %v833
    %v986 = vadd.f32 %v377, %v835
    %v987 = vadd.f32 %v378, %v837
    %v988 = vadd.f32 %v379, %v839
    %v989 = vadd.f32 %v380, %v843
    %v990 = vadd.f32 %v381, %v845
    %v991 = vadd.f32 %v382, %v847
    %v992 = vadd.f32 %v383, %v849
    %v993 = vadd.f32 %v384, %v853
    %v994 = vadd.f32 %v385, %v855
    %v995 = vadd.f32 %v386, %v857
    %v996 = vadd.f32 %v387, %v859
    %v997 = vadd.f32 %v388, %v863
    %v998 = vadd.f32 %v389, %v865
    %v999 = vadd.f32 %v390, %v867
    %v1000 = vadd.f32 %v391, %v869
    %v1001 = vadd.f32 %v392, %v873
    %v1002 = vadd.f32 %v393, %v875
    %v1003 = vadd.f32 %v394, %v877
    %v1004 = vadd.f32 %v395, %v879
    %v1005 = vadd.f32 %v396, %v883
    %v1006 = vadd.f32 %v397, %v885
    %v1007 = vadd.f32 %v398, %v887
    %v1008 = vadd.f32 %v399, %v889
    %v1009 = vadd.f32 %v400, %v893
    %v1010 = vadd.f32 %v401, %v895
    %v1011 = vadd.f32 %v402, %v897
    %v1012 = vadd.f32 %v403, %v899
    %v1013 = vadd.f32 %v404, %v903
    %v1014 = vadd.f32 %v405, %v905
    %v1015 = vadd.f32 %v406, %v907
    %v1016 = vadd.f32 %v407, %v909
    %v1017 = vadd.f32 %v408, %v913
    %v1018 = vadd.f32 %v409, %v915
    %v1019 = vadd.f32 %v410, %v917
    %v1020 = vadd.f32 %v411, %v919
    %v1021 = vadd.f32 %v412, %v923
    %v1022 = vadd.f32 %v413, %v925
    %v1023 = vadd.f32 %v414, %v927
    %v1024 = vadd.f32 %v415, %v929
    %v1025 = vadd.f32 %v416, %v933
    %v1026 = vadd.f32 %v417, %v935
    %v1027 = vadd.f32 %v418, %v937
    %v1028 = vadd.f32 %v419, %v939
    %v1029 = vadd.f32 %v420, %v943
    %v1030 = vadd.f32 %v421, %v945
    %v1031 = vadd.f32 %v422, %v947
    %v1032 = vadd.f32 %v423, %v949
    %v1033 = vadd.f32 %v424, %v953
    %v1034 = vadd.f32 %v425, %v955
    %v1035 = vadd.f32 %v426, %v957
    %v1036 = vadd.f32 %v427, %v959
    %v1037 = vadd.f32 %v428, %v963
    %v1038 = vadd.f32 %v429, %v965
    %v1039 = vadd.f32 %v430, %v967
    %v1040 = vadd.f32 %v431, %v969
    %v1041 = vadd.f32 %v432, %v973
    %v1042 = vadd.f32 %v433, %v975
    %v1043 = vadd.f32 %v434, %v977
    %v1044 = vadd.f32 %v435, %v979
    %1045 = vst [vmem:[#allocation2] sm:$0xff] %v981
    %1046 = vst [vmem:[#allocation2 + $0x8] sm:$0xff] %v982
    %1047 = vst [vmem:[#allocation2 + $0x10] sm:$0xff] %v983
    %1048 = vst [vmem:[#allocation2 + $0x18] sm:$0xff] %v984
    %1049 = vst [vmem:[#allocation2 + $0x20] sm:$0xff] %v985
    %1050 = vst [vmem:[#allocation2 + $0x28] sm:$0xff] %v986
    %1051 = vst [vmem:[#allocation2 + $0x30] sm:$0xff] %v987
    %1052 = vst [vmem:[#allocation2 + $0x38] sm:$0xff] %v988
    %1053 = vst [vmem:[#allocation2 + $0x40] sm:$0xff] %v989
    %1054 = vst [vmem:[#allocation2 + $0x48] sm:$0xff] %v990
    %1055 = vst [vmem:[#allocation2 + $0x50] sm:$0xff] %v991
    %1056 = vst [vmem:[#allocation2 + $0x58] sm:$0xff] %v992
    %1057 = vst [vmem:[#allocation2 + $0x60] sm:$0xff] %v993
    %1058 = vst [vmem:[#allocation2 + $0x68] sm:$0xff] %v994
    %1059 = vst [vmem:[#allocation2 + $0x70] sm:$0xff] %v995
    %1060 = vst [vmem:[#allocation2 + $0x78] sm:$0xff] %v996
    %1061 = vst [vmem:[#allocation2 + $0x80] sm:$0xff] %v997
    %1062 = vst [vmem:[#allocation2 + $0x88] sm:$0xff] %v998
    %1063 = vst [vmem:[#allocation2 + $0x90] sm:$0xff] %v999
    %1064 = vst [vmem:[#allocation2 + $0x98] sm:$0xff] %v1000
    %1065 = vst [vmem:[#allocation2 + $0xa0] sm:$0xff] %v1001
    %1066 = vst [vmem:[#allocation2 + $0xa8] sm:$0xff] %v1002
    %1067 = vst [vmem:[#allocation2 + $0xb0] sm:$0xff] %v1003
    %1068 = vst [vmem:[#allocation2 + $0xb8] sm:$0xff] %v1004
    %1069 = vst [vmem:[#allocation2 + $0xc0] sm:$0xff] %v1005
    %1070 = vst [vmem:[#allocation2 + $0xc8] sm:$0xff] %v1006
    %1071 = vst [vmem:[#allocation2 + $0xd0] sm:$0xff] %v1007
    %1072 = vst [vmem:[#allocation2 + $0xd8] sm:$0xff] %v1008
    %1073 = vst [vmem:[#allocation2 + $0xe0] sm:$0xff] %v1009
    %1074 = vst [vmem:[#allocation2 + $0xe8] sm:$0xff] %v1010
    %1075 = vst [vmem:[#allocation2 + $0xf0] sm:$0xff] %v1011
    %1076 = vst [vmem:[#allocation2 + $0xf8] sm:$0xff] %v1012
    %1077 = vst [vmem:[#allocation2 + $0x100] sm:$0xff] %v1013
    %1078 = vst [vmem:[#allocation2 + $0x108] sm:$0xff] %v1014
    %1079 = vst [vmem:[#allocation2 + $0x110] sm:$0xff] %v1015
    %1080 = vst [vmem:[#allocation2 + $0x118] sm:$0xff] %v1016
    %1081 = vst [vmem:[#allocation2 + $0x120] sm:$0xff] %v1017
    %1082 = vst [vmem:[#allocation2 + $0x128] sm:$0xff] %v1018
    %1083 = vst [vmem:[#allocation2 + $0x130] sm:$0xff] %v1019
    %1084 = vst [vmem:[#allocation2 + $0x138] sm:$0xff] %v1020
    %1085 = vst [vmem:[#allocation2 + $0x140] sm:$0xff] %v1021
    %1086 = vst [vmem:[#allocation2 + $0x148] sm:$0xff] %v1022
    %1087 = vst [vmem:[#allocation2 + $0x150] sm:$0xff] %v1023
    %1088 = vst [vmem:[#allocation2 + $0x158] sm:$0xff] %v1024
    %1089 = vst [vmem:[#allocation2 + $0x160] sm:$0xff] %v1025
    %1090 = vst [vmem:[#allocation2 + $0x168] sm:$0xff] %v1026
    %1091 = vst [vmem:[#allocation2 + $0x170] sm:$0xff] %v1027
    %1092 = vst [vmem:[#allocation2 + $0x178] sm:$0xff] %v1028
    %1093 = vst [vmem:[#allocation2 + $0x180] sm:$0xff] %v1029
    %1094 = vst [vmem:[#allocation2 + $0x188] sm:$0xff] %v1030
    %1095 = vst [vmem:[#allocation2 + $0x190] sm:$0xff] %v1031
    %1096 = vst [vmem:[#allocation2 + $0x198] sm:$0xff] %v1032
    %1097 = vst [vmem:[#allocation2 + $0x1a0] sm:$0xff] %v1033
    %1098 = vst [vmem:[#allocation2 + $0x1a8] sm:$0xff] %v1034
    %1099 = vst [vmem:[#allocation2 + $0x1b0] sm:$0xff] %v1035
    %1100 = vst [vmem:[#allocation2 + $0x1b8] sm:$0xff] %v1036
    %1101 = vst [vmem:[#allocation2 + $0x1c0] sm:$0xff] %v1037
    %1102 = vst [vmem:[#allocation2 + $0x1c8] sm:$0xff] %v1038
    %1103 = vst [vmem:[#allocation2 + $0x1d0] sm:$0xff] %v1039
    %1104 = vst [vmem:[#allocation2 + $0x1d8] sm:$0xff] %v1040
    %1105 = vst [vmem:[#allocation2 + $0x1e0] sm:$0xff] %v1041
    %1106 = vst [vmem:[#allocation2 + $0x1e8] sm:$0xff] %v1042
    %1107 = vst [vmem:[#allocation2 + $0x1f0] sm:$0xff] %v1043
    %1108 = vst [vmem:[#allocation2 + $0x1f8] sm:$0xff] %v1044
    %v1109 = vld [vmem:[#allocation3] sm:$0xff]
    %v1110 = vld [vmem:[#allocation3 + $0x8] sm:$0xff]
    %v1111 = vld [vmem:[#allocation3 + $0x10] sm:$0xff]
    %v1112 = vld [vmem:[#allocation3 + $0x18] sm:$0xff]
    %v1113 = vld [vmem:[#allocation3 + $0x20] sm:$0xff]
    %v1114 = vld [vmem:[#allocation3 + $0x28] sm:$0xff]
    %v1115 = vld [vmem:[#allocation3 + $0x30] sm:$0xff]
    %v1116 = vld [vmem:[#allocation3 + $0x38] sm:$0xff]
    %v1117 = vld [vmem:[#allocation3 + $0x40] sm:$0xff]
    %v1118 = vld [vmem:[#allocation3 + $0x48] sm:$0xff]
    %v1119 = vld [vmem:[#allocation3 + $0x50] sm:$0xff]
    %v1120 = vld [vmem:[#allocation3 + $0x58] sm:$0xff]
    %v1121 = vld [vmem:[#allocation3 + $0x60] sm:$0xff]
    %v1122 = vld [vmem:[#allocation3 + $0x68] sm:$0xff]
    %v1123 = vld [vmem:[#allocation3 + $0x70] sm:$0xff]
    %v1124 = vld [vmem:[#allocation3 + $0x78] sm:$0xff]
    %v1125 = vld [vmem:[#allocation3 + $0x80] sm:$0xff]
    %v1126 = vld [vmem:[#allocation3 + $0x88] sm:$0xff]
    %v1127 = vld [vmem:[#allocation3 + $0x90] sm:$0xff]
    %v1128 = vld [vmem:[#allocation3 + $0x98] sm:$0xff]
    %v1129 = vld [vmem:[#allocation3 + $0xa0] sm:$0xff]
    %v1130 = vld [vmem:[#allocation3 + $0xa8] sm:$0xff]
    %v1131 = vld [vmem:[#allocation3 + $0xb0] sm:$0xff]
    %v1132 = vld [vmem:[#allocation3 + $0xb8] sm:$0xff]
    %v1133 = vld [vmem:[#allocation3 + $0xc0] sm:$0xff]
    %v1134 = vld [vmem:[#allocation3 + $0xc8] sm:$0xff]
    %v1135 = vld [vmem:[#allocation3 + $0xd0] sm:$0xff]
    %v1136 = vld [vmem:[#allocation3 + $0xd8] sm:$0xff]
    %v1137 = vld [vmem:[#allocation3 + $0xe0] sm:$0xff]
    %v1138 = vld [vmem:[#allocation3 + $0xe8] sm:$0xff]
    %v1139 = vld [vmem:[#allocation3 + $0xf0] sm:$0xff]
    %v1140 = vld [vmem:[#allocation3 + $0xf8] sm:$0xff]
    %v1141 = vld [vmem:[#allocation3 + $0x100] sm:$0xff]
    %v1142 = vld [vmem:[#allocation3 + $0x108] sm:$0xff]
    %v1143 = vld [vmem:[#allocation3 + $0x110] sm:$0xff]
    %v1144 = vld [vmem:[#allocation3 + $0x118] sm:$0xff]
    %v1145 = vld [vmem:[#allocation3 + $0x120] sm:$0xff]
    %v1146 = vld [vmem:[#allocation3 + $0x128] sm:$0xff]
    %v1147 = vld [vmem:[#allocation3 + $0x130] sm:$0xff]
    %v1148 = vld [vmem:[#allocation3 + $0x138] sm:$0xff]
    %v1149 = vld [vmem:[#allocation3 + $0x140] sm:$0xff]
    %v1150 = vld [vmem:[#allocation3 + $0x148] sm:$0xff]
    %v1151 = vld [vmem:[#allocation3 + $0x150] sm:$0xff]
    %v1152 = vld [vmem:[#allocation3 + $0x158] sm:$0xff]
    %v1153 = vld [vmem:[#allocation3 + $0x160] sm:$0xff]
    %v1154 = vld [vmem:[#allocation3 + $0x168] sm:$0xff]
    %v1155 = vld [vmem:[#allocation3 + $0x170] sm:$0xff]
    %v1156 = vld [vmem:[#allocation3 + $0x178] sm:$0xff]
    %v1157 = vld [vmem:[#allocation3 + $0x180] sm:$0xff]
    %v1158 = vld [vmem:[#allocation3 + $0x188] sm:$0xff]
    %v1159 = vld [vmem:[#allocation3 + $0x190] sm:$0xff]
    %v1160 = vld [vmem:[#allocation3 + $0x198] sm:$0xff]
    %v1161 = vld [vmem:[#allocation3 + $0x1a0] sm:$0xff]
    %v1162 = vld [vmem:[#allocation3 + $0x1a8] sm:$0xff]
    %v1163 = vld [vmem:[#allocation3 + $0x1b0] sm:$0xff]
    %v1164 = vld [vmem:[#allocation3 + $0x1b8] sm:$0xff]
    %v1165 = vld [vmem:[#allocation3 + $0x1c0] sm:$0xff]
    %v1166 = vld [vmem:[#allocation3 + $0x1c8] sm:$0xff]
    %v1167 = vld [vmem:[#allocation3 + $0x1d0] sm:$0xff]
    %v1168 = vld [vmem:[#allocation3 + $0x1d8] sm:$0xff]
    %v1169 = vld [vmem:[#allocation3 + $0x1e0] sm:$0xff]
    %v1170 = vld [vmem:[#allocation3 + $0x1e8] sm:$0xff]
    %v1171 = vld [vmem:[#allocation3 + $0x1f0] sm:$0xff]
    %v1172 = vld [vmem:[#allocation3 + $0x1f8] sm:$0xff]
    %v1173 = vld [vmem:[#allocation10] sm:$0xff]
    %v1174 = vld [vmem:[#allocation10 + $0x8] sm:$0xff]
    %v1175 = vld [vmem:[#allocation10 + $0x10] sm:$0xff]
    %v1176 = vld [vmem:[#allocation10 + $0x18] sm:$0xff]
    %v1177 = vld [vmem:[#allocation10 + $0x20] sm:$0xff]
    %v1178 = vld [vmem:[#allocation10 + $0x28] sm:$0xff]
    %v1179 = vld [vmem:[#allocation10 + $0x30] sm:$0xff]
    %v1180 = vld [vmem:[#allocation10 + $0x38] sm:$0xff]
    %v1181 = vld [vmem:[#allocation10 + $0x40] sm:$0xff]
    %v1182 = vld [vmem:[#allocation10 + $0x48] sm:$0xff]
    %v1183 = vld [vmem:[#allocation10 + $0x50] sm:$0xff]
    %v1184 = vld [vmem:[#allocation10 + $0x58] sm:$0xff]
    %v1185 = vld [vmem:[#allocation10 + $0x60] sm:$0xff]
    %v1186 = vld [vmem:[#allocation10 + $0x68] sm:$0xff]
    %v1187 = vld [vmem:[#allocation10 + $0x70] sm:$0xff]
    %v1188 = vld [vmem:[#allocation10 + $0x78] sm:$0xff]
    %v1189 = vld [vmem:[#allocation10 + $0x80] sm:$0xff]
    %v1190 = vld [vmem:[#allocation10 + $0x88] sm:$0xff]
    %v1191 = vld [vmem:[#allocation10 + $0x90] sm:$0xff]
    %v1192 = vld [vmem:[#allocation10 + $0x98] sm:$0xff]
    %v1193 = vld [vmem:[#allocation10 + $0xa0] sm:$0xff]
    %v1194 = vld [vmem:[#allocation10 + $0xa8] sm:$0xff]
    %v1195 = vld [vmem:[#allocation10 + $0xb0] sm:$0xff]
    %v1196 = vld [vmem:[#allocation10 + $0xb8] sm:$0xff]
    %v1197 = vld [vmem:[#allocation10 + $0xc0] sm:$0xff]
    %v1198 = vld [vmem:[#allocation10 + $0xc8] sm:$0xff]
    %v1199 = vld [vmem:[#allocation10 + $0xd0] sm:$0xff]
    %v1200 = vld [vmem:[#allocation10 + $0xd8] sm:$0xff]
    %v1201 = vld [vmem:[#allocation10 + $0xe0] sm:$0xff]
    %v1202 = vld [vmem:[#allocation10 + $0xe8] sm:$0xff]
    %v1203 = vld [vmem:[#allocation10 + $0xf0] sm:$0xff]
    %v1204 = vld [vmem:[#allocation10 + $0xf8] sm:$0xff]
    %v1237 = vunpack.c.l.b16 %v1173
    %v1238 = vunpack.c.h.b16 %v1173
    %v1239 = vunpack.c.l.b16 %v1174
    %v1240 = vunpack.c.h.b16 %v1174
    %v1241 = vunpack.c.l.b16 %v1175
    %v1242 = vunpack.c.h.b16 %v1175
    %v1243 = vunpack.c.l.b16 %v1176
    %v1244 = vunpack.c.h.b16 %v1176
    %v1245 = vunpack.c.l.b16 %v1177
    %v1246 = vunpack.c.h.b16 %v1177
    %v1247 = vunpack.c.l.b16 %v1178
    %v1248 = vunpack.c.h.b16 %v1178
    %v1249 = vunpack.c.l.b16 %v1179
    %v1250 = vunpack.c.h.b16 %v1179
    %v1251 = vunpack.c.l.b16 %v1180
    %v1252 = vunpack.c.h.b16 %v1180
    %v1253 = vunpack.c.l.b16 %v1181
    %v1254 = vunpack.c.h.b16 %v1181
    %v1255 = vunpack.c.l.b16 %v1182
    %v1256 = vunpack.c.h.b16 %v1182
    %v1257 = vunpack.c.l.b16 %v1183
    %v1258 = vunpack.c.h.b16 %v1183
    %v1259 = vunpack.c.l.b16 %v1184
    %v1260 = vunpack.c.h.b16 %v1184
    %v1261 = vunpack.c.l.b16 %v1185
    %v1262 = vunpack.c.h.b16 %v1185
    %v1263 = vunpack.c.l.b16 %v1186
    %v1264 = vunpack.c.h.b16 %v1186
    %v1265 = vunpack.c.l.b16 %v1187
    %v1266 = vunpack.c.h.b16 %v1187
    %v1267 = vunpack.c.l.b16 %v1188
    %v1268 = vunpack.c.h.b16 %v1188
    %v1269 = vunpack.c.l.b16 %v1189
    %v1270 = vunpack.c.h.b16 %v1189
    %v1271 = vunpack.c.l.b16 %v1190
    %v1272 = vunpack.c.h.b16 %v1190
    %v1273 = vunpack.c.l.b16 %v1191
    %v1274 = vunpack.c.h.b16 %v1191
    %v1275 = vunpack.c.l.b16 %v1192
    %v1276 = vunpack.c.h.b16 %v1192
    %v1277 = vunpack.c.l.b16 %v1193
    %v1278 = vunpack.c.h.b16 %v1193
    %v1279 = vunpack.c.l.b16 %v1194
    %v1280 = vunpack.c.h.b16 %v1194
    %v1281 = vunpack.c.l.b16 %v1195
    %v1282 = vunpack.c.h.b16 %v1195
    %v1283 = vunpack.c.l.b16 %v1196
    %v1284 = vunpack.c.h.b16 %v1196
    %v1285 = vunpack.c.l.b16 %v1197
    %v1286 = vunpack.c.h.b16 %v1197
    %v1287 = vunpack.c.l.b16 %v1198
    %v1288 = vunpack.c.h.b16 %v1198
    %v1289 = vunpack.c.l.b16 %v1199
    %v1290 = vunpack.c.h.b16 %v1199
    %v1291 = vunpack.c.l.b16 %v1200
    %v1292 = vunpack.c.h.b16 %v1200
    %v1293 = vunpack.c.l.b16 %v1201
    %v1294 = vunpack.c.h.b16 %v1201
    %v1295 = vunpack.c.l.b16 %v1202
    %v1296 = vunpack.c.h.b16 %v1202
    %v1297 = vunpack.c.l.b16 %v1203
    %v1298 = vunpack.c.h.b16 %v1203
    %v1299 = vunpack.c.l.b16 %v1204
    %v1300 = vunpack.c.h.b16 %v1204
    %v1301 = vpack.c.b16 %v1239, %v1237
    %v1302 = vpack.c.b16 %v1240, %v1238
    %v1303 = vpack.c.b16 %v1243, %v1241
    %v1304 = vpack.c.b16 %v1244, %v1242
    %v1305 = vpack.c.b16 %v1247, %v1245
    %v1306 = vpack.c.b16 %v1248, %v1246
    %v1307 = vpack.c.b16 %v1251, %v1249
    %v1308 = vpack.c.b16 %v1252, %v1250
    %v1309 = vpack.c.b16 %v1255, %v1253
    %v1310 = vpack.c.b16 %v1256, %v1254
    %v1311 = vpack.c.b16 %v1259, %v1257
    %v1312 = vpack.c.b16 %v1260, %v1258
    %v1313 = vpack.c.b16 %v1263, %v1261
    %v1314 = vpack.c.b16 %v1264, %v1262
    %v1315 = vpack.c.b16 %v1267, %v1265
    %v1316 = vpack.c.b16 %v1268, %v1266
    %v1317 = vpack.c.b16 %v1271, %v1269
    %v1318 = vpack.c.b16 %v1272, %v1270
    %v1319 = vpack.c.b16 %v1275, %v1273
    %v1320 = vpack.c.b16 %v1276, %v1274
    %v1321 = vpack.c.b16 %v1279, %v1277
    %v1322 = vpack.c.b16 %v1280, %v1278
    %v1323 = vpack.c.b16 %v1283, %v1281
    %v1324 = vpack.c.b16 %v1284, %v1282
    %v1325 = vpack.c.b16 %v1287, %v1285
    %v1326 = vpack.c.b16 %v1288, %v1286
    %v1327 = vpack.c.b16 %v1291, %v1289
    %v1328 = vpack.c.b16 %v1292, %v1290
    %v1329 = vpack.c.b16 %v1295, %v1293
    %v1330 = vpack.c.b16 %v1296, %v1294
    %v1331 = vpack.c.b16 %v1299, %v1297
    %v1332 = vpack.c.b16 %v1300, %v1298
    %1365 = vmatprep.subr.bf16.mxu0 %v1302
    %1366 = vmatpush1.bf16.msra.mxu0 %v1301
    %1367 = vmatprep.subr.bf16.mxu0 %v1304
    %1368 = vmatpush1.bf16.msra.mxu0 %v1303
    %1369 = vmatprep.subr.bf16.mxu0 %v1306
    %1370 = vmatpush1.bf16.msra.mxu0 %v1305
    %1371 = vmatprep.subr.bf16.mxu0 %v1308
    %1372 = vmatpush1.bf16.msra.mxu0 %v1307
    %1373 = vmatprep.subr.bf16.mxu0 %v1310
    %1374 = vmatpush1.bf16.msra.mxu0 %v1309
    %1375 = vmatprep.subr.bf16.mxu0 %v1312
    %1376 = vmatpush1.bf16.msra.mxu0 %v1311
    %1377 = vmatprep.subr.bf16.mxu0 %v1314
    %1378 = vmatpush1.bf16.msra.mxu0 %v1313
    %1379 = vmatprep.subr.bf16.mxu0 %v1316
    %1380 = vmatpush1.bf16.msra.mxu0 %v1315
    %1381 = vmatprep.subr.bf16.mxu0 %v1318
    %1382 = vmatpush1.bf16.msra.mxu0 %v1317
    %1383 = vmatprep.subr.bf16.mxu0 %v1320
    %1384 = vmatpush1.bf16.msra.mxu0 %v1319
    %1385 = vmatprep.subr.bf16.mxu0 %v1322
    %1386 = vmatpush1.bf16.msra.mxu0 %v1321
    %1387 = vmatprep.subr.bf16.mxu0 %v1324
    %1388 = vmatpush1.bf16.msra.mxu0 %v1323
    %1389 = vmatprep.subr.bf16.mxu0 %v1326
    %1390 = vmatpush1.bf16.msra.mxu0 %v1325
    %1391 = vmatprep.subr.bf16.mxu0 %v1328
    %1392 = vmatpush1.bf16.msra.mxu0 %v1327
    %1393 = vmatprep.subr.bf16.mxu0 %v1330
    %1394 = vmatpush1.bf16.msra.mxu0 %v1329
    %1395 = vmatprep.subr.bf16.mxu0 %v1332
    %1396 = vmatpush1.bf16.msra.mxu0 %v1331
    %1397 = vmatprep.mubr.bf16.mxu0 %v565
    %1398 = vmatmul.mubr.bf16.gmra.mrb[0].mxu0 %v564
    %v1399 = vpop.f32.mrb[0].mxu0
    %v1400 = vadd.f32 0.0, %v1399
    %v1401 = vpop.f32.mrb[0].mxu0
    %v1402 = vadd.f32 0.0, %v1401
    %v1403 = vpop.f32.mrb[0].mxu0
    %v1404 = vadd.f32 0.0, %v1403
    %v1405 = vpop.f32.mrb[0].mxu0
    %v1406 = vadd.f32 0.0, %v1405
    %1407 = vmatprep.mubr.bf16.mxu0 %v567
    %1408 = vmatmul.mubr.bf16.gmra.mrb[0].mxu0 %v566
    %v1409 = vpop.f32.mrb[0].mxu0
    %v1410 = vadd.f32 0.0, %v1409
    %v1411 = vpop.f32.mrb[0].mxu0
    %v1412 = vadd.f32 0.0, %v1411
    %v1413 = vpop.f32.mrb[0].mxu0
    %v1414 = vadd.f32 0.0, %v1413
    %v1415 = vpop.f32.mrb[0].mxu0
    %v1416 = vadd.f32 0.0, %v1415
    %1417 = vmatprep.mubr.bf16.mxu0 %v569
    %1418 = vmatmul.mubr.bf16.gmra.mrb[0].mxu0 %v568
    %v1419 = vpop.f32.mrb[0].mxu0
    %v1420 = vadd.f32 0.0, %v1419
    %v1421 = vpop.f32.mrb[0].mxu0
    %v1422 = vadd.f32 0.0, %v1421
    %v1423 = vpop.f32.mrb[0].mxu0
    %v1424 = vadd.f32 0.0, %v1423
    %v1425 = vpop.f32.mrb[0].mxu0
    %v1426 = vadd.f32 0.0, %v1425
    %1427 = vmatprep.mubr.bf16.mxu0 %v571
    %1428 = vmatmul.mubr.bf16.gmra.mrb[0].mxu0 %v570
    %v1429 = vpop.f32.mrb[0].mxu0
    %v1430 = vadd.f32 0.0, %v1429
    %v1431 = vpop.f32.mrb[0].mxu0
    %v1432 = vadd.f32 0.0, %v1431
    %v1433 = vpop.f32.mrb[0].mxu0
    %v1434 = vadd.f32 0.0, %v1433
    %v1435 = vpop.f32.mrb[0].mxu0
    %v1436 = vadd.f32 0.0, %v1435
    %1437 = vmatprep.mubr.bf16.mxu0 %v573
    %1438 = vmatmul.mubr.bf16.gmra.mrb[0].mxu0 %v572
    %v1439 = vpop.f32.mrb[0].mxu0
    %v1440 = vadd.f32 0.0, %v1439
    %v1441 = vpop.f32.mrb[0].mxu0
    %v1442 = vadd.f32 0.0, %v1441
    %v1443 = vpop.f32.mrb[0].mxu0
    %v1444 = vadd.f32 0.0, %v1443
    %v1445 = vpop.f32.mrb[0].mxu0
    %v1446 = vadd.f32 0.0, %v1445
    %1447 = vmatprep.mubr.bf16.mxu0 %v575
    %1448 = vmatmul.mubr.bf16.gmra.mrb[0].mxu0 %v574
    %v1449 = vpop.f32.mrb[0].mxu0
    %v1450 = vadd.f32 0.0, %v1449
    %v1451 = vpop.f32.mrb[0].mxu0
    %v1452 = vadd.f32 0.0, %v1451
    %v1453 = vpop.f32.mrb[0].mxu0
    %v1454 = vadd.f32 0.0, %v1453
    %v1455 = vpop.f32.mrb[0].mxu0
    %v1456 = vadd.f32 0.0, %v1455
    %1457 = vmatprep.mubr.bf16.mxu0 %v577
    %1458 = vmatmul.mubr.bf16.gmra.mrb[0].mxu0 %v576
    %v1459 = vpop.f32.mrb[0].mxu0
    %v1460 = vadd.f32 0.0, %v1459
    %v1461 = vpop.f32.mrb[0].mxu0
    %v1462 = vadd.f32 0.0, %v1461
    %v1463 = vpop.f32.mrb[0].mxu0
    %v1464 = vadd.f32 0.0, %v1463
    %v1465 = vpop.f32.mrb[0].mxu0
    %v1466 = vadd.f32 0.0, %v1465
    %1467 = vmatprep.mubr.bf16.mxu0 %v579
    %1468 = vmatmul.mubr.bf16.gmra.mrb[0].mxu0 %v578
    %v1469 = vpop.f32.mrb[0].mxu0
    %v1470 = vadd.f32 0.0, %v1469
    %v1471 = vpop.f32.mrb[0].mxu0
    %v1472 = vadd.f32 0.0, %v1471
    %v1473 = vpop.f32.mrb[0].mxu0
    %v1474 = vadd.f32 0.0, %v1473
    %v1475 = vpop.f32.mrb[0].mxu0
    %v1476 = vadd.f32 0.0, %v1475
    %1477 = vmatprep.mubr.bf16.mxu0 %v581
    %1478 = vmatmul.mubr.bf16.gmra.mrb[0].mxu0 %v580
    %v1479 = vpop.f32.mrb[0].mxu0
    %v1480 = vadd.f32 0.0, %v1479
    %v1481 = vpop.f32.mrb[0].mxu0
    %v1482 = vadd.f32 0.0, %v1481
    %v1483 = vpop.f32.mrb[0].mxu0
    %v1484 = vadd.f32 0.0, %v1483
    %v1485 = vpop.f32.mrb[0].mxu0
    %v1486 = vadd.f32 0.0, %v1485
    %1487 = vmatprep.mubr.bf16.mxu0 %v583
    %1488 = vmatmul.mubr.bf16.gmra.mrb[0].mxu0 %v582
    %v1489 = vpop.f32.mrb[0].mxu0
    %v1490 = vadd.f32 0.0, %v1489
    %v1491 = vpop.f32.mrb[0].mxu0
    %v1492 = vadd.f32 0.0, %v1491
    %v1493 = vpop.f32.mrb[0].mxu0
    %v1494 = vadd.f32 0.0, %v1493
    %v1495 = vpop.f32.mrb[0].mxu0
    %v1496 = vadd.f32 0.0, %v1495
    %1497 = vmatprep.mubr.bf16.mxu0 %v585
    %1498 = vmatmul.mubr.bf16.gmra.mrb[0].mxu0 %v584
    %v1499 = vpop.f32.mrb[0].mxu0
    %v1500 = vadd.f32 0.0, %v1499
    %v1501 = vpop.f32.mrb[0].mxu0
    %v1502 = vadd.f32 0.0, %v1501
    %v1503 = vpop.f32.mrb[0].mxu0
    %v1504 = vadd.f32 0.0, %v1503
    %v1505 = vpop.f32.mrb[0].mxu0
    %v1506 = vadd.f32 0.0, %v1505
    %1507 = vmatprep.mubr.bf16.mxu0 %v587
    %1508 = vmatmul.mubr.bf16.gmra.mrb[0].mxu0 %v586
    %v1509 = vpop.f32.mrb[0].mxu0
    %v1510 = vadd.f32 0.0, %v1509
    %v1511 = vpop.f32.mrb[0].mxu0
    %v1512 = vadd.f32 0.0, %v1511
    %v1513 = vpop.f32.mrb[0].mxu0
    %v1514 = vadd.f32 0.0, %v1513
    %v1515 = vpop.f32.mrb[0].mxu0
    %v1516 = vadd.f32 0.0, %v1515
    %1517 = vmatprep.mubr.bf16.mxu0 %v589
    %1518 = vmatmul.mubr.bf16.gmra.mrb[0].mxu0 %v588
    %v1519 = vpop.f32.mrb[0].mxu0
    %v1520 = vadd.f32 0.0, %v1519
    %v1521 = vpop.f32.mrb[0].mxu0
    %v1522 = vadd.f32 0.0, %v1521
    %v1523 = vpop.f32.mrb[0].mxu0
    %v1524 = vadd.f32 0.0, %v1523
    %v1525 = vpop.f32.mrb[0].mxu0
    %v1526 = vadd.f32 0.0, %v1525
    %1527 = vmatprep.mubr.bf16.mxu0 %v591
    %1528 = vmatmul.mubr.bf16.gmra.mrb[0].mxu0 %v590
    %v1529 = vpop.f32.mrb[0].mxu0
    %v1530 = vadd.f32 0.0, %v1529
    %v1531 = vpop.f32.mrb[0].mxu0
    %v1532 = vadd.f32 0.0, %v1531
    %v1533 = vpop.f32.mrb[0].mxu0
    %v1534 = vadd.f32 0.0, %v1533
    %v1535 = vpop.f32.mrb[0].mxu0
    %v1536 = vadd.f32 0.0, %v1535
    %1537 = vmatprep.mubr.bf16.mxu0 %v593
    %1538 = vmatmul.mubr.bf16.gmra.mrb[0].mxu0 %v592
    %v1539 = vpop.f32.mrb[0].mxu0
    %v1540 = vadd.f32 0.0, %v1539
    %v1541 = vpop.f32.mrb[0].mxu0
    %v1542 = vadd.f32 0.0, %v1541
    %v1543 = vpop.f32.mrb[0].mxu0
    %v1544 = vadd.f32 0.0, %v1543
    %v1545 = vpop.f32.mrb[0].mxu0
    %v1546 = vadd.f32 0.0, %v1545
    %1547 = vmatprep.mubr.bf16.mxu0 %v595
    %1548 = vmatmul.mubr.bf16.gmra.mrb[0].mxu0 %v594
    %v1549 = vpop.f32.mrb[0].mxu0
    %v1550 = vadd.f32 0.0, %v1549
    %v1551 = vpop.f32.mrb[0].mxu0
    %v1552 = vadd.f32 0.0, %v1551
    %v1553 = vpop.f32.mrb[0].mxu0
    %v1554 = vadd.f32 0.0, %v1553
    %v1555 = vpop.f32.mrb[0].mxu0
    %v1556 = vadd.f32 0.0, %v1555
    %1557 = vdwg.mxu0
    %v1558 = vadd.f32 %v1109, %v1400
    %v1559 = vadd.f32 %v1110, %v1402
    %v1560 = vadd.f32 %v1111, %v1404
    %v1561 = vadd.f32 %v1112, %v1406
    %v1562 = vadd.f32 %v1113, %v1410
    %v1563 = vadd.f32 %v1114, %v1412
    %v1564 = vadd.f32 %v1115, %v1414
    %v1565 = vadd.f32 %v1116, %v1416
    %v1566 = vadd.f32 %v1117, %v1420
    %v1567 = vadd.f32 %v1118, %v1422
    %v1568 = vadd.f32 %v1119, %v1424
    %v1569 = vadd.f32 %v1120, %v1426
    %v1570 = vadd.f32 %v1121, %v1430
    %v1571 = vadd.f32 %v1122, %v1432
    %v1572 = vadd.f32 %v1123, %v1434
    %v1573 = vadd.f32 %v1124, %v1436
    %v1574 = vadd.f32 %v1125, %v1440
    %v1575 = vadd.f32 %v1126, %v1442
    %v1576 = vadd.f32 %v1127, %v1444
    %v1577 = vadd.f32 %v1128, %v1446
    %v1578 = vadd.f32 %v1129, %v1450
    %v1579 = vadd.f32 %v1130, %v1452
    %v1580 = vadd.f32 %v1131, %v1454
    %v1581 = vadd.f32 %v1132, %v1456
    %v1582 = vadd.f32 %v1133, %v1460
    %v1583 = vadd.f32 %v1134, %v1462
    %v1584 = vadd.f32 %v1135, %v1464
    %v1585 = vadd.f32 %v1136, %v1466
    %v1586 = vadd.f32 %v1137, %v1470
    %v1587 = vadd.f32 %v1138, %v1472
    %v1588 = vadd.f32 %v1139, %v1474
    %v1589 = vadd.f32 %v1140, %v1476
    %v1590 = vadd.f32 %v1141, %v1480
    %v1591 = vadd.f32 %v1142, %v1482
    %v1592 = vadd.f32 %v1143, %v1484
    %v1593 = vadd.f32 %v1144, %v1486
    %v1594 = vadd.f32 %v1145, %v1490
    %v1595 = vadd.f32 %v1146, %v1492
    %v1596 = vadd.f32 %v1147, %v1494
    %v1597 = vadd.f32 %v1148, %v1496
    %v1598 = vadd.f32 %v1149, %v1500
    %v1599 = vadd.f32 %v1150, %v1502
    %v1600 = vadd.f32 %v1151, %v1504
    %v1601 = vadd.f32 %v1152, %v1506
    %v1602 = vadd.f32 %v1153, %v1510
    %v1603 = vadd.f32 %v1154, %v1512
    %v1604 = vadd.f32 %v1155, %v1514
    %v1605 = vadd.f32 %v1156, %v1516
    %v1606 = vadd.f32 %v1157, %v1520
    %v1607 = vadd.f32 %v1158, %v1522
    %v1608 = vadd.f32 %v1159, %v1524
    %v1609 = vadd.f32 %v1160, %v1526
    %v1610 = vadd.f32 %v1161, %v1530
    %v1611 = vadd.f32 %v1162, %v1532
    %v1612 = vadd.f32 %v1163, %v1534
    %v1613 = vadd.f32 %v1164, %v1536
    %v1614 = vadd.f32 %v1165, %v1540
    %v1615 = vadd.f32 %v1166, %v1542
    %v1616 = vadd.f32 %v1167, %v1544
    %v1617 = vadd.f32 %v1168, %v1546
    %v1618 = vadd.f32 %v1169, %v1550
    %v1619 = vadd.f32 %v1170, %v1552
    %v1620 = vadd.f32 %v1171, %v1554
    %v1621 = vadd.f32 %v1172, %v1556
    %1622 = vst [vmem:[#allocation3] sm:$0xff] %v1558
    %1623 = vst [vmem:[#allocation3 + $0x8] sm:$0xff] %v1559
    %1624 = vst [vmem:[#allocation3 + $0x10] sm:$0xff] %v1560
    %1625 = vst [vmem:[#allocation3 + $0x18] sm:$0xff] %v1561
    %1626 = vst [vmem:[#allocation3 + $0x20] sm:$0xff] %v1562
    %1627 = vst [vmem:[#allocation3 + $0x28] sm:$0xff] %v1563
    %1628 = vst [vmem:[#allocation3 + $0x30] sm:$0xff] %v1564
    %1629 = vst [vmem:[#allocation3 + $0x38] sm:$0xff] %v1565
    %1630 = vst [vmem:[#allocation3 + $0x40] sm:$0xff] %v1566
    %1631 = vst [vmem:[#allocation3 + $0x48] sm:$0xff] %v1567
    %1632 = vst [vmem:[#allocation3 + $0x50] sm:$0xff] %v1568
    %1633 = vst [vmem:[#allocation3 + $0x58] sm:$0xff] %v1569
    %1634 = vst [vmem:[#allocation3 + $0x60] sm:$0xff] %v1570
    %1635 = vst [vmem:[#allocation3 + $0x68] sm:$0xff] %v1571
    %1636 = vst [vmem:[#allocation3 + $0x70] sm:$0xff] %v1572
    %1637 = vst [vmem:[#allocation3 + $0x78] sm:$0xff] %v1573
    %1638 = vst [vmem:[#allocation3 + $0x80] sm:$0xff] %v1574
    %1639 = vst [vmem:[#allocation3 + $0x88] sm:$0xff] %v1575
    %1640 = vst [vmem:[#allocation3 + $0x90] sm:$0xff] %v1576
    %1641 = vst [vmem:[#allocation3 + $0x98] sm:$0xff] %v1577
    %1642 = vst [vmem:[#allocation3 + $0xa0] sm:$0xff] %v1578
    %1643 = vst [vmem:[#allocation3 + $0xa8] sm:$0xff] %v1579
    %1644 = vst [vmem:[#allocation3 + $0xb0] sm:$0xff] %v1580
    %1645 = vst [vmem:[#allocation3 + $0xb8] sm:$0xff] %v1581
    %1646 = vst [vmem:[#allocation3 + $0xc0] sm:$0xff] %v1582
    %1647 = vst [vmem:[#allocation3 + $0xc8] sm:$0xff] %v1583
    %1648 = vst [vmem:[#allocation3 + $0xd0] sm:$0xff] %v1584
    %1649 = vst [vmem:[#allocation3 + $0xd8] sm:$0xff] %v1585
    %1650 = vst [vmem:[#allocation3 + $0xe0] sm:$0xff] %v1586
    %1651 = vst [vmem:[#allocation3 + $0xe8] sm:$0xff] %v1587
    %1652 = vst [vmem:[#allocation3 + $0xf0] sm:$0xff] %v1588
    %1653 = vst [vmem:[#allocation3 + $0xf8] sm:$0xff] %v1589
    %1654 = vst [vmem:[#allocation3 + $0x100] sm:$0xff] %v1590
    %1655 = vst [vmem:[#allocation3 + $0x108] sm:$0xff] %v1591
    %1656 = vst [vmem:[#allocation3 + $0x110] sm:$0xff] %v1592
    %1657 = vst [vmem:[#allocation3 + $0x118] sm:$0xff] %v1593
    %1658 = vst [vmem:[#allocation3 + $0x120] sm:$0xff] %v1594
    %1659 = vst [vmem:[#allocation3 + $0x128] sm:$0xff] %v1595
    %1660 = vst [vmem:[#allocation3 + $0x130] sm:$0xff] %v1596
    %1661 = vst [vmem:[#allocation3 + $0x138] sm:$0xff] %v1597
    %1662 = vst [vmem:[#allocation3 + $0x140] sm:$0xff] %v1598
    %1663 = vst [vmem:[#allocation3 + $0x148] sm:$0xff] %v1599
    %1664 = vst [vmem:[#allocation3 + $0x150] sm:$0xff] %v1600
    %1665 = vst [vmem:[#allocation3 + $0x158] sm:$0xff] %v1601
    %1666 = vst [vmem:[#allocation3 + $0x160] sm:$0xff] %v1602
    %1667 = vst [vmem:[#allocation3 + $0x168] sm:$0xff] %v1603
    %1668 = vst [vmem:[#allocation3 + $0x170] sm:$0xff] %v1604
    %1669 = vst [vmem:[#allocation3 + $0x178] sm:$0xff] %v1605
    %1670 = vst [vmem:[#allocation3 + $0x180] sm:$0xff] %v1606
    %1671 = vst [vmem:[#allocation3 + $0x188] sm:$0xff] %v1607
    %1672 = vst [vmem:[#allocation3 + $0x190] sm:$0xff] %v1608
    %1673 = vst [vmem:[#allocation3 + $0x198] sm:$0xff] %v1609
    %1674 = vst [vmem:[#allocation3 + $0x1a0] sm:$0xff] %v1610
    %1675 = vst [vmem:[#allocation3 + $0x1a8] sm:$0xff] %v1611
    %1676 = vst [vmem:[#allocation3 + $0x1b0] sm:$0xff] %v1612
    %1677 = vst [vmem:[#allocation3 + $0x1b8] sm:$0xff] %v1613
    %1678 = vst [vmem:[#allocation3 + $0x1c0] sm:$0xff] %v1614
    %1679 = vst [vmem:[#allocation3 + $0x1c8] sm:$0xff] %v1615
    %1680 = vst [vmem:[#allocation3 + $0x1d0] sm:$0xff] %v1616
    %1681 = vst [vmem:[#allocation3 + $0x1d8] sm:$0xff] %v1617
    %1682 = vst [vmem:[#allocation3 + $0x1e0] sm:$0xff] %v1618
    %1683 = vst [vmem:[#allocation3 + $0x1e8] sm:$0xff] %v1619
    %1684 = vst [vmem:[#allocation3 + $0x1f0] sm:$0xff] %v1620
    %1685 = vst [vmem:[#allocation3 + $0x1f8] sm:$0xff] %v1621
    %v1686 = vld [vmem:[#allocation4] sm:$0xff]
    %v1687 = vld [vmem:[#allocation4 + $0x8] sm:$0xff]
    %v1688 = vld [vmem:[#allocation4 + $0x10] sm:$0xff]
    %v1689 = vld [vmem:[#allocation4 + $0x18] sm:$0xff]
    %v1690 = vld [vmem:[#allocation4 + $0x20] sm:$0xff]
    %v1691 = vld [vmem:[#allocation4 + $0x28] sm:$0xff]
    %v1692 = vld [vmem:[#allocation4 + $0x30] sm:$0xff]
    %v1693 = vld [vmem:[#allocation4 + $0x38] sm:$0xff]
    %v1694 = vld [vmem:[#allocation4 + $0x40] sm:$0xff]
    %v1695 = vld [vmem:[#allocation4 + $0x48] sm:$0xff]
    %v1696 = vld [vmem:[#allocation4 + $0x50] sm:$0xff]
    %v1697 = vld [vmem:[#allocation4 + $0x58] sm:$0xff]
    %v1698 = vld [vmem:[#allocation4 + $0x60] sm:$0xff]
    %v1699 = vld [vmem:[#allocation4 + $0x68] sm:$0xff]
    %v1700 = vld [vmem:[#allocation4 + $0x70] sm:$0xff]
    %v1701 = vld [vmem:[#allocation4 + $0x78] sm:$0xff]
    %v1702 = vld [vmem:[#allocation4 + $0x80] sm:$0xff]
    %v1703 = vld [vmem:[#allocation4 + $0x88] sm:$0xff]
    %v1704 = vld [vmem:[#allocation4 + $0x90] sm:$0xff]
    %v1705 = vld [vmem:[#allocation4 + $0x98] sm:$0xff]
    %v1706 = vld [vmem:[#allocation4 + $0xa0] sm:$0xff]
    %v1707 = vld [vmem:[#allocation4 + $0xa8] sm:$0xff]
    %v1708 = vld [vmem:[#allocation4 + $0xb0] sm:$0xff]
    %v1709 = vld [vmem:[#allocation4 + $0xb8] sm:$0xff]
    %v1710 = vld [vmem:[#allocation4 + $0xc0] sm:$0xff]
    %v1711 = vld [vmem:[#allocation4 + $0xc8] sm:$0xff]
    %v1712 = vld [vmem:[#allocation4 + $0xd0] sm:$0xff]
    %v1713 = vld [vmem:[#allocation4 + $0xd8] sm:$0xff]
    %v1714 = vld [vmem:[#allocation4 + $0xe0] sm:$0xff]
    %v1715 = vld [vmem:[#allocation4 + $0xe8] sm:$0xff]
    %v1716 = vld [vmem:[#allocation4 + $0xf0] sm:$0xff]
    %v1717 = vld [vmem:[#allocation4 + $0xf8] sm:$0xff]
    %v1718 = vld [vmem:[#allocation4 + $0x100] sm:$0xff]
    %v1719 = vld [vmem:[#allocation4 + $0x108] sm:$0xff]
    %v1720 = vld [vmem:[#allocation4 + $0x110] sm:$0xff]
    %v1721 = vld [vmem:[#allocation4 + $0x118] sm:$0xff]
    %v1722 = vld [vmem:[#allocation4 + $0x120] sm:$0xff]
    %v1723 = vld [vmem:[#allocation4 + $0x128] sm:$0xff]
    %v1724 = vld [vmem:[#allocation4 + $0x130] sm:$0xff]
    %v1725 = vld [vmem:[#allocation4 + $0x138] sm:$0xff]
    %v1726 = vld [vmem:[#allocation4 + $0x140] sm:$0xff]
    %v1727 = vld [vmem:[#allocation4 + $0x148] sm:$0xff]
    %v1728 = vld [vmem:[#allocation4 + $0x150] sm:$0xff]
    %v1729 = vld [vmem:[#allocation4 + $0x158] sm:$0xff]
    %v1730 = vld [vmem:[#allocation4 + $0x160] sm:$0xff]
    %v1731 = vld [vmem:[#allocation4 + $0x168] sm:$0xff]
    %v1732 = vld [vmem:[#allocation4 + $0x170] sm:$0xff]
    %v1733 = vld [vmem:[#allocation4 + $0x178] sm:$0xff]
    %v1734 = vld [vmem:[#allocation4 + $0x180] sm:$0xff]
    %v1735 = vld [vmem:[#allocation4 + $0x188] sm:$0xff]
    %v1736 = vld [vmem:[#allocation4 + $0x190] sm:$0xff]
    %v1737 = vld [vmem:[#allocation4 + $0x198] sm:$0xff]
    %v1738 = vld [vmem:[#allocation4 + $0x1a0] sm:$0xff]
    %v1739 = vld [vmem:[#allocation4 + $0x1a8] sm:$0xff]
    %v1740 = vld [vmem:[#allocation4 + $0x1b0] sm:$0xff]
    %v1741 = vld [vmem:[#allocation4 + $0x1b8] sm:$0xff]
    %v1742 = vld [vmem:[#allocation4 + $0x1c0] sm:$0xff]
    %v1743 = vld [vmem:[#allocation4 + $0x1c8] sm:$0xff]
    %v1744 = vld [vmem:[#allocation4 + $0x1d0] sm:$0xff]
    %v1745 = vld [vmem:[#allocation4 + $0x1d8] sm:$0xff]
    %v1746 = vld [vmem:[#allocation4 + $0x1e0] sm:$0xff]
    %v1747 = vld [vmem:[#allocation4 + $0x1e8] sm:$0xff]
    %v1748 = vld [vmem:[#allocation4 + $0x1f0] sm:$0xff]
    %v1749 = vld [vmem:[#allocation4 + $0x1f8] sm:$0xff]
    %v1750 = vld [vmem:[#allocation11] sm:$0xff]
    %v1751 = vld [vmem:[#allocation11 + $0x8] sm:$0xff]
    %v1752 = vld [vmem:[#allocation11 + $0x10] sm:$0xff]
    %v1753 = vld [vmem:[#allocation11 + $0x18] sm:$0xff]
    %v1754 = vld [vmem:[#allocation11 + $0x20] sm:$0xff]
    %v1755 = vld [vmem:[#allocation11 + $0x28] sm:$0xff]
    %v1756 = vld [vmem:[#allocation11 + $0x30] sm:$0xff]
    %v1757 = vld [vmem:[#allocation11 + $0x38] sm:$0xff]
    %v1758 = vld [vmem:[#allocation11 + $0x40] sm:$0xff]
    %v1759 = vld [vmem:[#allocation11 + $0x48] sm:$0xff]
    %v1760 = vld [vmem:[#allocation11 + $0x50] sm:$0xff]
    %v1761 = vld [vmem:[#allocation11 + $0x58] sm:$0xff]
    %v1762 = vld [vmem:[#allocation11 + $0x60] sm:$0xff]
    %v1763 = vld [vmem:[#allocation11 + $0x68] sm:$0xff]
    %v1764 = vld [vmem:[#allocation11 + $0x70] sm:$0xff]
    %v1765 = vld [vmem:[#allocation11 + $0x78] sm:$0xff]
    %v1766 = vld [vmem:[#allocation11 + $0x80] sm:$0xff]
    %v1767 = vld [vmem:[#allocation11 + $0x88] sm:$0xff]
    %v1768 = vld [vmem:[#allocation11 + $0x90] sm:$0xff]
    %v1769 = vld [vmem:[#allocation11 + $0x98] sm:$0xff]
    %v1770 = vld [vmem:[#allocation11 + $0xa0] sm:$0xff]
    %v1771 = vld [vmem:[#allocation11 + $0xa8] sm:$0xff]
    %v1772 = vld [vmem:[#allocation11 + $0xb0] sm:$0xff]
    %v1773 = vld [vmem:[#allocation11 + $0xb8] sm:$0xff]
    %v1774 = vld [vmem:[#allocation11 + $0xc0] sm:$0xff]
    %v1775 = vld [vmem:[#allocation11 + $0xc8] sm:$0xff]
    %v1776 = vld [vmem:[#allocation11 + $0xd0] sm:$0xff]
    %v1777 = vld [vmem:[#allocation11 + $0xd8] sm:$0xff]
    %v1778 = vld [vmem:[#allocation11 + $0xe0] sm:$0xff]
    %v1779 = vld [vmem:[#allocation11 + $0xe8] sm:$0xff]
    %v1780 = vld [vmem:[#allocation11 + $0xf0] sm:$0xff]
    %v1781 = vld [vmem:[#allocation11 + $0xf8] sm:$0xff]
    %v1814 = vunpack.c.l.b16 %v1750
    %v1815 = vunpack.c.h.b16 %v1750
    %v1816 = vunpack.c.l.b16 %v1751
    %v1817 = vunpack.c.h.b16 %v1751
    %v1818 = vunpack.c.l.b16 %v1752
    %v1819 = vunpack.c.h.b16 %v1752
    %v1820 = vunpack.c.l.b16 %v1753
    %v1821 = vunpack.c.h.b16 %v1753
    %v1822 = vunpack.c.l.b16 %v1754
    %v1823 = vunpack.c.h.b16 %v1754
    %v1824 = vunpack.c.l.b16 %v1755
    %v1825 = vunpack.c.h.b16 %v1755
    %v1826 = vunpack.c.l.b16 %v1756
    %v1827 = vunpack.c.h.b16 %v1756
    %v1828 = vunpack.c.l.b16 %v1757
    %v1829 = vunpack.c.h.b16 %v1757
    %v1830 = vunpack.c.l.b16 %v1758
    %v1831 = vunpack.c.h.b16 %v1758
    %v1832 = vunpack.c.l.b16 %v1759
    %v1833 = vunpack.c.h.b16 %v1759
    %v1834 = vunpack.c.l.b16 %v1760
    %v1835 = vunpack.c.h.b16 %v1760
    %v1836 = vunpack.c.l.b16 %v1761
    %v1837 = vunpack.c.h.b16 %v1761
    %v1838 = vunpack.c.l.b16 %v1762
    %v1839 = vunpack.c.h.b16 %v1762
    %v1840 = vunpack.c.l.b16 %v1763
    %v1841 = vunpack.c.h.b16 %v1763
    %v1842 = vunpack.c.l.b16 %v1764
    %v1843 = vunpack.c.h.b16 %v1764
    %v1844 = vunpack.c.l.b16 %v1765
    %v1845 = vunpack.c.h.b16 %v1765
    %v1846 = vunpack.c.l.b16 %v1766
    %v1847 = vunpack.c.h.b16 %v1766
    %v1848 = vunpack.c.l.b16 %v1767
    %v1849 = vunpack.c.h.b16 %v1767
    %v1850 = vunpack.c.l.b16 %v1768
    %v1851 = vunpack.c.h.b16 %v1768
    %v1852 = vunpack.c.l.b16 %v1769
    %v1853 = vunpack.c.h.b16 %v1769
    %v1854 = vunpack.c.l.b16 %v1770
    %v1855 = vunpack.c.h.b16 %v1770
    %v1856 = vunpack.c.l.b16 %v1771
    %v1857 = vunpack.c.h.b16 %v1771
    %v1858 = vunpack.c.l.b16 %v1772
    %v1859 = vunpack.c.h.b16 %v1772
    %v1860 = vunpack.c.l.b16 %v1773
    %v1861 = vunpack.c.h.b16 %v1773
    %v1862 = vunpack.c.l.b16 %v1774
    %v1863 = vunpack.c.h.b16 %v1774
    %v1864 = vunpack.c.l.b16 %v1775
    %v1865 = vunpack.c.h.b16 %v1775
    %v1866 = vunpack.c.l.b16 %v1776
    %v1867 = vunpack.c.h.b16 %v1776
    %v1868 = vunpack.c.l.b16 %v1777
    %v1869 = vunpack.c.h.b16 %v1777
    %v1870 = vunpack.c.l.b16 %v1778
    %v1871 = vunpack.c.h.b16 %v1778
    %v1872 = vunpack.c.l.b16 %v1779
    %v1873 = vunpack.c.h.b16 %v1779
    %v1874 = vunpack.c.l.b16 %v1780
    %v1875 = vunpack.c.h.b16 %v1780
    %v1876 = vunpack.c.l.b16 %v1781
    %v1877 = vunpack.c.h.b16 %v1781
    %v1878 = vpack.c.b16 %v1816, %v1814
    %v1879 = vpack.c.b16 %v1817, %v1815
    %v1880 = vpack.c.b16 %v1820, %v1818
    %v1881 = vpack.c.b16 %v1821, %v1819
    %v1882 = vpack.c.b16 %v1824, %v1822
    %v1883 = vpack.c.b16 %v1825, %v1823
    %v1884 = vpack.c.b16 %v1828, %v1826
    %v1885 = vpack.c.b16 %v1829, %v1827
    %v1886 = vpack.c.b16 %v1832, %v1830
    %v1887 = vpack.c.b16 %v1833, %v1831
    %v1888 = vpack.c.b16 %v1836, %v1834
    %v1889 = vpack.c.b16 %v1837, %v1835
    %v1890 = vpack.c.b16 %v1840, %v1838
    %v1891 = vpack.c.b16 %v1841, %v1839
    %v1892 = vpack.c.b16 %v1844, %v1842
    %v1893 = vpack.c.b16 %v1845, %v1843
    %v1894 = vpack.c.b16 %v1848, %v1846
    %v1895 = vpack.c.b16 %v1849, %v1847
    %v1896 = vpack.c.b16 %v1852, %v1850
    %v1897 = vpack.c.b16 %v1853, %v1851
    %v1898 = vpack.c.b16 %v1856, %v1854
    %v1899 = vpack.c.b16 %v1857, %v1855
    %v1900 = vpack.c.b16 %v1860, %v1858
    %v1901 = vpack.c.b16 %v1861, %v1859
    %v1902 = vpack.c.b16 %v1864, %v1862
    %v1903 = vpack.c.b16 %v1865, %v1863
    %v1904 = vpack.c.b16 %v1868, %v1866
    %v1905 = vpack.c.b16 %v1869, %v1867
    %v1906 = vpack.c.b16 %v1872, %v1870
    %v1907 = vpack.c.b16 %v1873, %v1871
    %v1908 = vpack.c.b16 %v1876, %v1874
    %v1909 = vpack.c.b16 %v1877, %v1875
    %1942 = vmatprep.subr.bf16.mxu0 %v1879
    %1943 = vmatpush1.bf16.msra.mxu0 %v1878
    %1944 = vmatprep.subr.bf16.mxu0 %v1881
    %1945 = vmatpush1.bf16.msra.mxu0 %v1880
    %1946 = vmatprep.subr.bf16.mxu0 %v1883
    %1947 = vmatpush1.bf16.msra.mxu0 %v1882
    %1948 = vmatprep.subr.bf16.mxu0 %v1885
    %1949 = vmatpush1.bf16.msra.mxu0 %v1884
    %1950 = vmatprep.subr.bf16.mxu0 %v1887
    %1951 = vmatpush1.bf16.msra.mxu0 %v1886
    %1952 = vmatprep.subr.bf16.mxu0 %v1889
    %1953 = vmatpush1.bf16.msra.mxu0 %v1888
    %1954 = vmatprep.subr.bf16.mxu0 %v1891
    %1955 = vmatpush1.bf16.msra.mxu0 %v1890
    %1956 = vmatprep.subr.bf16.mxu0 %v1893
    %1957 = vmatpush1.bf16.msra.mxu0 %v1892
    %1958 = vmatprep.subr.bf16.mxu0 %v1895
    %1959 = vmatpush1.bf16.msra.mxu0 %v1894
    %1960 = vmatprep.subr.bf16.mxu0 %v1897
    %1961 = vmatpush1.bf16.msra.mxu0 %v1896
    %1962 = vmatprep.subr.bf16.mxu0 %v1899
    %1963 = vmatpush1.bf16.msra.mxu0 %v1898
    %1964 = vmatprep.subr.bf16.mxu0 %v1901
    %1965 = vmatpush1.bf16.msra.mxu0 %v1900
    %1966 = vmatprep.subr.bf16.mxu0 %v1903
    %1967 = vmatpush1.bf16.msra.mxu0 %v1902
    %1968 = vmatprep.subr.bf16.mxu0 %v1905
    %1969 = vmatpush1.bf16.msra.mxu0 %v1904
    %1970 = vmatprep.subr.bf16.mxu0 %v1907
    %1971 = vmatpush1.bf16.msra.mxu0 %v1906
    %1972 = vmatprep.subr.bf16.mxu0 %v1909
    %1973 = vmatpush1.bf16.msra.mxu0 %v1908
    %1974 = vmatprep.mubr.bf16.mxu0 %v565
    %1975 = vmatmul.mubr.bf16.gmra.mrb[0].mxu0 %v564
    %v1976 = vpop.f32.mrb[0].mxu0
    %v1977 = vadd.f32 0.0, %v1976
    %v1978 = vpop.f32.mrb[0].mxu0
    %v1979 = vadd.f32 0.0, %v1978
    %v1980 = vpop.f32.mrb[0].mxu0
    %v1981 = vadd.f32 0.0, %v1980
    %v1982 = vpop.f32.mrb[0].mxu0
    %v1983 = vadd.f32 0.0, %v1982
    %1984 = vmatprep.mubr.bf16.mxu0 %v567
    %1985 = vmatmul.mubr.bf16.gmra.mrb[0].mxu0 %v566
    %v1986 = vpop.f32.mrb[0].mxu0
    %v1987 = vadd.f32 0.0, %v1986
    %v1988 = vpop.f32.mrb[0].mxu0
    %v1989 = vadd.f32 0.0, %v1988
    %v1990 = vpop.f32.mrb[0].mxu0
    %v1991 = vadd.f32 0.0, %v1990
    %v1992 = vpop.f32.mrb[0].mxu0
    %v1993 = vadd.f32 0.0, %v1992
    %1994 = vmatprep.mubr.bf16.mxu0 %v569
    %1995 = vmatmul.mubr.bf16.gmra.mrb[0].mxu0 %v568
    %v1996 = vpop.f32.mrb[0].mxu0
    %v1997 = vadd.f32 0.0, %v1996
    %v1998 = vpop.f32.mrb[0].mxu0
    %v1999 = vadd.f32 0.0, %v1998
    %v2000 = vpop.f32.mrb[0].mxu0
    %v2001 = vadd.f32 0.0, %v2000
    %v2002 = vpop.f32.mrb[0].mxu0
    %v2003 = vadd.f32 0.0, %v2002
    %2004 = vmatprep.mubr.bf16.mxu0 %v571
    %2005 = vmatmul.mubr.bf16.gmra.mrb[0].mxu0 %v570
    %v2006 = vpop.f32.mrb[0].mxu0
    %v2007 = vadd.f32 0.0, %v2006
    %v2008 = vpop.f32.mrb[0].mxu0
    %v2009 = vadd.f32 0.0, %v2008
    %v2010 = vpop.f32.mrb[0].mxu0
    %v2011 = vadd.f32 0.0, %v2010
    %v2012 = vpop.f32.mrb[0].mxu0
    %v2013 = vadd.f32 0.0, %v2012
    %2014 = vmatprep.mubr.bf16.mxu0 %v573
    %2015 = vmatmul.mubr.bf16.gmra.mrb[0].mxu0 %v572
    %v2016 = vpop.f32.mrb[0].mxu0
    %v2017 = vadd.f32 0.0, %v2016
    %v2018 = vpop.f32.mrb[0].mxu0
    %v2019 = vadd.f32 0.0, %v2018
    %v2020 = vpop.f32.mrb[0].mxu0
    %v2021 = vadd.f32 0.0, %v2020
    %v2022 = vpop.f32.mrb[0].mxu0
    %v2023 = vadd.f32 0.0, %v2022
    %2024 = vmatprep.mubr.bf16.mxu0 %v575
    %2025 = vmatmul.mubr.bf16.gmra.mrb[0].mxu0 %v574
    %v2026 = vpop.f32.mrb[0].mxu0
    %v2027 = vadd.f32 0.0, %v2026
    %v2028 = vpop.f32.mrb[0].mxu0
    %v2029 = vadd.f32 0.0, %v2028
    %v2030 = vpop.f32.mrb[0].mxu0
    %v2031 = vadd.f32 0.0, %v2030
    %v2032 = vpop.f32.mrb[0].mxu0
    %v2033 = vadd.f32 0.0, %v2032
    %2034 = vmatprep.mubr.bf16.mxu0 %v577
    %2035 = vmatmul.mubr.bf16.gmra.mrb[0].mxu0 %v576
    %v2036 = vpop.f32.mrb[0].mxu0
    %v2037 = vadd.f32 0.0, %v2036
    %v2038 = vpop.f32.mrb[0].mxu0
    %v2039 = vadd.f32 0.0, %v2038
    %v2040 = vpop.f32.mrb[0].mxu0
    %v2041 = vadd.f32 0.0, %v2040
    %v2042 = vpop.f32.mrb[0].mxu0
    %v2043 = vadd.f32 0.0, %v2042
    %2044 = vmatprep.mubr.bf16.mxu0 %v579
    %2045 = vmatmul.mubr.bf16.gmra.mrb[0].mxu0 %v578
    %v2046 = vpop.f32.mrb[0].mxu0
    %v2047 = vadd.f32 0.0, %v2046
    %v2048 = vpop.f32.mrb[0].mxu0
    %v2049 = vadd.f32 0.0, %v2048
    %v2050 = vpop.f32.mrb[0].mxu0
    %v2051 = vadd.f32 0.0, %v2050
    %v2052 = vpop.f32.mrb[0].mxu0
    %v2053 = vadd.f32 0.0, %v2052
    %2054 = vmatprep.mubr.bf16.mxu0 %v581
    %2055 = vmatmul.mubr.bf16.gmra.mrb[0].mxu0 %v580
    %v2056 = vpop.f32.mrb[0].mxu0
    %v2057 = vadd.f32 0.0, %v2056
    %v2058 = vpop.f32.mrb[0].mxu0
    %v2059 = vadd.f32 0.0, %v2058
    %v2060 = vpop.f32.mrb[0].mxu0
    %v2061 = vadd.f32 0.0, %v2060
    %v2062 = vpop.f32.mrb[0].mxu0
    %v2063 = vadd.f32 0.0, %v2062
    %2064 = vmatprep.mubr.bf16.mxu0 %v583
    %2065 = vmatmul.mubr.bf16.gmra.mrb[0].mxu0 %v582
    %v2066 = vpop.f32.mrb[0].mxu0
    %v2067 = vadd.f32 0.0, %v2066
    %v2068 = vpop.f32.mrb[0].mxu0
    %v2069 = vadd.f32 0.0, %v2068
    %v2070 = vpop.f32.mrb[0].mxu0
    %v2071 = vadd.f32 0.0, %v2070
    %v2072 = vpop.f32.mrb[0].mxu0
    %v2073 = vadd.f32 0.0, %v2072
    %2074 = vmatprep.mubr.bf16.mxu0 %v585
    %2075 = vmatmul.mubr.bf16.gmra.mrb[0].mxu0 %v584
    %v2076 = vpop.f32.mrb[0].mxu0
    %v2077 = vadd.f32 0.0, %v2076
    %v2078 = vpop.f32.mrb[0].mxu0
    %v2079 = vadd.f32 0.0, %v2078
    %v2080 = vpop.f32.mrb[0].mxu0
    %v2081 = vadd.f32 0.0, %v2080
    %v2082 = vpop.f32.mrb[0].mxu0
    %v2083 = vadd.f32 0.0, %v2082
    %2084 = vmatprep.mubr.bf16.mxu0 %v587
    %2085 = vmatmul.mubr.bf16.gmra.mrb[0].mxu0 %v586
    %v2086 = vpop.f32.mrb[0].mxu0
    %v2087 = vadd.f32 0.0, %v2086
    %v2088 = vpop.f32.mrb[0].mxu0
    %v2089 = vadd.f32 0.0, %v2088
    %v2090 = vpop.f32.mrb[0].mxu0
    %v2091 = vadd.f32 0.0, %v2090
    %v2092 = vpop.f32.mrb[0].mxu0
    %v2093 = vadd.f32 0.0, %v2092
    %2094 = vmatprep.mubr.bf16.mxu0 %v589
    %2095 = vmatmul.mubr.bf16.gmra.mrb[0].mxu0 %v588
    %v2096 = vpop.f32.mrb[0].mxu0
    %v2097 = vadd.f32 0.0, %v2096
    %v2098 = vpop.f32.mrb[0].mxu0
    %v2099 = vadd.f32 0.0, %v2098
    %v2100 = vpop.f32.mrb[0].mxu0
    %v2101 = vadd.f32 0.0, %v2100
    %v2102 = vpop.f32.mrb[0].mxu0
    %v2103 = vadd.f32 0.0, %v2102
    %2104 = vmatprep.mubr.bf16.mxu0 %v591
    %2105 = vmatmul.mubr.bf16.gmra.mrb[0].mxu0 %v590
    %v2106 = vpop.f32.mrb[0].mxu0
    %v2107 = vadd.f32 0.0, %v2106
    %v2108 = vpop.f32.mrb[0].mxu0
    %v2109 = vadd.f32 0.0, %v2108
    %v2110 = vpop.f32.mrb[0].mxu0
    %v2111 = vadd.f32 0.0, %v2110
    %v2112 = vpop.f32.mrb[0].mxu0
    %v2113 = vadd.f32 0.0, %v2112
    %2114 = vmatprep.mubr.bf16.mxu0 %v593
    %2115 = vmatmul.mubr.bf16.gmra.mrb[0].mxu0 %v592
    %v2116 = vpop.f32.mrb[0].mxu0
    %v2117 = vadd.f32 0.0, %v2116
    %v2118 = vpop.f32.mrb[0].mxu0
    %v2119 = vadd.f32 0.0, %v2118
    %v2120 = vpop.f32.mrb[0].mxu0
    %v2121 = vadd.f32 0.0, %v2120
    %v2122 = vpop.f32.mrb[0].mxu0
    %v2123 = vadd.f32 0.0, %v2122
    %2124 = vmatprep.mubr.bf16.mxu0 %v595
    %2125 = vmatmul.mubr.bf16.gmra.mrb[0].mxu0 %v594
    %v2126 = vpop.f32.mrb[0].mxu0
    %v2127 = vadd.f32 0.0, %v2126
    %v2128 = vpop.f32.mrb[0].mxu0
    %v2129 = vadd.f32 0.0, %v2128
    %v2130 = vpop.f32.mrb[0].mxu0
    %v2131 = vadd.f32 0.0, %v2130
    %v2132 = vpop.f32.mrb[0].mxu0
    %v2133 = vadd.f32 0.0, %v2132
    %2134 = vdwg.mxu0
    %v2135 = vadd.f32 %v1686, %v1977
    %v2136 = vadd.f32 %v1687, %v1979
    %v2137 = vadd.f32 %v1688, %v1981
    %v2138 = vadd.f32 %v1689, %v1983
    %v2139 = vadd.f32 %v1690, %v1987
    %v2140 = vadd.f32 %v1691, %v1989
    %v2141 = vadd.f32 %v1692, %v1991
    %v2142 = vadd.f32 %v1693, %v1993
    %v2143 = vadd.f32 %v1694, %v1997
    %v2144 = vadd.f32 %v1695, %v1999
    %v2145 = vadd.f32 %v1696, %v2001
    %v2146 = vadd.f32 %v1697, %v2003
    %v2147 = vadd.f32 %v1698, %v2007
    %v2148 = vadd.f32 %v1699, %v2009
    %v2149 = vadd.f32 %v1700, %v2011
    %v2150 = vadd.f32 %v1701, %v2013
    %v2151 = vadd.f32 %v1702, %v2017
    %v2152 = vadd.f32 %v1703, %v2019
    %v2153 = vadd.f32 %v1704, %v2021
    %v2154 = vadd.f32 %v1705, %v2023
    %v2155 = vadd.f32 %v1706, %v2027
    %v2156 = vadd.f32 %v1707, %v2029
    %v2157 = vadd.f32 %v1708, %v2031
    %v2158 = vadd.f32 %v1709, %v2033
    %v2159 = vadd.f32 %v1710, %v2037
    %v2160 = vadd.f32 %v1711, %v2039
    %v2161 = vadd.f32 %v1712, %v2041
    %v2162 = vadd.f32 %v1713, %v2043
    %v2163 = vadd.f32 %v1714, %v2047
    %v2164 = vadd.f32 %v1715, %v2049
    %v2165 = vadd.f32 %v1716, %v2051
    %v2166 = vadd.f32 %v1717, %v2053
    %v2167 = vadd.f32 %v1718, %v2057
    %v2168 = vadd.f32 %v1719, %v2059
    %v2169 = vadd.f32 %v1720, %v2061
    %v2170 = vadd.f32 %v1721, %v2063
    %v2171 = vadd.f32 %v1722, %v2067
    %v2172 = vadd.f32 %v1723, %v2069
    %v2173 = vadd.f32 %v1724, %v2071
    %v2174 = vadd.f32 %v1725, %v2073
    %v2175 = vadd.f32 %v1726, %v2077
    %v2176 = vadd.f32 %v1727, %v2079
    %v2177 = vadd.f32 %v1728, %v2081
    %v2178 = vadd.f32 %v1729, %v2083
    %v2179 = vadd.f32 %v1730, %v2087
    %v2180 = vadd.f32 %v1731, %v2089
    %v2181 = vadd.f32 %v1732, %v2091
    %v2182 = vadd.f32 %v1733, %v2093
    %v2183 = vadd.f32 %v1734, %v2097
    %v2184 = vadd.f32 %v1735, %v2099
    %v2185 = vadd.f32 %v1736, %v2101
    %v2186 = vadd.f32 %v1737, %v2103
    %v2187 = vadd.f32 %v1738, %v2107
    %v2188 = vadd.f32 %v1739, %v2109
    %v2189 = vadd.f32 %v1740, %v2111
    %v2190 = vadd.f32 %v1741, %v2113
    %v2191 = vadd.f32 %v1742, %v2117
    %v2192 = vadd.f32 %v1743, %v2119
    %v2193 = vadd.f32 %v1744, %v2121
    %v2194 = vadd.f32 %v1745, %v2123
    %v2195 = vadd.f32 %v1746, %v2127
    %v2196 = vadd.f32 %v1747, %v2129
    %v2197 = vadd.f32 %v1748, %v2131
    %v2198 = vadd.f32 %v1749, %v2133
    %2199 = vst [vmem:[#allocation4] sm:$0xff] %v2135
    %2200 = vst [vmem:[#allocation4 + $0x8] sm:$0xff] %v2136
    %2201 = vst [vmem:[#allocation4 + $0x10] sm:$0xff] %v2137
    %2202 = vst [vmem:[#allocation4 + $0x18] sm:$0xff] %v2138
    %2203 = vst [vmem:[#allocation4 + $0x20] sm:$0xff] %v2139
    %2204 = vst [vmem:[#allocation4 + $0x28] sm:$0xff] %v2140
    %2205 = vst [vmem:[#allocation4 + $0x30] sm:$0xff] %v2141
    %2206 = vst [vmem:[#allocation4 + $0x38] sm:$0xff] %v2142
    %2207 = vst [vmem:[#allocation4 + $0x40] sm:$0xff] %v2143
    %2208 = vst [vmem:[#allocation4 + $0x48] sm:$0xff] %v2144
    %2209 = vst [vmem:[#allocation4 + $0x50] sm:$0xff] %v2145
    %2210 = vst [vmem:[#allocation4 + $0x58] sm:$0xff] %v2146
    %2211 = vst [vmem:[#allocation4 + $0x60] sm:$0xff] %v2147
    %2212 = vst [vmem:[#allocation4 + $0x68] sm:$0xff] %v2148
    %2213 = vst [vmem:[#allocation4 + $0x70] sm:$0xff] %v2149
    %2214 = vst [vmem:[#allocation4 + $0x78] sm:$0xff] %v2150
    %2215 = vst [vmem:[#allocation4 + $0x80] sm:$0xff] %v2151
    %2216 = vst [vmem:[#allocation4 + $0x88] sm:$0xff] %v2152
    %2217 = vst [vmem:[#allocation4 + $0x90] sm:$0xff] %v2153
    %2218 = vst [vmem:[#allocation4 + $0x98] sm:$0xff] %v2154
    %2219 = vst [vmem:[#allocation4 + $0xa0] sm:$0xff] %v2155
    %2220 = vst [vmem:[#allocation4 + $0xa8] sm:$0xff] %v2156
    %2221 = vst [vmem:[#allocation4 + $0xb0] sm:$0xff] %v2157
    %2222 = vst [vmem:[#allocation4 + $0xb8] sm:$0xff] %v2158
    %2223 = vst [vmem:[#allocation4 + $0xc0] sm:$0xff] %v2159
    %2224 = vst [vmem:[#allocation4 + $0xc8] sm:$0xff] %v2160
    %2225 = vst [vmem:[#allocation4 + $0xd0] sm:$0xff] %v2161
    %2226 = vst [vmem:[#allocation4 + $0xd8] sm:$0xff] %v2162
    %2227 = vst [vmem:[#allocation4 + $0xe0] sm:$0xff] %v2163
    %2228 = vst [vmem:[#allocation4 + $0xe8] sm:$0xff] %v2164
    %2229 = vst [vmem:[#allocation4 + $0xf0] sm:$0xff] %v2165
    %2230 = vst [vmem:[#allocation4 + $0xf8] sm:$0xff] %v2166
    %2231 = vst [vmem:[#allocation4 + $0x100] sm:$0xff] %v2167
    %2232 = vst [vmem:[#allocation4 + $0x108] sm:$0xff] %v2168
    %2233 = vst [vmem:[#allocation4 + $0x110] sm:$0xff] %v2169
    %2234 = vst [vmem:[#allocation4 + $0x118] sm:$0xff] %v2170
    %2235 = vst [vmem:[#allocation4 + $0x120] sm:$0xff] %v2171
    %2236 = vst [vmem:[#allocation4 + $0x128] sm:$0xff] %v2172
    %2237 = vst [vmem:[#allocation4 + $0x130] sm:$0xff] %v2173
    %2238 = vst [vmem:[#allocation4 + $0x138] sm:$0xff] %v2174
    %2239 = vst [vmem:[#allocation4 + $0x140] sm:$0xff] %v2175
    %2240 = vst [vmem:[#allocation4 + $0x148] sm:$0xff] %v2176
    %2241 = vst [vmem:[#allocation4 + $0x150] sm:$0xff] %v2177
    %2242 = vst [vmem:[#allocation4 + $0x158] sm:$0xff] %v2178
    %2243 = vst [vmem:[#allocation4 + $0x160] sm:$0xff] %v2179
    %2244 = vst [vmem:[#allocation4 + $0x168] sm:$0xff] %v2180
    %2245 = vst [vmem:[#allocation4 + $0x170] sm:$0xff] %v2181
    %2246 = vst [vmem:[#allocation4 + $0x178] sm:$0xff] %v2182
    %2247 = vst [vmem:[#allocation4 + $0x180] sm:$0xff] %v2183
    %2248 = vst [vmem:[#allocation4 + $0x188] sm:$0xff] %v2184
    %2249 = vst [vmem:[#allocation4 + $0x190] sm:$0xff] %v2185
    %2250 = vst [vmem:[#allocation4 + $0x198] sm:$0xff] %v2186
    %2251 = vst [vmem:[#allocation4 + $0x1a0] sm:$0xff] %v2187
    %2252 = vst [vmem:[#allocation4 + $0x1a8] sm:$0xff] %v2188
    %2253 = vst [vmem:[#allocation4 + $0x1b0] sm:$0xff] %v2189
    %2254 = vst [vmem:[#allocation4 + $0x1b8] sm:$0xff] %v2190
    %2255 = vst [vmem:[#allocation4 + $0x1c0] sm:$0xff] %v2191
    %2256 = vst [vmem:[#allocation4 + $0x1c8] sm:$0xff] %v2192
    %2257 = vst [vmem:[#allocation4 + $0x1d0] sm:$0xff] %v2193
    %2258 = vst [vmem:[#allocation4 + $0x1d8] sm:$0xff] %v2194
    %2259 = vst [vmem:[#allocation4 + $0x1e0] sm:$0xff] %v2195
    %2260 = vst [vmem:[#allocation4 + $0x1e8] sm:$0xff] %v2196
    %2261 = vst [vmem:[#allocation4 + $0x1f0] sm:$0xff] %v2197
    %2262 = vst [vmem:[#allocation4 + $0x1f8] sm:$0xff] %v2198
    // Predicated region
    $region62: #{tpu_custom_call.1} parent=1 // pred_check
      %p2263 = pneg %p144
    $region63: #{tpu_custom_call.1} parent=1 // pred_check_branch
      %2265 = sbr.rel (%p2263) target = $region65
    $region64: #{tpu_custom_call.1} parent=1 // pred_region
      %v2266 = vld [vmem:[#allocation2] sm:$0xff]
      %v2267 = vld [vmem:[#allocation2 + $0x8] sm:$0xff]
      %v2268 = vld [vmem:[#allocation2 + $0x10] sm:$0xff]
      %v2269 = vld [vmem:[#allocation2 + $0x18] sm:$0xff]
      %v2270 = vld [vmem:[#allocation2 + $0x20] sm:$0xff]
      %v2271 = vld [vmem:[#allocation2 + $0x28] sm:$0xff]
      %v2272 = vld [vmem:[#allocation2 + $0x30] sm:$0xff]
      %v2273 = vld [vmem:[#allocation2 + $0x38] sm:$0xff]
      %v2274 = vld [vmem:[#allocation2 + $0x40] sm:$0xff]
      %v2275 = vld [vmem:[#allocation2 + $0x48] sm:$0xff]
      %v2276 = vld [vmem:[#allocation2 + $0x50] sm:$0xff]
      %v2277 = vld [vmem:[#allocation2 + $0x58] sm:$0xff]
      %v2278 = vld [vmem:[#allocation2 + $0x60] sm:$0xff]
      %v2279 = vld [vmem:[#allocation2 + $0x68] sm:$0xff]
      %v2280 = vld [vmem:[#allocation2 + $0x70] sm:$0xff]
      %v2281 = vld [vmem:[#allocation2 + $0x78] sm:$0xff]
      %v2282 = vld [vmem:[#allocation2 + $0x80] sm:$0xff]
      %v2283 = vld [vmem:[#allocation2 + $0x88] sm:$0xff]
      %v2284 = vld [vmem:[#allocation2 + $0x90] sm:$0xff]
      %v2285 = vld [vmem:[#allocation2 + $0x98] sm:$0xff]
      %v2286 = vld [vmem:[#allocation2 + $0xa0] sm:$0xff]
      %v2287 = vld [vmem:[#allocation2 + $0xa8] sm:$0xff]
      %v2288 = vld [vmem:[#allocation2 + $0xb0] sm:$0xff]
      %v2289 = vld [vmem:[#allocation2 + $0xb8] sm:$0xff]
      %v2290 = vld [vmem:[#allocation2 + $0xc0] sm:$0xff]
      %v2291 = vld [vmem:[#allocation2 + $0xc8] sm:$0xff]
      %v2292 = vld [vmem:[#allocation2 + $0xd0] sm:$0xff]
      %v2293 = vld [vmem:[#allocation2 + $0xd8] sm:$0xff]
      %v2294 = vld [vmem:[#allocation2 + $0xe0] sm:$0xff]
      %v2295 = vld [vmem:[#allocation2 + $0xe8] sm:$0xff]
      %v2296 = vld [vmem:[#allocation2 + $0xf0] sm:$0xff]
      %v2297 = vld [vmem:[#allocation2 + $0xf8] sm:$0xff]
      %v2298 = vld [vmem:[#allocation2 + $0x100] sm:$0xff]
      %v2299 = vld [vmem:[#allocation2 + $0x108] sm:$0xff]
      %v2300 = vld [vmem:[#allocation2 + $0x110] sm:$0xff]
      %v2301 = vld [vmem:[#allocation2 + $0x118] sm:$0xff]
      %v2302 = vld [vmem:[#allocation2 + $0x120] sm:$0xff]
      %v2303 = vld [vmem:[#allocation2 + $0x128] sm:$0xff]
      %v2304 = vld [vmem:[#allocation2 + $0x130] sm:$0xff]
      %v2305 = vld [vmem:[#allocation2 + $0x138] sm:$0xff]
      %v2306 = vld [vmem:[#allocation2 + $0x140] sm:$0xff]
      %v2307 = vld [vmem:[#allocation2 + $0x148] sm:$0xff]
      %v2308 = vld [vmem:[#allocation2 + $0x150] sm:$0xff]
      %v2309 = vld [vmem:[#allocation2 + $0x158] sm:$0xff]
      %v2310 = vld [vmem:[#allocation2 + $0x160] sm:$0xff]
      %v2311 = vld [vmem:[#allocation2 + $0x168] sm:$0xff]
      %v2312 = vld [vmem:[#allocation2 + $0x170] sm:$0xff]
      %v2313 = vld [vmem:[#allocation2 + $0x178] sm:$0xff]
      %v2314 = vld [vmem:[#allocation2 + $0x180] sm:$0xff]
      %v2315 = vld [vmem:[#allocation2 + $0x188] sm:$0xff]
      %v2316 = vld [vmem:[#allocation2 + $0x190] sm:$0xff]
      %v2317 = vld [vmem:[#allocation2 + $0x198] sm:$0xff]
      %v2318 = vld [vmem:[#allocation2 + $0x1a0] sm:$0xff]
      %v2319 = vld [vmem:[#allocation2 + $0x1a8] sm:$0xff]
      %v2320 = vld [vmem:[#allocation2 + $0x1b0] sm:$0xff]
      %v2321 = vld [vmem:[#allocation2 + $0x1b8] sm:$0xff]
      %v2322 = vld [vmem:[#allocation2 + $0x1c0] sm:$0xff]
      %v2323 = vld [vmem:[#allocation2 + $0x1c8] sm:$0xff]
      %v2324 = vld [vmem:[#allocation2 + $0x1d0] sm:$0xff]
      %v2325 = vld [vmem:[#allocation2 + $0x1d8] sm:$0xff]
      %v2326 = vld [vmem:[#allocation2 + $0x1e0] sm:$0xff]
      %v2327 = vld [vmem:[#allocation2 + $0x1e8] sm:$0xff]
      %v2328 = vld [vmem:[#allocation2 + $0x1f0] sm:$0xff]
      %v2329 = vld [vmem:[#allocation2 + $0x1f8] sm:$0xff]
      %v2330 = vld [vmem:[#allocation13] sm:$0x3]
      %v2331 = vunpack.c.l.bf16 %v2330
      %v2333 = vlaneseq
      %v2334 = vshrl.u32 %v2333, 7
      %v2335 = vsub.s32 0, %v2334
      %v2336 = vrot.slane %v2331, %v2335
      %v2337 = vlaneseq
      %v2338 = vshrl.u32 %v2337, 7
      %v2339 = vsub.s32 2, %v2338
      %v2340 = vrot.slane %v2331, %v2339
      %v2343 = vlaneseq
      %v2344 = vshrl.u32 %v2343, 7
      %v2345 = vsub.s32 0, %v2344
      %v2346 = vrot.slane %v2336, %v2345
      %v2347 = vlaneseq
      %v2348 = vshrl.u32 %v2347, 7
      %v2349 = vsub.s32 0, %v2348
      %v2350 = vrot.slane %v2340, %v2349
      %v2351 = vadd.f32 %v2266, %v2346
      %v2352 = vadd.f32 %v2267, %v2350
      %v2353 = vadd.f32 %v2268, %v2346
      %v2354 = vadd.f32 %v2269, %v2350
      %v2355 = vadd.f32 %v2270, %v2346
      %v2356 = vadd.f32 %v2271, %v2350
      %v2357 = vadd.f32 %v2272, %v2346
      %v2358 = vadd.f32 %v2273, %v2350
      %v2359 = vadd.f32 %v2274, %v2346
      %v2360 = vadd.f32 %v2275, %v2350
      %v2361 = vadd.f32 %v2276, %v2346
      %v2362 = vadd.f32 %v2277, %v2350
      %v2363 = vadd.f32 %v2278, %v2346
      %v2364 = vadd.f32 %v2279, %v2350
      %v2365 = vadd.f32 %v2280, %v2346
      %v2366 = vadd.f32 %v2281, %v2350
      %v2367 = vadd.f32 %v2282, %v2346
      %v2368 = vadd.f32 %v2283, %v2350
      %v2369 = vadd.f32 %v2284, %v2346
      %v2370 = vadd.f32 %v2285, %v2350
      %v2371 = vadd.f32 %v2286, %v2346
      %v2372 = vadd.f32 %v2287, %v2350
      %v2373 = vadd.f32 %v2288, %v2346
      %v2374 = vadd.f32 %v2289, %v2350
      %v2375 = vadd.f32 %v2290, %v2346
      %v2376 = vadd.f32 %v2291, %v2350
      %v2377 = vadd.f32 %v2292, %v2346
      %v2378 = vadd.f32 %v2293, %v2350
      %v2379 = vadd.f32 %v2294, %v2346
      %v2380 = vadd.f32 %v2295, %v2350
      %v2381 = vadd.f32 %v2296, %v2346
      %v2382 = vadd.f32 %v2297, %v2350
      %v2383 = vadd.f32 %v2298, %v2346
      %v2384 = vadd.f32 %v2299, %v2350
      %v2385 = vadd.f32 %v2300, %v2346
      %v2386 = vadd.f32 %v2301, %v2350
      %v2387 = vadd.f32 %v2302, %v2346
      %v2388 = vadd.f32 %v2303, %v2350
      %v2389 = vadd.f32 %v2304, %v2346
      %v2390 = vadd.f32 %v2305, %v2350
      %v2391 = vadd.f32 %v2306, %v2346
      %v2392 = vadd.f32 %v2307, %v2350
      %v2393 = vadd.f32 %v2308, %v2346
      %v2394 = vadd.f32 %v2309, %v2350
      %v2395 = vadd.f32 %v2310, %v2346
      %v2396 = vadd.f32 %v2311, %v2350
      %v2397 = vadd.f32 %v2312, %v2346
      %v2398 = vadd.f32 %v2313, %v2350
      %v2399 = vadd.f32 %v2314, %v2346
      %v2400 = vadd.f32 %v2315, %v2350
      %v2401 = vadd.f32 %v2316, %v2346
      %v2402 = vadd.f32 %v2317, %v2350
      %v2403 = vadd.f32 %v2318, %v2346
      %v2404 = vadd.f32 %v2319, %v2350
      %v2405 = vadd.f32 %v2320, %v2346
      %v2406 = vadd.f32 %v2321, %v2350
      %v2407 = vadd.f32 %v2322, %v2346
      %v2408 = vadd.f32 %v2323, %v2350
      %v2409 = vadd.f32 %v2324, %v2346
      %v2410 = vadd.f32 %v2325, %v2350
      %v2411 = vadd.f32 %v2326, %v2346
      %v2412 = vadd.f32 %v2327, %v2350
      %v2413 = vadd.f32 %v2328, %v2346
      %v2414 = vadd.f32 %v2329, %v2350
      %v2415 = vpack.c.bf16 %v2353, %v2351
      %v2416 = vpack.c.bf16 %v2354, %v2352
      %v2417 = vpack.c.bf16 %v2357, %v2355
      %v2418 = vpack.c.bf16 %v2358, %v2356
      %v2419 = vpack.c.bf16 %v2361, %v2359
      %v2420 = vpack.c.bf16 %v2362, %v2360
      %v2421 = vpack.c.bf16 %v2365, %v2363
      %v2422 = vpack.c.bf16 %v2366, %v2364
      %v2423 = vpack.c.bf16 %v2369, %v2367
      %v2424 = vpack.c.bf16 %v2370, %v2368
      %v2425 = vpack.c.bf16 %v2373, %v2371
      %v2426 = vpack.c.bf16 %v2374, %v2372
      %v2427 = vpack.c.bf16 %v2377, %v2375
      %v2428 = vpack.c.bf16 %v2378, %v2376
      %v2429 = vpack.c.bf16 %v2381, %v2379
      %v2430 = vpack.c.bf16 %v2382, %v2380
      %v2431 = vpack.c.bf16 %v2385, %v2383
      %v2432 = vpack.c.bf16 %v2386, %v2384
      %v2433 = vpack.c.bf16 %v2389, %v2387
      %v2434 = vpack.c.bf16 %v2390, %v2388
      %v2435 = vpack.c.bf16 %v2393, %v2391
      %v2436 = vpack.c.bf16 %v2394, %v2392
      %v2437 = vpack.c.bf16 %v2397, %v2395
      %v2438 = vpack.c.bf16 %v2398, %v2396
      %v2439 = vpack.c.bf16 %v2401, %v2399
      %v2440 = vpack.c.bf16 %v2402, %v2400
      %v2441 = vpack.c.bf16 %v2405, %v2403
      %v2442 = vpack.c.bf16 %v2406, %v2404
      %v2443 = vpack.c.bf16 %v2409, %v2407
      %v2444 = vpack.c.bf16 %v2410, %v2408
      %v2445 = vpack.c.bf16 %v2413, %v2411
      %v2446 = vpack.c.bf16 %v2414, %v2412
      %v2479 = vunpack.c.l.b16 %v2415
      %v2480 = vunpack.c.l.b16 %v2416
      %v2481 = vunpack.c.h.b16 %v2415
      %v2482 = vunpack.c.h.b16 %v2416
      %v2483 = vunpack.c.l.b16 %v2417
      %v2484 = vunpack.c.l.b16 %v2418
      %v2485 = vunpack.c.h.b16 %v2417
      %v2486 = vunpack.c.h.b16 %v2418
      %v2487 = vunpack.c.l.b16 %v2419
      %v2488 = vunpack.c.l.b16 %v2420
      %v2489 = vunpack.c.h.b16 %v2419
      %v2490 = vunpack.c.h.b16 %v2420
      %v2491 = vunpack.c.l.b16 %v2421
      %v2492 = vunpack.c.l.b16 %v2422
      %v2493 = vunpack.c.h.b16 %v2421
      %v2494 = vunpack.c.h.b16 %v2422
      %v2495 = vunpack.c.l.b16 %v2423
      %v2496 = vunpack.c.l.b16 %v2424
      %v2497 = vunpack.c.h.b16 %v2423
      %v2498 = vunpack.c.h.b16 %v2424
      %v2499 = vunpack.c.l.b16 %v2425
      %v2500 = vunpack.c.l.b16 %v2426
      %v2501 = vunpack.c.h.b16 %v2425
      %v2502 = vunpack.c.h.b16 %v2426
      %v2503 = vunpack.c.l.b16 %v2427
      %v2504 = vunpack.c.l.b16 %v2428
      %v2505 = vunpack.c.h.b16 %v2427
      %v2506 = vunpack.c.h.b16 %v2428
      %v2507 = vunpack.c.l.b16 %v2429
      %v2508 = vunpack.c.l.b16 %v2430
      %v2509 = vunpack.c.h.b16 %v2429
      %v2510 = vunpack.c.h.b16 %v2430
      %v2511 = vunpack.c.l.b16 %v2431
      %v2512 = vunpack.c.l.b16 %v2432
      %v2513 = vunpack.c.h.b16 %v2431
      %v2514 = vunpack.c.h.b16 %v2432
      %v2515 = vunpack.c.l.b16 %v2433
      %v2516 = vunpack.c.l.b16 %v2434
      %v2517 = vunpack.c.h.b16 %v2433
      %v2518 = vunpack.c.h.b16 %v2434
      %v2519 = vunpack.c.l.b16 %v2435
      %v2520 = vunpack.c.l.b16 %v2436
      %v2521 = vunpack.c.h.b16 %v2435
      %v2522 = vunpack.c.h.b16 %v2436
      %v2523 = vunpack.c.l.b16 %v2437
      %v2524 = vunpack.c.l.b16 %v2438
      %v2525 = vunpack.c.h.b16 %v2437
      %v2526 = vunpack.c.h.b16 %v2438
      %v2527 = vunpack.c.l.b16 %v2439
      %v2528 = vunpack.c.l.b16 %v2440
      %v2529 = vunpack.c.h.b16 %v2439
      %v2530 = vunpack.c.h.b16 %v2440
      %v2531 = vunpack.c.l.b16 %v2441
      %v2532 = vunpack.c.l.b16 %v2442
      %v2533 = vunpack.c.h.b16 %v2441
      %v2534 = vunpack.c.h.b16 %v2442
      %v2535 = vunpack.c.l.b16 %v2443
      %v2536 = vunpack.c.l.b16 %v2444
      %v2537 = vunpack.c.h.b16 %v2443
      %v2538 = vunpack.c.h.b16 %v2444
      %v2539 = vunpack.c.l.b16 %v2445
      %v2540 = vunpack.c.l.b16 %v2446
      %v2541 = vunpack.c.h.b16 %v2445
      %v2542 = vunpack.c.h.b16 %v2446
      %v2543 = vpack.c.b16 %v2480, %v2479
      %v2544 = vpack.c.b16 %v2482, %v2481
      %v2545 = vpack.c.b16 %v2484, %v2483
      %v2546 = vpack.c.b16 %v2486, %v2485
      %v2547 = vpack.c.b16 %v2488, %v2487
      %v2548 = vpack.c.b16 %v2490, %v2489
      %v2549 = vpack.c.b16 %v2492, %v2491
      %v2550 = vpack.c.b16 %v2494, %v2493
      %v2551 = vpack.c.b16 %v2496, %v2495
      %v2552 = vpack.c.b16 %v2498, %v2497
      %v2553 = vpack.c.b16 %v2500, %v2499
      %v2554 = vpack.c.b16 %v2502, %v2501
      %v2555 = vpack.c.b16 %v2504, %v2503
      %v2556 = vpack.c.b16 %v2506, %v2505
      %v2557 = vpack.c.b16 %v2508, %v2507
      %v2558 = vpack.c.b16 %v2510, %v2509
      %v2559 = vpack.c.b16 %v2512, %v2511
      %v2560 = vpack.c.b16 %v2514, %v2513
      %v2561 = vpack.c.b16 %v2516, %v2515
      %v2562 = vpack.c.b16 %v2518, %v2517
      %v2563 = vpack.c.b16 %v2520, %v2519
      %v2564 = vpack.c.b16 %v2522, %v2521
      %v2565 = vpack.c.b16 %v2524, %v2523
      %v2566 = vpack.c.b16 %v2526, %v2525
      %v2567 = vpack.c.b16 %v2528, %v2527
      %v2568 = vpack.c.b16 %v2530, %v2529
      %v2569 = vpack.c.b16 %v2532, %v2531
      %v2570 = vpack.c.b16 %v2534, %v2533
      %v2571 = vpack.c.b16 %v2536, %v2535
      %v2572 = vpack.c.b16 %v2538, %v2537
      %v2573 = vpack.c.b16 %v2540, %v2539
      %v2574 = vpack.c.b16 %v2542, %v2541
      %2607 = vst [vmem:[#allocation17] sm:$0xff] %v2543
      %2608 = vst [vmem:[#allocation17 + $0x8] sm:$0xff] %v2544
      %2609 = vst [vmem:[#allocation17 + $0x10] sm:$0xff] %v2545
      %2610 = vst [vmem:[#allocation17 + $0x18] sm:$0xff] %v2546
      %2611 = vst [vmem:[#allocation17 + $0x20] sm:$0xff] %v2547
      %2612 = vst [vmem:[#allocation17 + $0x28] sm:$0xff] %v2548
      %2613 = vst [vmem:[#allocation17 + $0x30] sm:$0xff] %v2549
      %2614 = vst [vmem:[#allocation17 + $0x38] sm:$0xff] %v2550
      %2615 = vst [vmem:[#allocation17 + $0x40] sm:$0xff] %v2551
      %2616 = vst [vmem:[#allocation17 + $0x48] sm:$0xff] %v2552
      %2617 = vst [vmem:[#allocation17 + $0x50] sm:$0xff] %v2553
      %2618 = vst [vmem:[#allocation17 + $0x58] sm:$0xff] %v2554
      %2619 = vst [vmem:[#allocation17 + $0x60] sm:$0xff] %v2555
      %2620 = vst [vmem:[#allocation17 + $0x68] sm:$0xff] %v2556
      %2621 = vst [vmem:[#allocation17 + $0x70] sm:$0xff] %v2557
      %2622 = vst [vmem:[#allocation17 + $0x78] sm:$0xff] %v2558
      %2623 = vst [vmem:[#allocation17 + $0x80] sm:$0xff] %v2559
      %2624 = vst [vmem:[#allocation17 + $0x88] sm:$0xff] %v2560
      %2625 = vst [vmem:[#allocation17 + $0x90] sm:$0xff] %v2561
      %2626 = vst [vmem:[#allocation17 + $0x98] sm:$0xff] %v2562
      %2627 = vst [vmem:[#allocation17 + $0xa0] sm:$0xff] %v2563
      %2628 = vst [vmem:[#allocation17 + $0xa8] sm:$0xff] %v2564
      %2629 = vst [vmem:[#allocation17 + $0xb0] sm:$0xff] %v2565
      %2630 = vst [vmem:[#allocation17 + $0xb8] sm:$0xff] %v2566
      %2631 = vst [vmem:[#allocation17 + $0xc0] sm:$0xff] %v2567
      %2632 = vst [vmem:[#allocation17 + $0xc8] sm:$0xff] %v2568
      %2633 = vst [vmem:[#allocation17 + $0xd0] sm:$0xff] %v2569
      %2634 = vst [vmem:[#allocation17 + $0xd8] sm:$0xff] %v2570
      %2635 = vst [vmem:[#allocation17 + $0xe0] sm:$0xff] %v2571
      %2636 = vst [vmem:[#allocation17 + $0xe8] sm:$0xff] %v2572
      %2637 = vst [vmem:[#allocation17 + $0xf0] sm:$0xff] %v2573
      %2638 = vst [vmem:[#allocation17 + $0xf8] sm:$0xff] %v2574
      %v2639 = vld [vmem:[#allocation3] sm:$0xff]
      %v2640 = vld [vmem:[#allocation3 + $0x8] sm:$0xff]
      %v2641 = vld [vmem:[#allocation3 + $0x10] sm:$0xff]
      %v2642 = vld [vmem:[#allocation3 + $0x18] sm:$0xff]
      %v2643 = vld [vmem:[#allocation3 + $0x20] sm:$0xff]
      %v2644 = vld [vmem:[#allocation3 + $0x28] sm:$0xff]
      %v2645 = vld [vmem:[#allocation3 + $0x30] sm:$0xff]
      %v2646 = vld [vmem:[#allocation3 + $0x38] sm:$0xff]
      %v2647 = vld [vmem:[#allocation3 + $0x40] sm:$0xff]
      %v2648 = vld [vmem:[#allocation3 + $0x48] sm:$0xff]
      %v2649 = vld [vmem:[#allocation3 + $0x50] sm:$0xff]
      %v2650 = vld [vmem:[#allocation3 + $0x58] sm:$0xff]
      %v2651 = vld [vmem:[#allocation3 + $0x60] sm:$0xff]
      %v2652 = vld [vmem:[#allocation3 + $0x68] sm:$0xff]
      %v2653 = vld [vmem:[#allocation3 + $0x70] sm:$0xff]
      %v2654 = vld [vmem:[#allocation3 + $0x78] sm:$0xff]
      %v2655 = vld [vmem:[#allocation3 + $0x80] sm:$0xff]
      %v2656 = vld [vmem:[#allocation3 + $0x88] sm:$0xff]
      %v2657 = vld [vmem:[#allocation3 + $0x90] sm:$0xff]
      %v2658 = vld [vmem:[#allocation3 + $0x98] sm:$0xff]
      %v2659 = vld [vmem:[#allocation3 + $0xa0] sm:$0xff]
      %v2660 = vld [vmem:[#allocation3 + $0xa8] sm:$0xff]
      %v2661 = vld [vmem:[#allocation3 + $0xb0] sm:$0xff]
      %v2662 = vld [vmem:[#allocation3 + $0xb8] sm:$0xff]
      %v2663 = vld [vmem:[#allocation3 + $0xc0] sm:$0xff]
      %v2664 = vld [vmem:[#allocation3 + $0xc8] sm:$0xff]
      %v2665 = vld [vmem:[#allocation3 + $0xd0] sm:$0xff]
      %v2666 = vld [vmem:[#allocation3 + $0xd8] sm:$0xff]
      %v2667 = vld [vmem:[#allocation3 + $0xe0] sm:$0xff]
      %v2668 = vld [vmem:[#allocation3 + $0xe8] sm:$0xff]
      %v2669 = vld [vmem:[#allocation3 + $0xf0] sm:$0xff]
      %v2670 = vld [vmem:[#allocation3 + $0xf8] sm:$0xff]
      %v2671 = vld [vmem:[#allocation3 + $0x100] sm:$0xff]
      %v2672 = vld [vmem:[#allocation3 + $0x108] sm:$0xff]
      %v2673 = vld [vmem:[#allocation3 + $0x110] sm:$0xff]
      %v2674 = vld [vmem:[#allocation3 + $0x118] sm:$0xff]
      %v2675 = vld [vmem:[#allocation3 + $0x120] sm:$0xff]
      %v2676 = vld [vmem:[#allocation3 + $0x128] sm:$0xff]
      %v2677 = vld [vmem:[#allocation3 + $0x130] sm:$0xff]
      %v2678 = vld [vmem:[#allocation3 + $0x138] sm:$0xff]
      %v2679 = vld [vmem:[#allocation3 + $0x140] sm:$0xff]
      %v2680 = vld [vmem:[#allocation3 + $0x148] sm:$0xff]
      %v2681 = vld [vmem:[#allocation3 + $0x150] sm:$0xff]
      %v2682 = vld [vmem:[#allocation3 + $0x158] sm:$0xff]
      %v2683 = vld [vmem:[#allocation3 + $0x160] sm:$0xff]
      %v2684 = vld [vmem:[#allocation3 + $0x168] sm:$0xff]
      %v2685 = vld [vmem:[#allocation3 + $0x170] sm:$0xff]
      %v2686 = vld [vmem:[#allocation3 + $0x178] sm:$0xff]
      %v2687 = vld [vmem:[#allocation3 + $0x180] sm:$0xff]
      %v2688 = vld [vmem:[#allocation3 + $0x188] sm:$0xff]
      %v2689 = vld [vmem:[#allocation3 + $0x190] sm:$0xff]
      %v2690 = vld [vmem:[#allocation3 + $0x198] sm:$0xff]
      %v2691 = vld [vmem:[#allocation3 + $0x1a0] sm:$0xff]
      %v2692 = vld [vmem:[#allocation3 + $0x1a8] sm:$0xff]
      %v2693 = vld [vmem:[#allocation3 + $0x1b0] sm:$0xff]
      %v2694 = vld [vmem:[#allocation3 + $0x1b8] sm:$0xff]
      %v2695 = vld [vmem:[#allocation3 + $0x1c0] sm:$0xff]
      %v2696 = vld [vmem:[#allocation3 + $0x1c8] sm:$0xff]
      %v2697 = vld [vmem:[#allocation3 + $0x1d0] sm:$0xff]
      %v2698 = vld [vmem:[#allocation3 + $0x1d8] sm:$0xff]
      %v2699 = vld [vmem:[#allocation3 + $0x1e0] sm:$0xff]
      %v2700 = vld [vmem:[#allocation3 + $0x1e8] sm:$0xff]
      %v2701 = vld [vmem:[#allocation3 + $0x1f0] sm:$0xff]
      %v2702 = vld [vmem:[#allocation3 + $0x1f8] sm:$0xff]
      %v2703 = vld [vmem:[#allocation14] sm:$0x3]
      %v2704 = vunpack.c.l.bf16 %v2703
      %v2706 = vlaneseq
      %v2707 = vshrl.u32 %v2706, 7
      %v2708 = vsub.s32 0, %v2707
      %v2709 = vrot.slane %v2704, %v2708
      %v2710 = vlaneseq
      %v2711 = vshrl.u32 %v2710, 7
      %v2712 = vsub.s32 2, %v2711
      %v2713 = vrot.slane %v2704, %v2712
      %v2716 = vlaneseq
      %v2717 = vshrl.u32 %v2716, 7
      %v2718 = vsub.s32 0, %v2717
      %v2719 = vrot.slane %v2709, %v2718
      %v2720 = vlaneseq
      %v2721 = vshrl.u32 %v2720, 7
      %v2722 = vsub.s32 0, %v2721
      %v2723 = vrot.slane %v2713, %v2722
      %v2724 = vadd.f32 %v2639, %v2719
      %v2725 = vadd.f32 %v2640, %v2723
      %v2726 = vadd.f32 %v2641, %v2719
      %v2727 = vadd.f32 %v2642, %v2723
      %v2728 = vadd.f32 %v2643, %v2719
      %v2729 = vadd.f32 %v2644, %v2723
      %v2730 = vadd.f32 %v2645, %v2719
      %v2731 = vadd.f32 %v2646, %v2723
      %v2732 = vadd.f32 %v2647, %v2719
      %v2733 = vadd.f32 %v2648, %v2723
      %v2734 = vadd.f32 %v2649, %v2719
      %v2735 = vadd.f32 %v2650, %v2723
      %v2736 = vadd.f32 %v2651, %v2719
      %v2737 = vadd.f32 %v2652, %v2723
      %v2738 = vadd.f32 %v2653, %v2719
      %v2739 = vadd.f32 %v2654, %v2723
      %v2740 = vadd.f32 %v2655, %v2719
      %v2741 = vadd.f32 %v2656, %v2723
      %v2742 = vadd.f32 %v2657, %v2719
      %v2743 = vadd.f32 %v2658, %v2723
      %v2744 = vadd.f32 %v2659, %v2719
      %v2745 = vadd.f32 %v2660, %v2723
      %v2746 = vadd.f32 %v2661, %v2719
      %v2747 = vadd.f32 %v2662, %v2723
      %v2748 = vadd.f32 %v2663, %v2719
      %v2749 = vadd.f32 %v2664, %v2723
      %v2750 = vadd.f32 %v2665, %v2719
      %v2751 = vadd.f32 %v2666, %v2723
      %v2752 = vadd.f32 %v2667, %v2719
      %v2753 = vadd.f32 %v2668, %v2723
      %v2754 = vadd.f32 %v2669, %v2719
      %v2755 = vadd.f32 %v2670, %v2723
      %v2756 = vadd.f32 %v2671, %v2719
      %v2757 = vadd.f32 %v2672, %v2723
      %v2758 = vadd.f32 %v2673, %v2719
      %v2759 = vadd.f32 %v2674, %v2723
      %v2760 = vadd.f32 %v2675, %v2719
      %v2761 = vadd.f32 %v2676, %v2723
      %v2762 = vadd.f32 %v2677, %v2719
      %v2763 = vadd.f32 %v2678, %v2723
      %v2764 = vadd.f32 %v2679, %v2719
      %v2765 = vadd.f32 %v2680, %v2723
      %v2766 = vadd.f32 %v2681, %v2719
      %v2767 = vadd.f32 %v2682, %v2723
      %v2768 = vadd.f32 %v2683, %v2719
      %v2769 = vadd.f32 %v2684, %v2723
      %v2770 = vadd.f32 %v2685, %v2719
      %v2771 = vadd.f32 %v2686, %v2723
      %v2772 = vadd.f32 %v2687, %v2719
      %v2773 = vadd.f32 %v2688, %v2723
      %v2774 = vadd.f32 %v2689, %v2719
      %v2775 = vadd.f32 %v2690, %v2723
      %v2776 = vadd.f32 %v2691, %v2719
      %v2777 = vadd.f32 %v2692, %v2723
      %v2778 = vadd.f32 %v2693, %v2719
      %v2779 = vadd.f32 %v2694, %v2723
      %v2780 = vadd.f32 %v2695, %v2719
      %v2781 = vadd.f32 %v2696, %v2723
      %v2782 = vadd.f32 %v2697, %v2719
      %v2783 = vadd.f32 %v2698, %v2723
      %v2784 = vadd.f32 %v2699, %v2719
      %v2785 = vadd.f32 %v2700, %v2723
      %v2786 = vadd.f32 %v2701, %v2719
      %v2787 = vadd.f32 %v2702, %v2723
      %v2788 = vpack.c.bf16 %v2726, %v2724
      %v2789 = vpack.c.bf16 %v2727, %v2725
      %v2790 = vpack.c.bf16 %v2730, %v2728
      %v2791 = vpack.c.bf16 %v2731, %v2729
      %v2792 = vpack.c.bf16 %v2734, %v2732
      %v2793 = vpack.c.bf16 %v2735, %v2733
      %v2794 = vpack.c.bf16 %v2738, %v2736
      %v2795 = vpack.c.bf16 %v2739, %v2737
      %v2796 = vpack.c.bf16 %v2742, %v2740
      %v2797 = vpack.c.bf16 %v2743, %v2741
      %v2798 = vpack.c.bf16 %v2746, %v2744
      %v2799 = vpack.c.bf16 %v2747, %v2745
      %v2800 = vpack.c.bf16 %v2750, %v2748
      %v2801 = vpack.c.bf16 %v2751, %v2749
      %v2802 = vpack.c.bf16 %v2754, %v2752
      %v2803 = vpack.c.bf16 %v2755, %v2753
      %v2804 = vpack.c.bf16 %v2758, %v2756
      %v2805 = vpack.c.bf16 %v2759, %v2757
      %v2806 = vpack.c.bf16 %v2762, %v2760
      %v2807 = vpack.c.bf16 %v2763, %v2761
      %v2808 = vpack.c.bf16 %v2766, %v2764
      %v2809 = vpack.c.bf16 %v2767, %v2765
      %v2810 = vpack.c.bf16 %v2770, %v2768
      %v2811 = vpack.c.bf16 %v2771, %v2769
      %v2812 = vpack.c.bf16 %v2774, %v2772
      %v2813 = vpack.c.bf16 %v2775, %v2773
      %v2814 = vpack.c.bf16 %v2778, %v2776
      %v2815 = vpack.c.bf16 %v2779, %v2777
      %v2816 = vpack.c.bf16 %v2782, %v2780
      %v2817 = vpack.c.bf16 %v2783, %v2781
      %v2818 = vpack.c.bf16 %v2786, %v2784
      %v2819 = vpack.c.bf16 %v2787, %v2785
      %v2852 = vunpack.c.l.b16 %v2788
      %v2853 = vunpack.c.l.b16 %v2789
      %v2854 = vunpack.c.h.b16 %v2788
      %v2855 = vunpack.c.h.b16 %v2789
      %v2856 = vunpack.c.l.b16 %v2790
      %v2857 = vunpack.c.l.b16 %v2791
      %v2858 = vunpack.c.h.b16 %v2790
      %v2859 = vunpack.c.h.b16 %v2791
      %v2860 = vunpack.c.l.b16 %v2792
      %v2861 = vunpack.c.l.b16 %v2793
      %v2862 = vunpack.c.h.b16 %v2792
      %v2863 = vunpack.c.h.b16 %v2793
      %v2864 = vunpack.c.l.b16 %v2794
      %v2865 = vunpack.c.l.b16 %v2795
      %v2866 = vunpack.c.h.b16 %v2794
      %v2867 = vunpack.c.h.b16 %v2795
      %v2868 = vunpack.c.l.b16 %v2796
      %v2869 = vunpack.c.l.b16 %v2797
      %v2870 = vunpack.c.h.b16 %v2796
      %v2871 = vunpack.c.h.b16 %v2797
      %v2872 = vunpack.c.l.b16 %v2798
      %v2873 = vunpack.c.l.b16 %v2799
      %v2874 = vunpack.c.h.b16 %v2798
      %v2875 = vunpack.c.h.b16 %v2799
      %v2876 = vunpack.c.l.b16 %v2800
      %v2877 = vunpack.c.l.b16 %v2801
      %v2878 = vunpack.c.h.b16 %v2800
      %v2879 = vunpack.c.h.b16 %v2801
      %v2880 = vunpack.c.l.b16 %v2802
      %v2881 = vunpack.c.l.b16 %v2803
      %v2882 = vunpack.c.h.b16 %v2802
      %v2883 = vunpack.c.h.b16 %v2803
      %v2884 = vunpack.c.l.b16 %v2804
      %v2885 = vunpack.c.l.b16 %v2805
      %v2886 = vunpack.c.h.b16 %v2804
      %v2887 = vunpack.c.h.b16 %v2805
      %v2888 = vunpack.c.l.b16 %v2806
      %v2889 = vunpack.c.l.b16 %v2807
      %v2890 = vunpack.c.h.b16 %v2806
      %v2891 = vunpack.c.h.b16 %v2807
      %v2892 = vunpack.c.l.b16 %v2808
      %v2893 = vunpack.c.l.b16 %v2809
      %v2894 = vunpack.c.h.b16 %v2808
      %v2895 = vunpack.c.h.b16 %v2809
      %v2896 = vunpack.c.l.b16 %v2810
      %v2897 = vunpack.c.l.b16 %v2811
      %v2898 = vunpack.c.h.b16 %v2810
      %v2899 = vunpack.c.h.b16 %v2811
      %v2900 = vunpack.c.l.b16 %v2812
      %v2901 = vunpack.c.l.b16 %v2813
      %v2902 = vunpack.c.h.b16 %v2812
      %v2903 = vunpack.c.h.b16 %v2813
      %v2904 = vunpack.c.l.b16 %v2814
      %v2905 = vunpack.c.l.b16 %v2815
      %v2906 = vunpack.c.h.b16 %v2814
      %v2907 = vunpack.c.h.b16 %v2815
      %v2908 = vunpack.c.l.b16 %v2816
      %v2909 = vunpack.c.l.b16 %v2817
      %v2910 = vunpack.c.h.b16 %v2816
      %v2911 = vunpack.c.h.b16 %v2817
      %v2912 = vunpack.c.l.b16 %v2818
      %v2913 = vunpack.c.l.b16 %v2819
      %v2914 = vunpack.c.h.b16 %v2818
      %v2915 = vunpack.c.h.b16 %v2819
      %v2916 = vpack.c.b16 %v2853, %v2852
      %v2917 = vpack.c.b16 %v2855, %v2854
      %v2918 = vpack.c.b16 %v2857, %v2856
      %v2919 = vpack.c.b16 %v2859, %v2858
      %v2920 = vpack.c.b16 %v2861, %v2860
      %v2921 = vpack.c.b16 %v2863, %v2862
      %v2922 = vpack.c.b16 %v2865, %v2864
      %v2923 = vpack.c.b16 %v2867, %v2866
      %v2924 = vpack.c.b16 %v2869, %v2868
      %v2925 = vpack.c.b16 %v2871, %v2870
      %v2926 = vpack.c.b16 %v2873, %v2872
      %v2927 = vpack.c.b16 %v2875, %v2874
      %v2928 = vpack.c.b16 %v2877, %v2876
      %v2929 = vpack.c.b16 %v2879, %v2878
      %v2930 = vpack.c.b16 %v2881, %v2880
      %v2931 = vpack.c.b16 %v2883, %v2882
      %v2932 = vpack.c.b16 %v2885, %v2884
      %v2933 = vpack.c.b16 %v2887, %v2886
      %v2934 = vpack.c.b16 %v2889, %v2888
      %v2935 = vpack.c.b16 %v2891, %v2890
      %v2936 = vpack.c.b16 %v2893, %v2892
      %v2937 = vpack.c.b16 %v2895, %v2894
      %v2938 = vpack.c.b16 %v2897, %v2896
      %v2939 = vpack.c.b16 %v2899, %v2898
      %v2940 = vpack.c.b16 %v2901, %v2900
      %v2941 = vpack.c.b16 %v2903, %v2902
      %v2942 = vpack.c.b16 %v2905, %v2904
      %v2943 = vpack.c.b16 %v2907, %v2906
      %v2944 = vpack.c.b16 %v2909, %v2908
      %v2945 = vpack.c.b16 %v2911, %v2910
      %v2946 = vpack.c.b16 %v2913, %v2912
      %v2947 = vpack.c.b16 %v2915, %v2914
      %2980 = vst [vmem:[#allocation18] sm:$0xff] %v2916
      %2981 = vst [vmem:[#allocation18 + $0x8] sm:$0xff] %v2917
      %2982 = vst [vmem:[#allocation18 + $0x10] sm:$0xff] %v2918
      %2983 = vst [vmem:[#allocation18 + $0x18] sm:$0xff] %v2919
      %2984 = vst [vmem:[#allocation18 + $0x20] sm:$0xff] %v2920
      %2985 = vst [vmem:[#allocation18 + $0x28] sm:$0xff] %v2921
      %2986 = vst [vmem:[#allocation18 + $0x30] sm:$0xff] %v2922
      %2987 = vst [vmem:[#allocation18 + $0x38] sm:$0xff] %v2923
      %2988 = vst [vmem:[#allocation18 + $0x40] sm:$0xff] %v2924
      %2989 = vst [vmem:[#allocation18 + $0x48] sm:$0xff] %v2925
      %2990 = vst [vmem:[#allocation18 + $0x50] sm:$0xff] %v2926
      %2991 = vst [vmem:[#allocation18 + $0x58] sm:$0xff] %v2927
      %2992 = vst [vmem:[#allocation18 + $0x60] sm:$0xff] %v2928
      %2993 = vst [vmem:[#allocation18 + $0x68] sm:$0xff] %v2929
      %2994 = vst [vmem:[#allocation18 + $0x70] sm:$0xff] %v2930
      %2995 = vst [vmem:[#allocation18 + $0x78] sm:$0xff] %v2931
      %2996 = vst [vmem:[#allocation18 + $0x80] sm:$0xff] %v2932
      %2997 = vst [vmem:[#allocation18 + $0x88] sm:$0xff] %v2933
      %2998 = vst [vmem:[#allocation18 + $0x90] sm:$0xff] %v2934
      %2999 = vst [vmem:[#allocation18 + $0x98] sm:$0xff] %v2935
      %3000 = vst [vmem:[#allocation18 + $0xa0] sm:$0xff] %v2936
      %3001 = vst [vmem:[#allocation18 + $0xa8] sm:$0xff] %v2937
      %3002 = vst [vmem:[#allocation18 + $0xb0] sm:$0xff] %v2938
      %3003 = vst [vmem:[#allocation18 + $0xb8] sm:$0xff] %v2939
      %3004 = vst [vmem:[#allocation18 + $0xc0] sm:$0xff] %v2940
      %3005 = vst [vmem:[#allocation18 + $0xc8] sm:$0xff] %v2941
      %3006 = vst [vmem:[#allocation18 + $0xd0] sm:$0xff] %v2942
      %3007 = vst [vmem:[#allocation18 + $0xd8] sm:$0xff] %v2943
      %3008 = vst [vmem:[#allocation18 + $0xe0] sm:$0xff] %v2944
      %3009 = vst [vmem:[#allocation18 + $0xe8] sm:$0xff] %v2945
      %3010 = vst [vmem:[#allocation18 + $0xf0] sm:$0xff] %v2946
      %3011 = vst [vmem:[#allocation18 + $0xf8] sm:$0xff] %v2947
      %v3012 = vld [vmem:[#allocation4] sm:$0xff]
      %v3013 = vld [vmem:[#allocation4 + $0x8] sm:$0xff]
      %v3014 = vld [vmem:[#allocation4 + $0x10] sm:$0xff]
      %v3015 = vld [vmem:[#allocation4 + $0x18] sm:$0xff]
      %v3016 = vld [vmem:[#allocation4 + $0x20] sm:$0xff]
      %v3017 = vld [vmem:[#allocation4 + $0x28] sm:$0xff]
      %v3018 = vld [vmem:[#allocation4 + $0x30] sm:$0xff]
      %v3019 = vld [vmem:[#allocation4 + $0x38] sm:$0xff]
      %v3020 = vld [vmem:[#allocation4 + $0x40] sm:$0xff]
      %v3021 = vld [vmem:[#allocation4 + $0x48] sm:$0xff]
      %v3022 = vld [vmem:[#allocation4 + $0x50] sm:$0xff]
      %v3023 = vld [vmem:[#allocation4 + $0x58] sm:$0xff]
      %v3024 = vld [vmem:[#allocation4 + $0x60] sm:$0xff]
      %v3025 = vld [vmem:[#allocation4 + $0x68] sm:$0xff]
      %v3026 = vld [vmem:[#allocation4 + $0x70] sm:$0xff]
      %v3027 = vld [vmem:[#allocation4 + $0x78] sm:$0xff]
      %v3028 = vld [vmem:[#allocation4 + $0x80] sm:$0xff]
      %v3029 = vld [vmem:[#allocation4 + $0x88] sm:$0xff]
      %v3030 = vld [vmem:[#allocation4 + $0x90] sm:$0xff]
      %v3031 = vld [vmem:[#allocation4 + $0x98] sm:$0xff]
      %v3032 = vld [vmem:[#allocation4 + $0xa0] sm:$0xff]
      %v3033 = vld [vmem:[#allocation4 + $0xa8] sm:$0xff]
      %v3034 = vld [vmem:[#allocation4 + $0xb0] sm:$0xff]
      %v3035 = vld [vmem:[#allocation4 + $0xb8] sm:$0xff]
      %v3036 = vld [vmem:[#allocation4 + $0xc0] sm:$0xff]
      %v3037 = vld [vmem:[#allocation4 + $0xc8] sm:$0xff]
      %v3038 = vld [vmem:[#allocation4 + $0xd0] sm:$0xff]
      %v3039 = vld [vmem:[#allocation4 + $0xd8] sm:$0xff]
      %v3040 = vld [vmem:[#allocation4 + $0xe0] sm:$0xff]
      %v3041 = vld [vmem:[#allocation4 + $0xe8] sm:$0xff]
      %v3042 = vld [vmem:[#allocation4 + $0xf0] sm:$0xff]
      %v3043 = vld [vmem:[#allocation4 + $0xf8] sm:$0xff]
      %v3044 = vld [vmem:[#allocation4 + $0x100] sm:$0xff]
      %v3045 = vld [vmem:[#allocation4 + $0x108] sm:$0xff]
      %v3046 = vld [vmem:[#allocation4 + $0x110] sm:$0xff]
      %v3047 = vld [vmem:[#allocation4 + $0x118] sm:$0xff]
      %v3048 = vld [vmem:[#allocation4 + $0x120] sm:$0xff]
      %v3049 = vld [vmem:[#allocation4 + $0x128] sm:$0xff]
      %v3050 = vld [vmem:[#allocation4 + $0x130] sm:$0xff]
      %v3051 = vld [vmem:[#allocation4 + $0x138] sm:$0xff]
      %v3052 = vld [vmem:[#allocation4 + $0x140] sm:$0xff]
      %v3053 = vld [vmem:[#allocation4 + $0x148] sm:$0xff]
      %v3054 = vld [vmem:[#allocation4 + $0x150] sm:$0xff]
      %v3055 = vld [vmem:[#allocation4 + $0x158] sm:$0xff]
      %v3056 = vld [vmem:[#allocation4 + $0x160] sm:$0xff]
      %v3057 = vld [vmem:[#allocation4 + $0x168] sm:$0xff]
      %v3058 = vld [vmem:[#allocation4 + $0x170] sm:$0xff]
      %v3059 = vld [vmem:[#allocation4 + $0x178] sm:$0xff]
      %v3060 = vld [vmem:[#allocation4 + $0x180] sm:$0xff]
      %v3061 = vld [vmem:[#allocation4 + $0x188] sm:$0xff]
      %v3062 = vld [vmem:[#allocation4 + $0x190] sm:$0xff]
      %v3063 = vld [vmem:[#allocation4 + $0x198] sm:$0xff]
      %v3064 = vld [vmem:[#allocation4 + $0x1a0] sm:$0xff]
      %v3065 = vld [vmem:[#allocation4 + $0x1a8] sm:$0xff]
      %v3066 = vld [vmem:[#allocation4 + $0x1b0] sm:$0xff]
      %v3067 = vld [vmem:[#allocation4 + $0x1b8] sm:$0xff]
      %v3068 = vld [vmem:[#allocation4 + $0x1c0] sm:$0xff]
      %v3069 = vld [vmem:[#allocation4 + $0x1c8] sm:$0xff]
      %v3070 = vld [vmem:[#allocation4 + $0x1d0] sm:$0xff]
      %v3071 = vld [vmem:[#allocation4 + $0x1d8] sm:$0xff]
      %v3072 = vld [vmem:[#allocation4 + $0x1e0] sm:$0xff]
      %v3073 = vld [vmem:[#allocation4 + $0x1e8] sm:$0xff]
      %v3074 = vld [vmem:[#allocation4 + $0x1f0] sm:$0xff]
      %v3075 = vld [vmem:[#allocation4 + $0x1f8] sm:$0xff]
      %v3076 = vld [vmem:[#allocation16] sm:$0x3]
      %v3077 = vunpack.c.l.bf16 %v3076
      %v3079 = vlaneseq
      %v3080 = vshrl.u32 %v3079, 7
      %v3081 = vsub.s32 0, %v3080
      %v3082 = vrot.slane %v3077, %v3081
      %v3083 = vlaneseq
      %v3084 = vshrl.u32 %v3083, 7
      %v3085 = vsub.s32 2, %v3084
      %v3086 = vrot.slane %v3077, %v3085
      %v3089 = vlaneseq
      %v3090 = vshrl.u32 %v3089, 7
      %v3091 = vsub.s32 0, %v3090
      %v3092 = vrot.slane %v3082, %v3091
      %v3093 = vlaneseq
      %v3094 = vshrl.u32 %v3093, 7
      %v3095 = vsub.s32 0, %v3094
      %v3096 = vrot.slane %v3086, %v3095
      %v3097 = vadd.f32 %v3012, %v3092
      %v3098 = vadd.f32 %v3013, %v3096
      %v3099 = vadd.f32 %v3014, %v3092
      %v3100 = vadd.f32 %v3015, %v3096
      %v3101 = vadd.f32 %v3016, %v3092
      %v3102 = vadd.f32 %v3017, %v3096
      %v3103 = vadd.f32 %v3018, %v3092
      %v3104 = vadd.f32 %v3019, %v3096
      %v3105 = vadd.f32 %v3020, %v3092
      %v3106 = vadd.f32 %v3021, %v3096
      %v3107 = vadd.f32 %v3022, %v3092
      %v3108 = vadd.f32 %v3023, %v3096
      %v3109 = vadd.f32 %v3024, %v3092
      %v3110 = vadd.f32 %v3025, %v3096
      %v3111 = vadd.f32 %v3026, %v3092
      %v3112 = vadd.f32 %v3027, %v3096
      %v3113 = vadd.f32 %v3028, %v3092
      %v3114 = vadd.f32 %v3029, %v3096
      %v3115 = vadd.f32 %v3030, %v3092
      %v3116 = vadd.f32 %v3031, %v3096
      %v3117 = vadd.f32 %v3032, %v3092
      %v3118 = vadd.f32 %v3033, %v3096
      %v3119 = vadd.f32 %v3034, %v3092
      %v3120 = vadd.f32 %v3035, %v3096
      %v3121 = vadd.f32 %v3036, %v3092
      %v3122 = vadd.f32 %v3037, %v3096
      %v3123 = vadd.f32 %v3038, %v3092
      %v3124 = vadd.f32 %v3039, %v3096
      %v3125 = vadd.f32 %v3040, %v3092
      %v3126 = vadd.f32 %v3041, %v3096
      %v3127 = vadd.f32 %v3042, %v3092
      %v3128 = vadd.f32 %v3043, %v3096
      %v3129 = vadd.f32 %v3044, %v3092
      %v3130 = vadd.f32 %v3045, %v3096
      %v3131 = vadd.f32 %v3046, %v3092
      %v3132 = vadd.f32 %v3047, %v3096
      %v3133 = vadd.f32 %v3048, %v3092
      %v3134 = vadd.f32 %v3049, %v3096
      %v3135 = vadd.f32 %v3050, %v3092
      %v3136 = vadd.f32 %v3051, %v3096
      %v3137 = vadd.f32 %v3052, %v3092
      %v3138 = vadd.f32 %v3053, %v3096
      %v3139 = vadd.f32 %v3054, %v3092
      %v3140 = vadd.f32 %v3055, %v3096
      %v3141 = vadd.f32 %v3056, %v3092
      %v3142 = vadd.f32 %v3057, %v3096
      %v3143 = vadd.f32 %v3058, %v3092
      %v3144 = vadd.f32 %v3059, %v3096
      %v3145 = vadd.f32 %v3060, %v3092
      %v3146 = vadd.f32 %v3061, %v3096
      %v3147 = vadd.f32 %v3062, %v3092
      %v3148 = vadd.f32 %v3063, %v3096
      %v3149 = vadd.f32 %v3064, %v3092
      %v3150 = vadd.f32 %v3065, %v3096
      %v3151 = vadd.f32 %v3066, %v3092
      %v3152 = vadd.f32 %v3067, %v3096
      %v3153 = vadd.f32 %v3068, %v3092
      %v3154 = vadd.f32 %v3069, %v3096
      %v3155 = vadd.f32 %v3070, %v3092
      %v3156 = vadd.f32 %v3071, %v3096
      %v3157 = vadd.f32 %v3072, %v3092
      %v3158 = vadd.f32 %v3073, %v3096
      %v3159 = vadd.f32 %v3074, %v3092
      %v3160 = vadd.f32 %v3075, %v3096
      %v3161 = vpack.c.bf16 %v3099, %v3097
      %v3162 = vpack.c.bf16 %v3100, %v3098
      %v3163 = vpack.c.bf16 %v3103, %v3101
      %v3164 = vpack.c.bf16 %v3104, %v3102
      %v3165 = vpack.c.bf16 %v3107, %v3105
      %v3166 = vpack.c.bf16 %v3108, %v3106
      %v3167 = vpack.c.bf16 %v3111, %v3109
      %v3168 = vpack.c.bf16 %v3112, %v3110
      %v3169 = vpack.c.bf16 %v3115, %v3113
      %v3170 = vpack.c.bf16 %v3116, %v3114
      %v3171 = vpack.c.bf16 %v3119, %v3117
      %v3172 = vpack.c.bf16 %v3120, %v3118
      %v3173 = vpack.c.bf16 %v3123, %v3121
      %v3174 = vpack.c.bf16 %v3124, %v3122
      %v3175 = vpack.c.bf16 %v3127, %v3125
      %v3176 = vpack.c.bf16 %v3128, %v3126
      %v3177 = vpack.c.bf16 %v3131, %v3129
      %v3178 = vpack.c.bf16 %v3132, %v3130
      %v3179 = vpack.c.bf16 %v3135, %v3133
      %v3180 = vpack.c.bf16 %v3136, %v3134
      %v3181 = vpack.c.bf16 %v3139, %v3137
      %v3182 = vpack.c.bf16 %v3140, %v3138
      %v3183 = vpack.c.bf16 %v3143, %v3141
      %v3184 = vpack.c.bf16 %v3144, %v3142
      %v3185 = vpack.c.bf16 %v3147, %v3145
      %v3186 = vpack.c.bf16 %v3148, %v3146
      %v3187 = vpack.c.bf16 %v3151, %v3149
      %v3188 = vpack.c.bf16 %v3152, %v3150
      %v3189 = vpack.c.bf16 %v3155, %v3153
      %v3190 = vpack.c.bf16 %v3156, %v3154
      %v3191 = vpack.c.bf16 %v3159, %v3157
      %v3192 = vpack.c.bf16 %v3160, %v3158
      %v3225 = vunpack.c.l.b16 %v3161
      %v3226 = vunpack.c.l.b16 %v3162
      %v3227 = vunpack.c.h.b16 %v3161
      %v3228 = vunpack.c.h.b16 %v3162
      %v3229 = vunpack.c.l.b16 %v3163
      %v3230 = vunpack.c.l.b16 %v3164
      %v3231 = vunpack.c.h.b16 %v3163
      %v3232 = vunpack.c.h.b16 %v3164
      %v3233 = vunpack.c.l.b16 %v3165
      %v3234 = vunpack.c.l.b16 %v3166
      %v3235 = vunpack.c.h.b16 %v3165
      %v3236 = vunpack.c.h.b16 %v3166
      %v3237 = vunpack.c.l.b16 %v3167
      %v3238 = vunpack.c.l.b16 %v3168
      %v3239 = vunpack.c.h.b16 %v3167
      %v3240 = vunpack.c.h.b16 %v3168
      %v3241 = vunpack.c.l.b16 %v3169
      %v3242 = vunpack.c.l.b16 %v3170
      %v3243 = vunpack.c.h.b16 %v3169
      %v3244 = vunpack.c.h.b16 %v3170
      %v3245 = vunpack.c.l.b16 %v3171
      %v3246 = vunpack.c.l.b16 %v3172
      %v3247 = vunpack.c.h.b16 %v3171
      %v3248 = vunpack.c.h.b16 %v3172
      %v3249 = vunpack.c.l.b16 %v3173
      %v3250 = vunpack.c.l.b16 %v3174
      %v3251 = vunpack.c.h.b16 %v3173
      %v3252 = vunpack.c.h.b16 %v3174
      %v3253 = vunpack.c.l.b16 %v3175
      %v3254 = vunpack.c.l.b16 %v3176
      %v3255 = vunpack.c.h.b16 %v3175
      %v3256 = vunpack.c.h.b16 %v3176
      %v3257 = vunpack.c.l.b16 %v3177
      %v3258 = vunpack.c.l.b16 %v3178
      %v3259 = vunpack.c.h.b16 %v3177
      %v3260 = vunpack.c.h.b16 %v3178
      %v3261 = vunpack.c.l.b16 %v3179
      %v3262 = vunpack.c.l.b16 %v3180
      %v3263 = vunpack.c.h.b16 %v3179
      %v3264 = vunpack.c.h.b16 %v3180
      %v3265 = vunpack.c.l.b16 %v3181
      %v3266 = vunpack.c.l.b16 %v3182
      %v3267 = vunpack.c.h.b16 %v3181
      %v3268 = vunpack.c.h.b16 %v3182
      %v3269 = vunpack.c.l.b16 %v3183
      %v3270 = vunpack.c.l.b16 %v3184
      %v3271 = vunpack.c.h.b16 %v3183
      %v3272 = vunpack.c.h.b16 %v3184
      %v3273 = vunpack.c.l.b16 %v3185
      %v3274 = vunpack.c.l.b16 %v3186
      %v3275 = vunpack.c.h.b16 %v3185
      %v3276 = vunpack.c.h.b16 %v3186
      %v3277 = vunpack.c.l.b16 %v3187
      %v3278 = vunpack.c.l.b16 %v3188
      %v3279 = vunpack.c.h.b16 %v3187
      %v3280 = vunpack.c.h.b16 %v3188
      %v3281 = vunpack.c.l.b16 %v3189
      %v3282 = vunpack.c.l.b16 %v3190
      %v3283 = vunpack.c.h.b16 %v3189
      %v3284 = vunpack.c.h.b16 %v3190
      %v3285 = vunpack.c.l.b16 %v3191
      %v3286 = vunpack.c.l.b16 %v3192
      %v3287 = vunpack.c.h.b16 %v3191
      %v3288 = vunpack.c.h.b16 %v3192
      %v3289 = vpack.c.b16 %v3226, %v3225
      %v3290 = vpack.c.b16 %v3228, %v3227
      %v3291 = vpack.c.b16 %v3230, %v3229
      %v3292 = vpack.c.b16 %v3232, %v3231
      %v3293 = vpack.c.b16 %v3234, %v3233
      %v3294 = vpack.c.b16 %v3236, %v3235
      %v3295 = vpack.c.b16 %v3238, %v3237
      %v3296 = vpack.c.b16 %v3240, %v3239
      %v3297 = vpack.c.b16 %v3242, %v3241
      %v3298 = vpack.c.b16 %v3244, %v3243
      %v3299 = vpack.c.b16 %v3246, %v3245
      %v3300 = vpack.c.b16 %v3248, %v3247
      %v3301 = vpack.c.b16 %v3250, %v3249
      %v3302 = vpack.c.b16 %v3252, %v3251
      %v3303 = vpack.c.b16 %v3254, %v3253
      %v3304 = vpack.c.b16 %v3256, %v3255
      %v3305 = vpack.c.b16 %v3258, %v3257
      %v3306 = vpack.c.b16 %v3260, %v3259
      %v3307 = vpack.c.b16 %v3262, %v3261
      %v3308 = vpack.c.b16 %v3264, %v3263
      %v3309 = vpack.c.b16 %v3266, %v3265
      %v3310 = vpack.c.b16 %v3268, %v3267
      %v3311 = vpack.c.b16 %v3270, %v3269
      %v3312 = vpack.c.b16 %v3272, %v3271
      %v3313 = vpack.c.b16 %v3274, %v3273
      %v3314 = vpack.c.b16 %v3276, %v3275
      %v3315 = vpack.c.b16 %v3278, %v3277
      %v3316 = vpack.c.b16 %v3280, %v3279
      %v3317 = vpack.c.b16 %v3282, %v3281
      %v3318 = vpack.c.b16 %v3284, %v3283
      %v3319 = vpack.c.b16 %v3286, %v3285
      %v3320 = vpack.c.b16 %v3288, %v3287
      %3353 = vst [vmem:[#allocation20] sm:$0xff] %v3289
      %3354 = vst [vmem:[#allocation20 + $0x8] sm:$0xff] %v3290
      %3355 = vst [vmem:[#allocation20 + $0x10] sm:$0xff] %v3291
      %3356 = vst [vmem:[#allocation20 + $0x18] sm:$0xff] %v3292
      %3357 = vst [vmem:[#allocation20 + $0x20] sm:$0xff] %v3293
      %3358 = vst [vmem:[#allocation20 + $0x28] sm:$0xff] %v3294
      %3359 = vst [vmem:[#allocation20 + $0x30] sm:$0xff] %v3295
      %3360 = vst [vmem:[#allocation20 + $0x38] sm:$0xff] %v3296
      %3361 = vst [vmem:[#allocation20 + $0x40] sm:$0xff] %v3297
      %3362 = vst [vmem:[#allocation20 + $0x48] sm:$0xff] %v3298
      %3363 = vst [vmem:[#allocation20 + $0x50] sm:$0xff] %v3299
      %3364 = vst [vmem:[#allocation20 + $0x58] sm:$0xff] %v3300
      %3365 = vst [vmem:[#allocation20 + $0x60] sm:$0xff] %v3301
      %3366 = vst [vmem:[#allocation20 + $0x68] sm:$0xff] %v3302
      %3367 = vst [vmem:[#allocation20 + $0x70] sm:$0xff] %v3303
      %3368 = vst [vmem:[#allocation20 + $0x78] sm:$0xff] %v3304
      %3369 = vst [vmem:[#allocation20 + $0x80] sm:$0xff] %v3305
      %3370 = vst [vmem:[#allocation20 + $0x88] sm:$0xff] %v3306
      %3371 = vst [vmem:[#allocation20 + $0x90] sm:$0xff] %v3307
      %3372 = vst [vmem:[#allocation20 + $0x98] sm:$0xff] %v3308
      %3373 = vst [vmem:[#allocation20 + $0xa0] sm:$0xff] %v3309
      %3374 = vst [vmem:[#allocation20 + $0xa8] sm:$0xff] %v3310
      %3375 = vst [vmem:[#allocation20 + $0xb0] sm:$0xff] %v3311
      %3376 = vst [vmem:[#allocation20 + $0xb8] sm:$0xff] %v3312
      %3377 = vst [vmem:[#allocation20 + $0xc0] sm:$0xff] %v3313
      %3378 = vst [vmem:[#allocation20 + $0xc8] sm:$0xff] %v3314
      %3379 = vst [vmem:[#allocation20 + $0xd0] sm:$0xff] %v3315
      %3380 = vst [vmem:[#allocation20 + $0xd8] sm:$0xff] %v3316
      %3381 = vst [vmem:[#allocation20 + $0xe0] sm:$0xff] %v3317
      %3382 = vst [vmem:[#allocation20 + $0xe8] sm:$0xff] %v3318
      %3383 = vst [vmem:[#allocation20 + $0xf0] sm:$0xff] %v3319
      %3384 = vst [vmem:[#allocation20 + $0xf8] sm:$0xff] %v3320
    $region65: #{tpu_custom_call.1} parent=1 // pred_fallthru
      _
    // Predicated region
    $region66: #{tpu_custom_call.1} parent=1 // pred_check
      _
    $region67: #{tpu_custom_call.1} parent=1 // pred_check_branch
      %3386 = sbr.rel (0) target = $region69
    $region68: #{tpu_custom_call.1} parent=1 // pred_region
      %s3388 = ssub.s32 4096, 4096
      %3389 = vsyncadd [#allocation7], %s3388
      %s3390 = sshll.u32 [#allocation17], 4
      %s3391 = int_to_ptr.vmem [resolvable:$true] %s3390
      %3396 = dma.vmem_to_hbm [thread:$0]  %s3391, 4096, %s7, [#allocation7], 128, 128, 8
    $region69: #{tpu_custom_call.1} parent=1 // pred_fallthru
      _
    // Predicated region
    $region70: #{tpu_custom_call.1} parent=1 // pred_check
      _
    $region71: #{tpu_custom_call.1} parent=1 // pred_check_branch
      %3398 = sbr.rel (0) target = $region73
    $region72: #{tpu_custom_call.1} parent=1 // pred_region
      %s3400 = ssub.s32 4096, 4096
      %3401 = vsyncadd [#allocation19], %s3400
      %s3402 = sshll.u32 [#allocation18], 4
      %s3403 = int_to_ptr.vmem [resolvable:$true] %s3402
      %3408 = dma.vmem_to_hbm [thread:$0]  %s3403, 4096, %s8, [#allocation19], 128, 128, 8
    $region73: #{tpu_custom_call.1} parent=1 // pred_fallthru
      _
    // Predicated region
    $region74: #{tpu_custom_call.1} parent=1 // pred_check
      _
    $region75: #{tpu_custom_call.1} parent=1 // pred_check_branch
      %3410 = sbr.rel (0) target = $region77
    $region76: #{tpu_custom_call.1} parent=1 // pred_region
      %s3412 = ssub.s32 4096, 4096
      %3413 = vsyncadd [#allocation19], %s3412
      %s3414 = sshll.u32 [#allocation20], 4
      %s3415 = int_to_ptr.vmem [resolvable:$true] %s3414
      %3420 = dma.vmem_to_hbm [thread:$0]  %s3415, 4096, %s9, [#allocation19], 128, 128, 8
    $region77: #{tpu_custom_call.1} parent=1 // pred_fallthru
      _
    // Predicated region
    $region78: #{tpu_custom_call.1} parent=1 // pred_check
      _
    $region79: #{tpu_custom_call.1} parent=1 // pred_check_branch
      %3422 = sbr.rel (0) target = $region81
    $region80: #{tpu_custom_call.1} parent=1 // pred_region
      %3423 = dma.done [#allocation7], 4096
    $region81: #{tpu_custom_call.1} parent=1 // pred_fallthru
      _
    // Predicated region
    $region82: #{tpu_custom_call.1} parent=1 // pred_check
      _
    $region83: #{tpu_custom_call.1} parent=1 // pred_check_branch
      %3425 = sbr.rel (0) target = $region85
    $region84: #{tpu_custom_call.1} parent=1 // pred_region
      %3426 = dma.done [#allocation19], 4096
    $region85: #{tpu_custom_call.1} parent=1 // pred_fallthru
      _
    // Predicated region
    $region86: #{tpu_custom_call.1} parent=1 // pred_check
      _
    $region87: #{tpu_custom_call.1} parent=1 // pred_check_branch
      %3428 = sbr.rel (0) target = $region89
    $region88: #{tpu_custom_call.1} parent=1 // pred_region
      %3429 = dma.done [#allocation19], 4096
    $region89: #{tpu_custom_call.1} parent=1 // pred_fallthru
      _
    %3430 = vsyncpa [#allocation6], 1
    %3431 = vsyncpa [#allocation9], 1
    %3432 = vsyncpa [#allocation12], 1
    %3433 = vsyncpa [#allocation15], 1
    %3434 = vsyncpa [#allocation7], 1
    %3435 = vsyncpa [#allocation19], 1

</llo_original>
